<compile_context>
chip_gen: v5e
topology: v5e:2x2
jax: 0.10.0
libtpu: 0.0.40
codegen_flags: <defaults>
</compile_context>

<pallas_src>
import jax
import jax.numpy as jnp
from jax.experimental import pallas as pl
from jax.experimental.pallas import tpu as pltpu

CPAD = 128                 # lane-dense channel width for every matmul/store
CIN = 4
COUT = (32, 64, 64, 16)
K1, S1 = 8, 4              # conv1
K2, S2 = 4, 2              # conv2
K3 = 3                     # conv3 (stride 1)
K4 = 3                     # conv4 (stride 1)

MAX_BATCH_TILE = 8         # images fused per grid step (VMEM-safe incl. v7x 64MiB)
CHUNK_TARGET = 256         # output rows per accumulation chunk (vreg budget)


def _round8(n):
    return -(-n // 8) * 8


def _row_chunks(nrows, target=CHUNK_TARGET):
    """Split [0, nrows) into multiple-of-8 row chunks of at most `target` rows."""
    chunks, r0 = [], 0
    while r0 < nrows:
        sz = min(target, nrows - r0)
        chunks.append((r0, sz))
        r0 += sz
    return tuple(chunks)


# ---------------------------------------------------------------------------
# Fused 4-layer kernel (all static shapes closed over at trace time)
# ---------------------------------------------------------------------------
def _make_encoder_kernel(Ws, NROWS, chunks, R1, R23):
    starts2 = tuple(qi * Ws + qj for qi in range(2) for qj in range(2))   # conv2 (qi,qj)
    starts34 = tuple(i * Ws + j for i in range(3) for j in range(3))      # conv3/4 (i,j)

    def kernel(p_ref, w1_ref, w2_ref, w3_ref, w4_ref, b_ref, o_ref,
               a1_ref, a2_ref, a3_ref):
        f32 = jnp.float32

        # Zero ONLY the trailing pad rows: every row < NROWS is overwritten
        # below, and scratch is per-core so this is re-done every grid step.
        a1_ref[NROWS:R1, :] = jnp.zeros((R1 - NROWS, CPAD), a1_ref.dtype)
        a2_ref[NROWS:R23, :] = jnp.zeros((R23 - NROWS, CPAD), a2_ref.dtype)
        a3_ref[NROWS:R23, :] = jnp.zeros((R23 - NROWS, CPAD), a3_ref.dtype)

        b1 = b_ref[0:1, :]
        b2 = b_ref[1:2, :]
        b3 = b_ref[2:3, :]
        b4 = b_ref[3:4, :]

        # ---- conv1 + ReLU: 4 dots/chunk (one per output-parity phase),
        #      K=256, N=128 fully lane-packed (4 phases x 32 channels) --------
        for r0, sz in chunks:
            acc = jnp.zeros((sz, CPAD), f32)
            for g in range(4):
                acc = acc + jnp.dot(p_ref[0, g, r0:r0 + sz, :], w1_ref[g, :, :],
                                    preferred_element_type=f32)
            a1_ref[r0:r0 + sz, :] = jnp.maximum(acc + b1, 0.0).astype(a1_ref.dtype)

        # ---- conv2 + ReLU: k=4,s=2 -> 4 dots/chunk (one per (qi,qj)),
        #      K=128 fully dense (4 phases x 32 in-channels in the lanes) -----
        for r0, sz in chunks:
            acc = jnp.zeros((sz, CPAD), f32)
            for t in range(4):
                s0 = starts2[t] + r0
                acc = acc + jnp.dot(a1_ref[s0:s0 + sz, :], w2_ref[t, :, :],
                                    preferred_element_type=f32)
            a2_ref[r0:r0 + sz, :] = jnp.maximum(acc + b2, 0.0).astype(a2_ref.dtype)

        # ---- conv3 + ReLU: k=3,s=1 -> 9 tap dots/chunk -----------------------
        for r0, sz in chunks:
            acc = jnp.zeros((sz, CPAD), f32)
            for t in range(9):
                s0 = starts34[t] + r0
                acc = acc + jnp.dot(a2_ref[s0:s0 + sz, :], w3_ref[t, :, :],
                                    preferred_element_type=f32)
            a3_ref[r0:r0 + sz, :] = jnp.maximum(acc + b3, 0.0).astype(a3_ref.dtype)

        # ---- conv4 + ReLU: k=3,s=1 -> 9 tap dots/chunk, lane-dense f32 out ---
        for r0, sz in chunks:
            acc = jnp.zeros((sz, CPAD), f32)
            for t in range(9):
                s0 = starts34[t] + r0
                acc = acc + jnp.dot(a3_ref[s0:s0 + sz, :], w4_ref[t, :, :],
                                    preferred_element_type=f32)
            o_ref[0, r0:r0 + sz, :] = jnp.maximum(acc + b4, 0.0)

    return kernel


# ---------------------------------------------------------------------------
# One-time parameter repacking (hoisted out of the forward path)
# ---------------------------------------------------------------------------
def prepare_params(params):
    """PyTorch-layout (OIHW weight, bias) -> kernel-ready bf16 matmul slabs."""
    (w1, b1), (w2, b2), (w3, b3), (w4, b4) = params
    f32 = jnp.float32

    # conv1: one (256, 32) im2col matrix (K ordered (i,j,cin)); phase g's output
    # channels are placed at lanes [32g, 32g+32) so all 4 phase dots accumulate
    # into ONE lane-packed a1 slab.
    o1, i1, kh1, kw1 = w1.shape                                    # 32,4,8,8
    w1m = jnp.transpose(w1.astype(f32), (2, 3, 1, 0)).reshape(kh1 * kw1 * i1, o1)
    w1p = jnp.zeros((4, kh1 * kw1 * i1, CPAD), f32)
    for g in range(4):
        w1p = w1p.at[g, :, o1 * g:o1 * (g + 1)].set(w1m)

    # conv2: 4 slabs (one per (qi,qj)); K lanes = 4 phases x 32 in-channels,
    # lane block g = pi*2+pj holds tap (i,j) = (2qi+pi, 2qj+pj).
    o2, i2, _, _ = w2.shape                                        # 64,32,4,4
    w2p = jnp.zeros((4, CPAD, CPAD), f32)
    for qi in range(2):
        for qj in range(2):
            t = qi * 2 + qj
            for pi in range(2):
                for pj in range(2):
                    g = pi * 2 + pj
                    blk = jnp.transpose(
                        w2[:, :, 2 * qi + pi, 2 * qj + pj].astype(f32), (1, 0))  # (32,64)
                    w2p = w2p.at[t, i2 * g:i2 * (g + 1), 0:o2].set(blk)

    def tap_w(w):                         # (O, I, kh, kw) -> (kh*kw, CPAD, CPAD)
        o, i, kh, kw = w.shape
        wt = jnp.transpose(w.astype(f32), (2, 3, 1, 0))            # (kh,kw,I,O)
        wt = jnp.pad(wt, ((0, 0), (0, 0), (0, CPAD - i), (0, CPAD - o)))
        return wt.reshape(kh * kw, CPAD, CPAD)

    def pad_b(b):
        return jnp.pad(b.astype(f32), (0, CPAD - b.shape[0]))

    b1p = jnp.tile(b1.astype(f32), 4)     # lanes 32g + c hold b1[c]
    return {
        "w1": w1p.astype(jnp.bfloat16),
        "w2": w2p.astype(jnp.bfloat16),
        "w3": tap_w(w3).astype(jnp.bfloat16),
        "w4": tap_w(w4).astype(jnp.bfloat16),
        "b": jnp.stack([b1p, pad_b(b2), pad_b(b3), pad_b(b4)]),
    }


# ---------------------------------------------------------------------------
# Forward pass
# ---------------------------------------------------------------------------
@jax.jit
def encoder_forward(x_nchw, kparams):
    """x_nchw: (B, 4, H, W) f32 -> (B, 16, OH4, OW4) f32 (== PyTorch encoder)."""
    B, cin, H, W = x_nchw.shape
    assert cin == CIN
    OH1, OW1 = (H - K1) // S1 + 1, (W - K1) // S1 + 1
    OH2, OW2 = (OH1 - K2) // S2 + 1, (OW1 - K2) // S2 + 1
    OH3, OW3 = OH2 - K3 + 1, OW2 - K3 + 1
    OH4, OW4 = OH3 - K4 + 1, OW3 - K4 + 1
    assert OH4 >= 1 and OW4 >= 1, "input spatially too small for the conv stack"
    assert OH1 % 2 == 0 and OW1 % 2 == 0, (
        "conv1 output must have even H/W (phase split removes conv2's stride)")
    Hh, Ws = OH1 // 2, OW1 // 2
    M1, Kdim = Hh * Ws, K1 * K1 * CIN

    # Common per-image row stride for every slab (M1 >= M2 >= M3 >= M4).
    S = _round8(M1)
    B_TILE = min(B, MAX_BATCH_TILE)
    Bp = -(-B // B_TILE) * B_TILE
    BG = Bp // B_TILE
    NROWS = B_TILE * S
    chunks = _row_chunks(NROWS)

    # Scratch slab rows: NROWS written rows + tap-overhang pad rows.
    R1 = _round8(NROWS + Ws + 1)
    R23 = _round8(NROWS + 2 * Ws + 2)

    # conv1 im2col grouped by conv1-output parity (pure layout, plain JAX; the
    # raw input is the only tensor that crosses HBM on the way in).  bf16 cast
    # happens up front so the layout ops move half the bytes.
    x = jnp.transpose(x_nchw, (0, 2, 3, 1)).astype(jnp.bfloat16)   # NCHW -> NHWC
    if Bp != B:
        x = jnp.pad(x, ((0, Bp - B), (0, 0), (0, 0), (0, 0)))
    taps = []
    for i in range(K1):
        for j in range(K1):
            taps.append(x[:, i:i + S1 * OH1:S1, j:j + S1 * OW1:S1, :])
    p = jnp.stack(taps, axis=3).reshape(Bp, OH1, OW1, Kdim)        # K = (i, j, c)
    p = p.reshape(Bp, Hh, 2, Ws, 2, Kdim)
    p = jnp.transpose(p, (0, 2, 4, 1, 3, 5)).reshape(Bp, 4, M1, Kdim)
    p = jnp.pad(p, ((0, 0), (0, 0), (0, S - M1), (0, 0)))          # per-image stride S
    p = p.reshape(BG, B_TILE, 4, S, Kdim)
    p = jnp.transpose(p, (0, 2, 1, 3, 4)).reshape(BG, 4, NROWS, Kdim)

    kernel = _make_encoder_kernel(Ws, NROWS, chunks, R1, R23)
    out = pl.pallas_call(
        kernel,
        out_shape=jax.ShapeDtypeStruct((BG, NROWS, CPAD), jnp.float32),
        grid_spec=pltpu.PrefetchScalarGridSpec(
            num_scalar_prefetch=0,
            grid=(BG,),
            in_specs=[
                pl.BlockSpec((1, 4, NROWS, Kdim), lambda b: (b, 0, 0, 0)),
                pl.BlockSpec((4, Kdim, CPAD), lambda b: (0, 0, 0)),
                pl.BlockSpec((4, CPAD, CPAD), lambda b: (0, 0, 0)),
                pl.BlockSpec((K3 * K3, CPAD, CPAD), lambda b: (0, 0, 0)),
                pl.BlockSpec((K4 * K4, CPAD, CPAD), lambda b: (0, 0, 0)),
                pl.BlockSpec((4, CPAD), lambda b: (0, 0)),
            ],
            out_specs=pl.BlockSpec((1, NROWS, CPAD), lambda b: (b, 0, 0)),
            scratch_shapes=[
                pltpu.VMEM((R1, CPAD), jnp.bfloat16),    # conv1 act, 4 phases lane-packed
                pltpu.VMEM((R23, CPAD), jnp.bfloat16),   # conv2 act
                pltpu.VMEM((R23, CPAD), jnp.bfloat16),   # conv3 act
            ],
        ),
        compiler_params=pltpu.CompilerParams(
            dimension_semantics=("parallel",),           # batch axis across cores
            vmem_limit_bytes=48 * 1024 * 1024,
        ),
    )(p, kparams["w1"], kparams["w2"], kparams["w3"], kparams["w4"], kparams["b"])

    # drop discarded full-width columns / batch & lane padding, back to NCHW
    out = out.reshape(Bp, S, CPAD)[:B, :OH4 * Ws, :]
    out = out.reshape(B, OH4, Ws, CPAD)[:, :, :OW4, :COUT[3]]
    return jnp.transpose(out, (0, 3, 1, 2))


# ---------------------------------------------------------------------------
# Param init (nn.Conv2d-shaped, OIHW) and pure-JAX reference for the check
# ---------------------------------------------------------------------------
def init_params(key):
    shapes = [(32, 4, 8, 8), (64, 32, 4, 4), (64, 64, 3, 3), (16, 64, 3, 3)]
    params = []
    for i, s in enumerate(shapes):
        kw_, kb_ = jax.random.split(jax.random.fold_in(key, i))
        fan_in = s[1] * s[2] * s[3]
        bound = 1.0 / jnp.sqrt(fan_in)
        w = jax.random.uniform(kw_, s, jnp.float32, -bound, bound)
        b = jax.random.uniform(kb_, (s[0],), jnp.float32, -bound, bound)
        params.append((w, b))
    return params


def encoder_reference(x_nchw, params):
    x = x_nchw
    strides = (4, 2, 1, 1)
    for (w, b), s in zip(params, strides):
        x = jax.lax.conv_general_dilated(
            x, w, window_strides=(s, s), padding="VALID",
            dimension_numbers=("NCHW", "OIHW", "NCHW"))
        x = jax.nn.relu(x + b.reshape(1, -1, 1, 1))
    return x


if __name__ == "__main__":
    key = jax.random.PRNGKey(0)
    kx, kx2, kp = jax.random.split(key, 3)

    params = init_params(kp)
    kparams = prepare_params(params)      # one-time weight repacking (hoisted)

    # Smallest spatially valid input for the stack: 52 -> 12 -> 5 -> 3 -> 1
    x = jax.random.uniform(kx, (2, 4, 52, 52), jnp.float32)
    out = jax.block_until_ready(encoder_forward(x, kparams))
    assert out.shape == (2, 16, 1, 1), out.shape
    ref = jax.block_until_ready(encoder_reference(x, params))
    err = float(jnp.max(jnp.abs(out - ref)))
    assert jnp.allclose(out, ref, atol=2e-2, rtol=2e-2), err

    # Second geometry: exercises batch tiling/padding (B=10 > B_TILE=8) and
    # multi-chunk accumulation.  60 -> 14 -> 6 -> 4 -> 2.
    x2 = jax.random.uniform(kx2, (10, 4, 60, 60), jnp.float32)
    out2 = jax.block_until_ready(encoder_forward(x2, kparams))
    assert out2.shape == (10, 16, 2, 2), out2.shape
    ref2 = jax.block_until_ready(encoder_reference(x2, params))
    err2 = float(jnp.max(jnp.abs(out2 - ref2)))
    assert jnp.allclose(out2, ref2, atol=2e-2, rtol=2e-2), err2

    print("KERNEL_OK")
</pallas_src>

<mosaic_0001>
module attributes {stable_mosaic.version = 11 : i64} {
  func.func @kernel(%arg0: i32, %arg1: memref<1x4x80x256xbf16, #tpu.memory_space<vmem>>, %arg2: memref<4x256x128xbf16, #tpu.memory_space<vmem>>, %arg3: memref<4x128x128xbf16, #tpu.memory_space<vmem>>, %arg4: memref<9x128x128xbf16, #tpu.memory_space<vmem>>, %arg5: memref<9x128x128xbf16, #tpu.memory_space<vmem>>, %arg6: memref<4x128xf32, #tpu.memory_space<vmem>>, %arg7: memref<1x80x128xf32, #tpu.memory_space<vmem>>, %arg8: memref<88x128xbf16, #tpu.memory_space<vmem>>, %arg9: memref<96x128xbf16, #tpu.memory_space<vmem>>, %arg10: memref<96x128xbf16, #tpu.memory_space<vmem>>) attributes {dimension_semantics = [#tpu.dimension_semantics<parallel>], iteration_bounds = array<i64: 1>, scalar_prefetch = 0 : i64, scratch_operands = 3 : i64, tpu.core_type = #tpu.core_type<tc>, window_params = [{transform_indices = @transform_0, window_bounds = array<i64: 1, 4, 80, 256>}, {pipeline_mode = #tpu.pipeline_mode<synchronous>, transform_indices = @transform_1, window_bounds = array<i64: 4, 256, 128>}, {pipeline_mode = #tpu.pipeline_mode<synchronous>, transform_indices = @transform_2, window_bounds = array<i64: 4, 128, 128>}, {pipeline_mode = #tpu.pipeline_mode<synchronous>, transform_indices = @transform_3, window_bounds = array<i64: 9, 128, 128>}, {pipeline_mode = #tpu.pipeline_mode<synchronous>, transform_indices = @transform_4, window_bounds = array<i64: 9, 128, 128>}, {pipeline_mode = #tpu.pipeline_mode<synchronous>, transform_indices = @transform_5, window_bounds = array<i64: 4, 128>}, {transform_indices = @transform_6, window_bounds = array<i64: 1, 80, 128>}]} {
    %cst = arith.constant 0.000000e+00 : bf16
    %0 = vector.broadcast %cst : bf16 to vector<8x128xbf16>
    %c80 = arith.constant 80 : index
    %c0 = arith.constant 0 : index
    %1 = vector.load %arg8[%c80, %c0] : memref<88x128xbf16, #tpu.memory_space<vmem>>, vector<8x128xbf16>
    tpu.vector_store %arg8[%c80, %c0], %0 {strides = array<i32>} : memref<88x128xbf16, #tpu.memory_space<vmem>>, vector<8x128xbf16>,
    %cst_0 = arith.constant 0.000000e+00 : bf16
    %2 = vector.broadcast %cst_0 : bf16 to vector<16x128xbf16>
    %c80_1 = arith.constant 80 : index
    %c0_2 = arith.constant 0 : index
    %3 = vector.load %arg9[%c80_1, %c0_2] : memref<96x128xbf16, #tpu.memory_space<vmem>>, vector<16x128xbf16>
    tpu.vector_store %arg9[%c80_1, %c0_2], %2 {strides = array<i32>} : memref<96x128xbf16, #tpu.memory_space<vmem>>, vector<16x128xbf16>,
    %cst_3 = arith.constant 0.000000e+00 : bf16
    %4 = vector.broadcast %cst_3 : bf16 to vector<16x128xbf16>
    %c80_4 = arith.constant 80 : index
    %c0_5 = arith.constant 0 : index
    %5 = vector.load %arg10[%c80_4, %c0_5] : memref<96x128xbf16, #tpu.memory_space<vmem>>, vector<16x128xbf16>
    tpu.vector_store %arg10[%c80_4, %c0_5], %4 {strides = array<i32>} : memref<96x128xbf16, #tpu.memory_space<vmem>>, vector<16x128xbf16>,
    %c0_6 = arith.constant 0 : index
    %c0_7 = arith.constant 0 : index
    %6 = vector.load %arg6[%c0_6, %c0_7] : memref<4x128xf32, #tpu.memory_space<vmem>>, vector<1x128xf32>
    %c1 = arith.constant 1 : index
    %c0_8 = arith.constant 0 : index
    %7 = vector.load %arg6[%c1, %c0_8] : memref<4x128xf32, #tpu.memory_space<vmem>>, vector<1x128xf32>
    %c2 = arith.constant 2 : index
    %c0_9 = arith.constant 0 : index
    %8 = vector.load %arg6[%c2, %c0_9] : memref<4x128xf32, #tpu.memory_space<vmem>>, vector<1x128xf32>
    %c3 = arith.constant 3 : index
    %c0_10 = arith.constant 0 : index
    %9 = vector.load %arg6[%c3, %c0_10] : memref<4x128xf32, #tpu.memory_space<vmem>>, vector<1x128xf32>
    %cst_11 = arith.constant 0.000000e+00 : f32
    %10 = vector.broadcast %cst_11 : f32 to vector<80x128xf32>
    %c0_12 = arith.constant 0 : index
    %c0_13 = arith.constant 0 : index
    %c0_14 = arith.constant 0 : index
    %c0_15 = arith.constant 0 : index
    %11 = vector.load %arg1[%c0_12, %c0_13, %c0_14, %c0_15] : memref<1x4x80x256xbf16, #tpu.memory_space<vmem>>, vector<1x1x80x256xbf16>
    %12 = vector.shape_cast %11 : vector<1x1x80x256xbf16> to vector<80x256xbf16>
    %c0_16 = arith.constant 0 : index
    %c0_17 = arith.constant 0 : index
    %c0_18 = arith.constant 0 : index
    %13 = vector.load %arg2[%c0_16, %c0_17, %c0_18] : memref<4x256x128xbf16, #tpu.memory_space<vmem>>, vector<1x256x128xbf16>
    %14 = vector.shape_cast %13 : vector<1x256x128xbf16> to vector<256x128xbf16>
    %cst_19 = arith.constant dense<0.000000e+00> : vector<80x128xf32>
    %15 = tpu.matmul %12, %14, %cst_19 {dimension_numbers = #tpu.dot_dimension_numbers<[1], [0], [0], [1], [0, 0, 1, 1], [], []>} : vector<80x256xbf16>, vector<256x128xbf16>, vector<80x128xf32> -> vector<80x128xf32>
    %16 = arith.addf %10, %15 : vector<80x128xf32>
    %c0_20 = arith.constant 0 : index
    %c1_21 = arith.constant 1 : index
    %c0_22 = arith.constant 0 : index
    %c0_23 = arith.constant 0 : index
    %17 = vector.load %arg1[%c0_20, %c1_21, %c0_22, %c0_23] : memref<1x4x80x256xbf16, #tpu.memory_space<vmem>>, vector<1x1x80x256xbf16>
    %18 = vector.shape_cast %17 : vector<1x1x80x256xbf16> to vector<80x256xbf16>
    %c1_24 = arith.constant 1 : index
    %c0_25 = arith.constant 0 : index
    %c0_26 = arith.constant 0 : index
    %19 = vector.load %arg2[%c1_24, %c0_25, %c0_26] : memref<4x256x128xbf16, #tpu.memory_space<vmem>>, vector<1x256x128xbf16>
    %20 = vector.shape_cast %19 : vector<1x256x128xbf16> to vector<256x128xbf16>
    %cst_27 = arith.constant dense<0.000000e+00> : vector<80x128xf32>
    %21 = tpu.matmul %18, %20, %cst_27 {dimension_numbers = #tpu.dot_dimension_numbers<[1], [0], [0], [1], [0, 0, 1, 1], [], []>} : vector<80x256xbf16>, vector<256x128xbf16>, vector<80x128xf32> -> vector<80x128xf32>
    %22 = arith.addf %16, %21 : vector<80x128xf32>
    %c0_28 = arith.constant 0 : index
    %c2_29 = arith.constant 2 : index
    %c0_30 = arith.constant 0 : index
    %c0_31 = arith.constant 0 : index
    %23 = vector.load %arg1[%c0_28, %c2_29, %c0_30, %c0_31] : memref<1x4x80x256xbf16, #tpu.memory_space<vmem>>, vector<1x1x80x256xbf16>
    %24 = vector.shape_cast %23 : vector<1x1x80x256xbf16> to vector<80x256xbf16>
    %c2_32 = arith.constant 2 : index
    %c0_33 = arith.constant 0 : index
    %c0_34 = arith.constant 0 : index
    %25 = vector.load %arg2[%c2_32, %c0_33, %c0_34] : memref<4x256x128xbf16, #tpu.memory_space<vmem>>, vector<1x256x128xbf16>
    %26 = vector.shape_cast %25 : vector<1x256x128xbf16> to vector<256x128xbf16>
    %cst_35 = arith.constant dense<0.000000e+00> : vector<80x128xf32>
    %27 = tpu.matmul %24, %26, %cst_35 {dimension_numbers = #tpu.dot_dimension_numbers<[1], [0], [0], [1], [0, 0, 1, 1], [], []>} : vector<80x256xbf16>, vector<256x128xbf16>, vector<80x128xf32> -> vector<80x128xf32>
    %28 = arith.addf %22, %27 : vector<80x128xf32>
    %c0_36 = arith.constant 0 : index
    %c3_37 = arith.constant 3 : index
    %c0_38 = arith.constant 0 : index
    %c0_39 = arith.constant 0 : index
    %29 = vector.load %arg1[%c0_36, %c3_37, %c0_38, %c0_39] : memref<1x4x80x256xbf16, #tpu.memory_space<vmem>>, vector<1x1x80x256xbf16>
    %30 = vector.shape_cast %29 : vector<1x1x80x256xbf16> to vector<80x256xbf16>
    %c3_40 = arith.constant 3 : index
    %c0_41 = arith.constant 0 : index
    %c0_42 = arith.constant 0 : index
    %31 = vector.load %arg2[%c3_40, %c0_41, %c0_42] : memref<4x256x128xbf16, #tpu.memory_space<vmem>>, vector<1x256x128xbf16>
    %32 = vector.shape_cast %31 : vector<1x256x128xbf16> to vector<256x128xbf16>
    %cst_43 = arith.constant dense<0.000000e+00> : vector<80x128xf32>
    %33 = tpu.matmul %30, %32, %cst_43 {dimension_numbers = #tpu.dot_dimension_numbers<[1], [0], [0], [1], [0, 0, 1, 1], [], []>} : vector<80x256xbf16>, vector<256x128xbf16>, vector<80x128xf32> -> vector<80x128xf32>
    %34 = arith.addf %28, %33 : vector<80x128xf32>
    %35 = vector.broadcast %6 : vector<1x128xf32> to vector<80x128xf32>
    %36 = arith.addf %34, %35 : vector<80x128xf32>
    %cst_44 = arith.constant 0.000000e+00 : f32
    %37 = vector.broadcast %cst_44 : f32 to vector<80x128xf32>
    %38 = arith.maximumf %36, %37 : vector<80x128xf32>
    %39 = arith.truncf %38 : vector<80x128xf32> to vector<80x128xbf16>
    %c0_45 = arith.constant 0 : index
    %c0_46 = arith.constant 0 : index
    %40 = vector.load %arg8[%c0_45, %c0_46] : memref<88x128xbf16, #tpu.memory_space<vmem>>, vector<80x128xbf16>
    tpu.vector_store %arg8[%c0_45, %c0_46], %39 {strides = array<i32>} : memref<88x128xbf16, #tpu.memory_space<vmem>>, vector<80x128xbf16>,
    %cst_47 = arith.constant 0.000000e+00 : f32
    %41 = vector.broadcast %cst_47 : f32 to vector<80x128xf32>
    %c0_48 = arith.constant 0 : index
    %c0_49 = arith.constant 0 : index
    %42 = vector.load %arg8[%c0_48, %c0_49] : memref<88x128xbf16, #tpu.memory_space<vmem>>, vector<80x128xbf16>
    %c0_50 = arith.constant 0 : index
    %c0_51 = arith.constant 0 : index
    %c0_52 = arith.constant 0 : index
    %43 = vector.load %arg3[%c0_50, %c0_51, %c0_52] : memref<4x128x128xbf16, #tpu.memory_space<vmem>>, vector<1x128x128xbf16>
    %44 = vector.shape_cast %43 : vector<1x128x128xbf16> to vector<128x128xbf16>
    %cst_53 = arith.constant dense<0.000000e+00> : vector<80x128xf32>
    %45 = tpu.matmul %42, %44, %cst_53 {dimension_numbers = #tpu.dot_dimension_numbers<[1], [0], [0], [1], [0, 0, 1, 1], [], []>} : vector<80x128xbf16>, vector<128x128xbf16>, vector<80x128xf32> -> vector<80x128xf32>
    %46 = arith.addf %41, %45 : vector<80x128xf32>
    %c1_54 = arith.constant 1 : index
    %c0_55 = arith.constant 0 : index
    %47 = vector.load %arg8[%c1_54, %c0_55] : memref<88x128xbf16, #tpu.memory_space<vmem>>, vector<80x128xbf16>
    %c1_56 = arith.constant 1 : index
    %c0_57 = arith.constant 0 : index
    %c0_58 = arith.constant 0 : index
    %48 = vector.load %arg3[%c1_56, %c0_57, %c0_58] : memref<4x128x128xbf16, #tpu.memory_space<vmem>>, vector<1x128x128xbf16>
    %49 = vector.shape_cast %48 : vector<1x128x128xbf16> to vector<128x128xbf16>
    %cst_59 = arith.constant dense<0.000000e+00> : vector<80x128xf32>
    %50 = tpu.matmul %47, %49, %cst_59 {dimension_numbers = #tpu.dot_dimension_numbers<[1], [0], [0], [1], [0, 0, 1, 1], [], []>} : vector<80x128xbf16>, vector<128x128xbf16>, vector<80x128xf32> -> vector<80x128xf32>
    %51 = arith.addf %46, %50 : vector<80x128xf32>
    %c6 = arith.constant 6 : index
    %c0_60 = arith.constant 0 : index
    %52 = vector.load %arg8[%c6, %c0_60] : memref<88x128xbf16, #tpu.memory_space<vmem>>, vector<80x128xbf16>
    %c2_61 = arith.constant 2 : index
    %c0_62 = arith.constant 0 : index
    %c0_63 = arith.constant 0 : index
    %53 = vector.load %arg3[%c2_61, %c0_62, %c0_63] : memref<4x128x128xbf16, #tpu.memory_space<vmem>>, vector<1x128x128xbf16>
    %54 = vector.shape_cast %53 : vector<1x128x128xbf16> to vector<128x128xbf16>
    %cst_64 = arith.constant dense<0.000000e+00> : vector<80x128xf32>
    %55 = tpu.matmul %52, %54, %cst_64 {dimension_numbers = #tpu.dot_dimension_numbers<[1], [0], [0], [1], [0, 0, 1, 1], [], []>} : vector<80x128xbf16>, vector<128x128xbf16>, vector<80x128xf32> -> vector<80x128xf32>
    %56 = arith.addf %51, %55 : vector<80x128xf32>
    %c7 = arith.constant 7 : index
    %c0_65 = arith.constant 0 : index
    %57 = vector.load %arg8[%c7, %c0_65] : memref<88x128xbf16, #tpu.memory_space<vmem>>, vector<80x128xbf16>
    %c3_66 = arith.constant 3 : index
    %c0_67 = arith.constant 0 : index
    %c0_68 = arith.constant 0 : index
    %58 = vector.load %arg3[%c3_66, %c0_67, %c0_68] : memref<4x128x128xbf16, #tpu.memory_space<vmem>>, vector<1x128x128xbf16>
    %59 = vector.shape_cast %58 : vector<1x128x128xbf16> to vector<128x128xbf16>
    %cst_69 = arith.constant dense<0.000000e+00> : vector<80x128xf32>
    %60 = tpu.matmul %57, %59, %cst_69 {dimension_numbers = #tpu.dot_dimension_numbers<[1], [0], [0], [1], [0, 0, 1, 1], [], []>} : vector<80x128xbf16>, vector<128x128xbf16>, vector<80x128xf32> -> vector<80x128xf32>
    %61 = arith.addf %56, %60 : vector<80x128xf32>
    %62 = vector.broadcast %7 : vector<1x128xf32> to vector<80x128xf32>
    %63 = arith.addf %61, %62 : vector<80x128xf32>
    %cst_70 = arith.constant 0.000000e+00 : f32
    %64 = vector.broadcast %cst_70 : f32 to vector<80x128xf32>
    %65 = arith.maximumf %63, %64 : vector<80x128xf32>
    %66 = arith.truncf %65 : vector<80x128xf32> to vector<80x128xbf16>
    %c0_71 = arith.constant 0 : index
    %c0_72 = arith.constant 0 : index
    %67 = vector.load %arg9[%c0_71, %c0_72] : memref<96x128xbf16, #tpu.memory_space<vmem>>, vector<80x128xbf16>
    tpu.vector_store %arg9[%c0_71, %c0_72], %66 {strides = array<i32>} : memref<96x128xbf16, #tpu.memory_space<vmem>>, vector<80x128xbf16>,
    %cst_73 = arith.constant 0.000000e+00 : f32
    %68 = vector.broadcast %cst_73 : f32 to vector<80x128xf32>
    %c0_74 = arith.constant 0 : index
    %c0_75 = arith.constant 0 : index
    %69 = vector.load %arg9[%c0_74, %c0_75] : memref<96x128xbf16, #tpu.memory_space<vmem>>, vector<80x128xbf16>
    %c0_76 = arith.constant 0 : index
    %c0_77 = arith.constant 0 : index
    %c0_78 = arith.constant 0 : index
    %70 = vector.load %arg4[%c0_76, %c0_77, %c0_78] : memref<9x128x128xbf16, #tpu.memory_space<vmem>>, vector<1x128x128xbf16>
    %71 = vector.shape_cast %70 : vector<1x128x128xbf16> to vector<128x128xbf16>
    %cst_79 = arith.constant dense<0.000000e+00> : vector<80x128xf32>
    %72 = tpu.matmul %69, %71, %cst_79 {dimension_numbers = #tpu.dot_dimension_numbers<[1], [0], [0], [1], [0, 0, 1, 1], [], []>} : vector<80x128xbf16>, vector<128x128xbf16>, vector<80x128xf32> -> vector<80x128xf32>
    %73 = arith.addf %68, %72 : vector<80x128xf32>
    %c1_80 = arith.constant 1 : index
    %c0_81 = arith.constant 0 : index
    %74 = vector.load %arg9[%c1_80, %c0_81] : memref<96x128xbf16, #tpu.memory_space<vmem>>, vector<80x128xbf16>
    %c1_82 = arith.constant 1 : index
    %c0_83 = arith.constant 0 : index
    %c0_84 = arith.constant 0 : index
    %75 = vector.load %arg4[%c1_82, %c0_83, %c0_84] : memref<9x128x128xbf16, #tpu.memory_space<vmem>>, vector<1x128x128xbf16>
    %76 = vector.shape_cast %75 : vector<1x128x128xbf16> to vector<128x128xbf16>
    %cst_85 = arith.constant dense<0.000000e+00> : vector<80x128xf32>
    %77 = tpu.matmul %74, %76, %cst_85 {dimension_numbers = #tpu.dot_dimension_numbers<[1], [0], [0], [1], [0, 0, 1, 1], [], []>} : vector<80x128xbf16>, vector<128x128xbf16>, vector<80x128xf32> -> vector<80x128xf32>
    %78 = arith.addf %73, %77 : vector<80x128xf32>
    %c2_86 = arith.constant 2 : index
    %c0_87 = arith.constant 0 : index
    %79 = vector.load %arg9[%c2_86, %c0_87] : memref<96x128xbf16, #tpu.memory_space<vmem>>, vector<80x128xbf16>
    %c2_88 = arith.constant 2 : index
    %c0_89 = arith.constant 0 : index
    %c0_90 = arith.constant 0 : index
    %80 = vector.load %arg4[%c2_88, %c0_89, %c0_90] : memref<9x128x128xbf16, #tpu.memory_space<vmem>>, vector<1x128x128xbf16>
    %81 = vector.shape_cast %80 : vector<1x128x128xbf16> to vector<128x128xbf16>
    %cst_91 = arith.constant dense<0.000000e+00> : vector<80x128xf32>
    %82 = tpu.matmul %79, %81, %cst_91 {dimension_numbers = #tpu.dot_dimension_numbers<[1], [0], [0], [1], [0, 0, 1, 1], [], []>} : vector<80x128xbf16>, vector<128x128xbf16>, vector<80x128xf32> -> vector<80x128xf32>
    %83 = arith.addf %78, %82 : vector<80x128xf32>
    %c6_92 = arith.constant 6 : index
    %c0_93 = arith.constant 0 : index
    %84 = vector.load %arg9[%c6_92, %c0_93] : memref<96x128xbf16, #tpu.memory_space<vmem>>, vector<80x128xbf16>
    %c3_94 = arith.constant 3 : index
    %c0_95 = arith.constant 0 : index
    %c0_96 = arith.constant 0 : index
    %85 = vector.load %arg4[%c3_94, %c0_95, %c0_96] : memref<9x128x128xbf16, #tpu.memory_space<vmem>>, vector<1x128x128xbf16>
    %86 = vector.shape_cast %85 : vector<1x128x128xbf16> to vector<128x128xbf16>
    %cst_97 = arith.constant dense<0.000000e+00> : vector<80x128xf32>
    %87 = tpu.matmul %84, %86, %cst_97 {dimension_numbers = #tpu.dot_dimension_numbers<[1], [0], [0], [1], [0, 0, 1, 1], [], []>} : vector<80x128xbf16>, vector<128x128xbf16>, vector<80x128xf32> -> vector<80x128xf32>
    %88 = arith.addf %83, %87 : vector<80x128xf32>
    %c7_98 = arith.constant 7 : index
    %c0_99 = arith.constant 0 : index
    %89 = vector.load %arg9[%c7_98, %c0_99] : memref<96x128xbf16, #tpu.memory_space<vmem>>, vector<80x128xbf16>
    %c4 = arith.constant 4 : index
    %c0_100 = arith.constant 0 : index
    %c0_101 = arith.constant 0 : index
    %90 = vector.load %arg4[%c4, %c0_100, %c0_101] : memref<9x128x128xbf16, #tpu.memory_space<vmem>>, vector<1x128x128xbf16>
    %91 = vector.shape_cast %90 : vector<1x128x128xbf16> to vector<128x128xbf16>
    %cst_102 = arith.constant dense<0.000000e+00> : vector<80x128xf32>
    %92 = tpu.matmul %89, %91, %cst_102 {dimension_numbers = #tpu.dot_dimension_numbers<[1], [0], [0], [1], [0, 0, 1, 1], [], []>} : vector<80x128xbf16>, vector<128x128xbf16>, vector<80x128xf32> -> vector<80x128xf32>
    %93 = arith.addf %88, %92 : vector<80x128xf32>
    %c8 = arith.constant 8 : index
    %c0_103 = arith.constant 0 : index
    %94 = vector.load %arg9[%c8, %c0_103] : memref<96x128xbf16, #tpu.memory_space<vmem>>, vector<80x128xbf16>
    %c5 = arith.constant 5 : index
    %c0_104 = arith.constant 0 : index
    %c0_105 = arith.constant 0 : index
    %95 = vector.load %arg4[%c5, %c0_104, %c0_105] : memref<9x128x128xbf16, #tpu.memory_space<vmem>>, vector<1x128x128xbf16>
    %96 = vector.shape_cast %95 : vector<1x128x128xbf16> to vector<128x128xbf16>
    %cst_106 = arith.constant dense<0.000000e+00> : vector<80x128xf32>
    %97 = tpu.matmul %94, %96, %cst_106 {dimension_numbers = #tpu.dot_dimension_numbers<[1], [0], [0], [1], [0, 0, 1, 1], [], []>} : vector<80x128xbf16>, vector<128x128xbf16>, vector<80x128xf32> -> vector<80x128xf32>
    %98 = arith.addf %93, %97 : vector<80x128xf32>
    %c12 = arith.constant 12 : index
    %c0_107 = arith.constant 0 : index
    %99 = vector.load %arg9[%c12, %c0_107] : memref<96x128xbf16, #tpu.memory_space<vmem>>, vector<80x128xbf16>
    %c6_108 = arith.constant 6 : index
    %c0_109 = arith.constant 0 : index
    %c0_110 = arith.constant 0 : index
    %100 = vector.load %arg4[%c6_108, %c0_109, %c0_110] : memref<9x128x128xbf16, #tpu.memory_space<vmem>>, vector<1x128x128xbf16>
    %101 = vector.shape_cast %100 : vector<1x128x128xbf16> to vector<128x128xbf16>
    %cst_111 = arith.constant dense<0.000000e+00> : vector<80x128xf32>
    %102 = tpu.matmul %99, %101, %cst_111 {dimension_numbers = #tpu.dot_dimension_numbers<[1], [0], [0], [1], [0, 0, 1, 1], [], []>} : vector<80x128xbf16>, vector<128x128xbf16>, vector<80x128xf32> -> vector<80x128xf32>
    %103 = arith.addf %98, %102 : vector<80x128xf32>
    %c13 = arith.constant 13 : index
    %c0_112 = arith.constant 0 : index
    %104 = vector.load %arg9[%c13, %c0_112] : memref<96x128xbf16, #tpu.memory_space<vmem>>, vector<80x128xbf16>
    %c7_113 = arith.constant 7 : index
    %c0_114 = arith.constant 0 : index
    %c0_115 = arith.constant 0 : index
    %105 = vector.load %arg4[%c7_113, %c0_114, %c0_115] : memref<9x128x128xbf16, #tpu.memory_space<vmem>>, vector<1x128x128xbf16>
    %106 = vector.shape_cast %105 : vector<1x128x128xbf16> to vector<128x128xbf16>
    %cst_116 = arith.constant dense<0.000000e+00> : vector<80x128xf32>
    %107 = tpu.matmul %104, %106, %cst_116 {dimension_numbers = #tpu.dot_dimension_numbers<[1], [0], [0], [1], [0, 0, 1, 1], [], []>} : vector<80x128xbf16>, vector<128x128xbf16>, vector<80x128xf32> -> vector<80x128xf32>
    %108 = arith.addf %103, %107 : vector<80x128xf32>
    %c14 = arith.constant 14 : index
    %c0_117 = arith.constant 0 : index
    %109 = vector.load %arg9[%c14, %c0_117] : memref<96x128xbf16, #tpu.memory_space<vmem>>, vector<80x128xbf16>
    %c8_118 = arith.constant 8 : index
    %c0_119 = arith.constant 0 : index
    %c0_120 = arith.constant 0 : index
    %110 = vector.load %arg4[%c8_118, %c0_119, %c0_120] : memref<9x128x128xbf16, #tpu.memory_space<vmem>>, vector<1x128x128xbf16>
    %111 = vector.shape_cast %110 : vector<1x128x128xbf16> to vector<128x128xbf16>
    %cst_121 = arith.constant dense<0.000000e+00> : vector<80x128xf32>
    %112 = tpu.matmul %109, %111, %cst_121 {dimension_numbers = #tpu.dot_dimension_numbers<[1], [0], [0], [1], [0, 0, 1, 1], [], []>} : vector<80x128xbf16>, vector<128x128xbf16>, vector<80x128xf32> -> vector<80x128xf32>
    %113 = arith.addf %108, %112 : vector<80x128xf32>
    %114 = vector.broadcast %8 : vector<1x128xf32> to vector<80x128xf32>
    %115 = arith.addf %113, %114 : vector<80x128xf32>
    %cst_122 = arith.constant 0.000000e+00 : f32
    %116 = vector.broadcast %cst_122 : f32 to vector<80x128xf32>
    %117 = arith.maximumf %115, %116 : vector<80x128xf32>
    %118 = arith.truncf %117 : vector<80x128xf32> to vector<80x128xbf16>
    %c0_123 = arith.constant 0 : index
    %c0_124 = arith.constant 0 : index
    %119 = vector.load %arg10[%c0_123, %c0_124] : memref<96x128xbf16, #tpu.memory_space<vmem>>, vector<80x128xbf16>
    tpu.vector_store %arg10[%c0_123, %c0_124], %118 {strides = array<i32>} : memref<96x128xbf16, #tpu.memory_space<vmem>>, vector<80x128xbf16>,
    %cst_125 = arith.constant 0.000000e+00 : f32
    %120 = vector.broadcast %cst_125 : f32 to vector<80x128xf32>
    %c0_126 = arith.constant 0 : index
    %c0_127 = arith.constant 0 : index
    %121 = vector.load %arg10[%c0_126, %c0_127] : memref<96x128xbf16, #tpu.memory_space<vmem>>, vector<80x128xbf16>
    %c0_128 = arith.constant 0 : index
    %c0_129 = arith.constant 0 : index
    %c0_130 = arith.constant 0 : index
    %122 = vector.load %arg5[%c0_128, %c0_129, %c0_130] : memref<9x128x128xbf16, #tpu.memory_space<vmem>>, vector<1x128x128xbf16>
    %123 = vector.shape_cast %122 : vector<1x128x128xbf16> to vector<128x128xbf16>
    %cst_131 = arith.constant dense<0.000000e+00> : vector<80x128xf32>
    %124 = tpu.matmul %121, %123, %cst_131 {dimension_numbers = #tpu.dot_dimension_numbers<[1], [0], [0], [1], [0, 0, 1, 1], [], []>} : vector<80x128xbf16>, vector<128x128xbf16>, vector<80x128xf32> -> vector<80x128xf32>
    %125 = arith.addf %120, %124 : vector<80x128xf32>
    %c1_132 = arith.constant 1 : index
    %c0_133 = arith.constant 0 : index
    %126 = vector.load %arg10[%c1_132, %c0_133] : memref<96x128xbf16, #tpu.memory_space<vmem>>, vector<80x128xbf16>
    %c1_134 = arith.constant 1 : index
    %c0_135 = arith.constant 0 : index
    %c0_136 = arith.constant 0 : index
    %127 = vector.load %arg5[%c1_134, %c0_135, %c0_136] : memref<9x128x128xbf16, #tpu.memory_space<vmem>>, vector<1x128x128xbf16>
    %128 = vector.shape_cast %127 : vector<1x128x128xbf16> to vector<128x128xbf16>
    %cst_137 = arith.constant dense<0.000000e+00> : vector<80x128xf32>
    %129 = tpu.matmul %126, %128, %cst_137 {dimension_numbers = #tpu.dot_dimension_numbers<[1], [0], [0], [1], [0, 0, 1, 1], [], []>} : vector<80x128xbf16>, vector<128x128xbf16>, vector<80x128xf32> -> vector<80x128xf32>
    %130 = arith.addf %125, %129 : vector<80x128xf32>
    %c2_138 = arith.constant 2 : index
    %c0_139 = arith.constant 0 : index
    %131 = vector.load %arg10[%c2_138, %c0_139] : memref<96x128xbf16, #tpu.memory_space<vmem>>, vector<80x128xbf16>
    %c2_140 = arith.constant 2 : index
    %c0_141 = arith.constant 0 : index
    %c0_142 = arith.constant 0 : index
    %132 = vector.load %arg5[%c2_140, %c0_141, %c0_142] : memref<9x128x128xbf16, #tpu.memory_space<vmem>>, vector<1x128x128xbf16>
    %133 = vector.shape_cast %132 : vector<1x128x128xbf16> to vector<128x128xbf16>
    %cst_143 = arith.constant dense<0.000000e+00> : vector<80x128xf32>
    %134 = tpu.matmul %131, %133, %cst_143 {dimension_numbers = #tpu.dot_dimension_numbers<[1], [0], [0], [1], [0, 0, 1, 1], [], []>} : vector<80x128xbf16>, vector<128x128xbf16>, vector<80x128xf32> -> vector<80x128xf32>
    %135 = arith.addf %130, %134 : vector<80x128xf32>
    %c6_144 = arith.constant 6 : index
    %c0_145 = arith.constant 0 : index
    %136 = vector.load %arg10[%c6_144, %c0_145] : memref<96x128xbf16, #tpu.memory_space<vmem>>, vector<80x128xbf16>
    %c3_146 = arith.constant 3 : index
    %c0_147 = arith.constant 0 : index
    %c0_148 = arith.constant 0 : index
    %137 = vector.load %arg5[%c3_146, %c0_147, %c0_148] : memref<9x128x128xbf16, #tpu.memory_space<vmem>>, vector<1x128x128xbf16>
    %138 = vector.shape_cast %137 : vector<1x128x128xbf16> to vector<128x128xbf16>
    %cst_149 = arith.constant dense<0.000000e+00> : vector<80x128xf32>
    %139 = tpu.matmul %136, %138, %cst_149 {dimension_numbers = #tpu.dot_dimension_numbers<[1], [0], [0], [1], [0, 0, 1, 1], [], []>} : vector<80x128xbf16>, vector<128x128xbf16>, vector<80x128xf32> -> vector<80x128xf32>
    %140 = arith.addf %135, %139 : vector<80x128xf32>
    %c7_150 = arith.constant 7 : index
    %c0_151 = arith.constant 0 : index
    %141 = vector.load %arg10[%c7_150, %c0_151] : memref<96x128xbf16, #tpu.memory_space<vmem>>, vector<80x128xbf16>
    %c4_152 = arith.constant 4 : index
    %c0_153 = arith.constant 0 : index
    %c0_154 = arith.constant 0 : index
    %142 = vector.load %arg5[%c4_152, %c0_153, %c0_154] : memref<9x128x128xbf16, #tpu.memory_space<vmem>>, vector<1x128x128xbf16>
    %143 = vector.shape_cast %142 : vector<1x128x128xbf16> to vector<128x128xbf16>
    %cst_155 = arith.constant dense<0.000000e+00> : vector<80x128xf32>
    %144 = tpu.matmul %141, %143, %cst_155 {dimension_numbers = #tpu.dot_dimension_numbers<[1], [0], [0], [1], [0, 0, 1, 1], [], []>} : vector<80x128xbf16>, vector<128x128xbf16>, vector<80x128xf32> -> vector<80x128xf32>
    %145 = arith.addf %140, %144 : vector<80x128xf32>
    %c8_156 = arith.constant 8 : index
    %c0_157 = arith.constant 0 : index
    %146 = vector.load %arg10[%c8_156, %c0_157] : memref<96x128xbf16, #tpu.memory_space<vmem>>, vector<80x128xbf16>
    %c5_158 = arith.constant 5 : index
    %c0_159 = arith.constant 0 : index
    %c0_160 = arith.constant 0 : index
    %147 = vector.load %arg5[%c5_158, %c0_159, %c0_160] : memref<9x128x128xbf16, #tpu.memory_space<vmem>>, vector<1x128x128xbf16>
    %148 = vector.shape_cast %147 : vector<1x128x128xbf16> to vector<128x128xbf16>
    %cst_161 = arith.constant dense<0.000000e+00> : vector<80x128xf32>
    %149 = tpu.matmul %146, %148, %cst_161 {dimension_numbers = #tpu.dot_dimension_numbers<[1], [0], [0], [1], [0, 0, 1, 1], [], []>} : vector<80x128xbf16>, vector<128x128xbf16>, vector<80x128xf32> -> vector<80x128xf32>
    %150 = arith.addf %145, %149 : vector<80x128xf32>
    %c12_162 = arith.constant 12 : index
    %c0_163 = arith.constant 0 : index
    %151 = vector.load %arg10[%c12_162, %c0_163] : memref<96x128xbf16, #tpu.memory_space<vmem>>, vector<80x128xbf16>
    %c6_164 = arith.constant 6 : index
    %c0_165 = arith.constant 0 : index
    %c0_166 = arith.constant 0 : index
    %152 = vector.load %arg5[%c6_164, %c0_165, %c0_166] : memref<9x128x128xbf16, #tpu.memory_space<vmem>>, vector<1x128x128xbf16>
    %153 = vector.shape_cast %152 : vector<1x128x128xbf16> to vector<128x128xbf16>
    %cst_167 = arith.constant dense<0.000000e+00> : vector<80x128xf32>
    %154 = tpu.matmul %151, %153, %cst_167 {dimension_numbers = #tpu.dot_dimension_numbers<[1], [0], [0], [1], [0, 0, 1, 1], [], []>} : vector<80x128xbf16>, vector<128x128xbf16>, vector<80x128xf32> -> vector<80x128xf32>
    %155 = arith.addf %150, %154 : vector<80x128xf32>
    %c13_168 = arith.constant 13 : index
    %c0_169 = arith.constant 0 : index
    %156 = vector.load %arg10[%c13_168, %c0_169] : memref<96x128xbf16, #tpu.memory_space<vmem>>, vector<80x128xbf16>
    %c7_170 = arith.constant 7 : index
    %c0_171 = arith.constant 0 : index
    %c0_172 = arith.constant 0 : index
    %157 = vector.load %arg5[%c7_170, %c0_171, %c0_172] : memref<9x128x128xbf16, #tpu.memory_space<vmem>>, vector<1x128x128xbf16>
    %158 = vector.shape_cast %157 : vector<1x128x128xbf16> to vector<128x128xbf16>
    %cst_173 = arith.constant dense<0.000000e+00> : vector<80x128xf32>
    %159 = tpu.matmul %156, %158, %cst_173 {dimension_numbers = #tpu.dot_dimension_numbers<[1], [0], [0], [1], [0, 0, 1, 1], [], []>} : vector<80x128xbf16>, vector<128x128xbf16>, vector<80x128xf32> -> vector<80x128xf32>
    %160 = arith.addf %155, %159 : vector<80x128xf32>
    %c14_174 = arith.constant 14 : index
    %c0_175 = arith.constant 0 : index
    %161 = vector.load %arg10[%c14_174, %c0_175] : memref<96x128xbf16, #tpu.memory_space<vmem>>, vector<80x128xbf16>
    %c8_176 = arith.constant 8 : index
    %c0_177 = arith.constant 0 : index
    %c0_178 = arith.constant 0 : index
    %162 = vector.load %arg5[%c8_176, %c0_177, %c0_178] : memref<9x128x128xbf16, #tpu.memory_space<vmem>>, vector<1x128x128xbf16>
    %163 = vector.shape_cast %162 : vector<1x128x128xbf16> to vector<128x128xbf16>
    %cst_179 = arith.constant dense<0.000000e+00> : vector<80x128xf32>
    %164 = tpu.matmul %161, %163, %cst_179 {dimension_numbers = #tpu.dot_dimension_numbers<[1], [0], [0], [1], [0, 0, 1, 1], [], []>} : vector<80x128xbf16>, vector<128x128xbf16>, vector<80x128xf32> -> vector<80x128xf32>
    %165 = arith.addf %160, %164 : vector<80x128xf32>
    %166 = vector.broadcast %9 : vector<1x128xf32> to vector<80x128xf32>
    %167 = arith.addf %165, %166 : vector<80x128xf32>
    %cst_180 = arith.constant 0.000000e+00 : f32
    %168 = vector.broadcast %cst_180 : f32 to vector<80x128xf32>
    %169 = arith.maximumf %167, %168 : vector<80x128xf32>
    %c0_181 = arith.constant 0 : index
    %c0_182 = arith.constant 0 : index
    %c0_183 = arith.constant 0 : index
    %170 = vector.load %arg7[%c0_181, %c0_182, %c0_183] : memref<1x80x128xf32, #tpu.memory_space<vmem>>, vector<1x80x128xf32>
    %171 = vector.shape_cast %170 : vector<1x80x128xf32> to vector<80x128xf32>
    %172 = vector.shape_cast %169 : vector<80x128xf32> to vector<1x80x128xf32>
    tpu.vector_store %arg7[%c0_181, %c0_182, %c0_183], %172 {strides = array<i32>} : memref<1x80x128xf32, #tpu.memory_space<vmem>>, vector<1x80x128xf32>,
    return
  }
  func.func @transform_0(%arg0: i32) -> (i32, i32, i32, i32) {
    %c0_i32 = arith.constant 0 : i32
    %c0_i32_0 = arith.constant 0 : i32
    %c0_i32_1 = arith.constant 0 : i32
    %c0_i32_2 = arith.constant 0 : i32
    return %arg0, %c0_i32, %c0_i32_0, %c0_i32_1 : i32, i32, i32, i32
  }
  func.func @transform_1(%arg0: i32) -> (i32, i32, i32) {
    %c0_i32 = arith.constant 0 : i32
    %c0_i32_0 = arith.constant 0 : i32
    %c0_i32_1 = arith.constant 0 : i32
    %c0_i32_2 = arith.constant 0 : i32
    return %c0_i32, %c0_i32_0, %c0_i32_1 : i32, i32, i32
  }
  func.func @transform_2(%arg0: i32) -> (i32, i32, i32) {
    %c0_i32 = arith.constant 0 : i32
    %c0_i32_0 = arith.constant 0 : i32
    %c0_i32_1 = arith.constant 0 : i32
    %c0_i32_2 = arith.constant 0 : i32
    return %c0_i32, %c0_i32_0, %c0_i32_1 : i32, i32, i32
  }
  func.func @transform_3(%arg0: i32) -> (i32, i32, i32) {
    %c0_i32 = arith.constant 0 : i32
    %c0_i32_0 = arith.constant 0 : i32
    %c0_i32_1 = arith.constant 0 : i32
    %c0_i32_2 = arith.constant 0 : i32
    return %c0_i32, %c0_i32_0, %c0_i32_1 : i32, i32, i32
  }
  func.func @transform_4(%arg0: i32) -> (i32, i32, i32) {
    %c0_i32 = arith.constant 0 : i32
    %c0_i32_0 = arith.constant 0 : i32
    %c0_i32_1 = arith.constant 0 : i32
    %c0_i32_2 = arith.constant 0 : i32
    return %c0_i32, %c0_i32_0, %c0_i32_1 : i32, i32, i32
  }
  func.func @transform_5(%arg0: i32) -> (i32, i32) {
    %c0_i32 = arith.constant 0 : i32
    %c0_i32_0 = arith.constant 0 : i32
    %c0_i32_1 = arith.constant 0 : i32
    return %c0_i32, %c0_i32_0 : i32, i32
  }
  func.func @transform_6(%arg0: i32) -> (i32, i32, i32) {
    %c0_i32 = arith.constant 0 : i32
    %c0_i32_0 = arith.constant 0 : i32
    %c0_i32_1 = arith.constant 0 : i32
    return %arg0, %c0_i32, %c0_i32_0 : i32, i32, i32
  }
}

</mosaic_0001>

<llo_original>
// kernel: encoder_forward.1
$region0: #{encoder_forward.1}
  #allocation0 [shape = 'u32[]', space=smem, size = 0x4, offset = 0x4, fixed_abs, tag = 'smem constant byte address 0x4 - core index']
  #allocation1 [shape = 'u32[72,128]{1,0:T(1,128)}', space=vmem, size = 0x9000, scoped, tag = 'internal scratch']
  #allocation2 [shape = 'bf16[88,128]{1,0:T(8,128)(2,1)}', space=vmem, size = 0x5800, scoped, tag = 'scratch operand']
  #allocation3 [shape = 'bf16[96,128]{1,0:T(8,128)(2,1)}', space=vmem, size = 0x6000, scoped, tag = 'scratch operand']
  #allocation4 [shape = 'bf16[96,128]{1,0:T(8,128)(2,1)}', space=vmem, size = 0x6000, scoped, tag = 'scratch operand']
  %s0 = inlined_call_operand.vmem [shape: bf16[1,4,80,256], index: 0, kind: input, shape index: {}]
  %s1 = inlined_call_operand.vmem [shape: bf16[4,256,128], index: 1, kind: input, shape index: {}]
  %s2 = inlined_call_operand.vmem [shape: bf16[4,128,128], index: 2, kind: input, shape index: {}]
  %s3 = inlined_call_operand.vmem [shape: bf16[9,128,128], index: 3, kind: input, shape index: {}]
  %s4 = inlined_call_operand.vmem [shape: bf16[9,128,128], index: 4, kind: input, shape index: {}]
  %s5 = inlined_call_operand.vmem [shape: f32[4,128], index: 5, kind: input, shape index: {}]
  %s6 = inlined_call_operand.vmem [shape: f32[1,80,128], index: 6, kind: output, shape index: {}]
  %s7 = sld [smem:[#allocation0]]
  $region34: #{encoder_forward.1} parent=0
    _
  %s9 = ssub.s32 1, %s7
  %s10 = scalar_select 0, %s9, %s7
  // Predicated region
  $region2: #{encoder_forward.1} parent=0 // pred_check
    _
  $region3: #{encoder_forward.1} parent=0 // pred_check_branch
    %12 = sbr.rel (0) target = $region5
  $region4: #{encoder_forward.1} parent=0 // pred_region
    _
  $region5: #{encoder_forward.1} parent=0 // pred_fallthru
    _
  // Predicated region
  $region6: #{encoder_forward.1} parent=0 // pred_check
    _
  $region7: #{encoder_forward.1} parent=0 // pred_check_branch
    %14 = sbr.rel (0) target = $region9
  $region8: #{encoder_forward.1} parent=0 // pred_region
    _
  $region9: #{encoder_forward.1} parent=0 // pred_fallthru
    _
  // Predicated region
  $region10: #{encoder_forward.1} parent=0 // pred_check
    _
  $region11: #{encoder_forward.1} parent=0 // pred_check_branch
    %16 = sbr.rel (0) target = $region13
  $region12: #{encoder_forward.1} parent=0 // pred_region
    _
  $region13: #{encoder_forward.1} parent=0 // pred_fallthru
    _
  // Predicated region
  $region14: #{encoder_forward.1} parent=0 // pred_check
    _
  $region15: #{encoder_forward.1} parent=0 // pred_check_branch
    %18 = sbr.rel (0) target = $region17
  $region16: #{encoder_forward.1} parent=0 // pred_region
    _
  $region17: #{encoder_forward.1} parent=0 // pred_fallthru
    _
  // Predicated region
  $region18: #{encoder_forward.1} parent=0 // pred_check
    _
  $region19: #{encoder_forward.1} parent=0 // pred_check_branch
    %20 = sbr.rel (0) target = $region21
  $region20: #{encoder_forward.1} parent=0 // pred_region
    _
  $region21: #{encoder_forward.1} parent=0 // pred_fallthru
    _
  // Predicated region
  $region22: #{encoder_forward.1} parent=0 // pred_check
    _
  $region23: #{encoder_forward.1} parent=0 // pred_check_branch
    %22 = sbr.rel (0) target = $region25
  $region24: #{encoder_forward.1} parent=0 // pred_region
    _
  $region25: #{encoder_forward.1} parent=0 // pred_fallthru
    _
  %24 = vst [vmem:[#allocation2 + $0x28] sm:$0xf] 0
  %25 = vst [vmem:[#allocation3 + $0x28] sm:$0xf] 0
  %26 = vst [vmem:[#allocation3 + $0x2c] sm:$0xf] 0
  %27 = vst [vmem:[#allocation4 + $0x28] sm:$0xf] 0
  %28 = vst [vmem:[#allocation4 + $0x2c] sm:$0xf] 0
  %v29 = vld [vmem:[%s5] sm:$0x1]
  %v30 = vld [vmem:[%s5 + $0x1] sm:$0x1]
  %v31 = vld [vmem:[%s5 + $0x2] sm:$0x1]
  %v32 = vld [vmem:[%s5 + $0x3] sm:$0x1]
  %v33 = vld [vmem:[%s0] sm:$0xff]
  %v34 = vld [vmem:[%s0 + $0x8] sm:$0xff]
  %v35 = vld [vmem:[%s0 + $0x10] sm:$0xff]
  %v36 = vld [vmem:[%s0 + $0x18] sm:$0xff]
  %v37 = vld [vmem:[%s0 + $0x20] sm:$0xff]
  %v38 = vld [vmem:[%s0 + $0x28] sm:$0xff]
  %v39 = vld [vmem:[%s0 + $0x30] sm:$0xff]
  %v40 = vld [vmem:[%s0 + $0x38] sm:$0xff]
  %v41 = vld [vmem:[%s0 + $0x40] sm:$0xff]
  %v42 = vld [vmem:[%s0 + $0x48] sm:$0xff]
  %v43 = vld [vmem:[%s1] sm:$0xf]
  %v44 = vld [vmem:[%s1 + $0x4] sm:$0xf]
  %v45 = vld [vmem:[%s1 + $0x8] sm:$0xf]
  %v46 = vld [vmem:[%s1 + $0xc] sm:$0xf]
  %v47 = vld [vmem:[%s1 + $0x10] sm:$0xf]
  %v48 = vld [vmem:[%s1 + $0x14] sm:$0xf]
  %v49 = vld [vmem:[%s1 + $0x18] sm:$0xf]
  %v50 = vld [vmem:[%s1 + $0x1c] sm:$0xf]
  %v51 = vld [vmem:[%s1 + $0x20] sm:$0xf]
  %v52 = vld [vmem:[%s1 + $0x24] sm:$0xf]
  %v53 = vld [vmem:[%s1 + $0x28] sm:$0xf]
  %v54 = vld [vmem:[%s1 + $0x2c] sm:$0xf]
  %v55 = vld [vmem:[%s1 + $0x30] sm:$0xf]
  %v56 = vld [vmem:[%s1 + $0x34] sm:$0xf]
  %v57 = vld [vmem:[%s1 + $0x38] sm:$0xf]
  %v58 = vld [vmem:[%s1 + $0x3c] sm:$0xf]
  %v59 = vld [vmem:[%s1 + $0x40] sm:$0xf]
  %v60 = vld [vmem:[%s1 + $0x44] sm:$0xf]
  %v61 = vld [vmem:[%s1 + $0x48] sm:$0xf]
  %v62 = vld [vmem:[%s1 + $0x4c] sm:$0xf]
  %v63 = vld [vmem:[%s1 + $0x50] sm:$0xf]
  %v64 = vld [vmem:[%s1 + $0x54] sm:$0xf]
  %v65 = vld [vmem:[%s1 + $0x58] sm:$0xf]
  %v66 = vld [vmem:[%s1 + $0x5c] sm:$0xf]
  %v67 = vld [vmem:[%s1 + $0x60] sm:$0xf]
  %v68 = vld [vmem:[%s1 + $0x64] sm:$0xf]
  %v69 = vld [vmem:[%s1 + $0x68] sm:$0xf]
  %v70 = vld [vmem:[%s1 + $0x6c] sm:$0xf]
  %v71 = vld [vmem:[%s1 + $0x70] sm:$0xf]
  %v72 = vld [vmem:[%s1 + $0x74] sm:$0xf]
  %v73 = vld [vmem:[%s1 + $0x78] sm:$0xf]
  %v74 = vld [vmem:[%s1 + $0x7c] sm:$0xf]
  %s75 = scalar_lea.vmem %s0, 80
  %v76 = vld [vmem:[%s75] sm:$0xff]
  %v77 = vld [vmem:[%s75 + $0x8] sm:$0xff]
  %v78 = vld [vmem:[%s75 + $0x10] sm:$0xff]
  %v79 = vld [vmem:[%s75 + $0x18] sm:$0xff]
  %v80 = vld [vmem:[%s75 + $0x20] sm:$0xff]
  %v81 = vld [vmem:[%s75 + $0x28] sm:$0xff]
  %v82 = vld [vmem:[%s75 + $0x30] sm:$0xff]
  %v83 = vld [vmem:[%s75 + $0x38] sm:$0xff]
  %v84 = vld [vmem:[%s75 + $0x40] sm:$0xff]
  %v85 = vld [vmem:[%s75 + $0x48] sm:$0xff]
  %s86 = scalar_lea.vmem %s1, 128
  %v87 = vld [vmem:[%s86] sm:$0xf]
  %v88 = vld [vmem:[%s86 + $0x4] sm:$0xf]
  %v89 = vld [vmem:[%s86 + $0x8] sm:$0xf]
  %v90 = vld [vmem:[%s86 + $0xc] sm:$0xf]
  %v91 = vld [vmem:[%s86 + $0x10] sm:$0xf]
  %v92 = vld [vmem:[%s86 + $0x14] sm:$0xf]
  %v93 = vld [vmem:[%s86 + $0x18] sm:$0xf]
  %v94 = vld [vmem:[%s86 + $0x1c] sm:$0xf]
  %v95 = vld [vmem:[%s86 + $0x20] sm:$0xf]
  %v96 = vld [vmem:[%s86 + $0x24] sm:$0xf]
  %v97 = vld [vmem:[%s86 + $0x28] sm:$0xf]
  %v98 = vld [vmem:[%s86 + $0x2c] sm:$0xf]
  %v99 = vld [vmem:[%s86 + $0x30] sm:$0xf]
  %v100 = vld [vmem:[%s86 + $0x34] sm:$0xf]
  %v101 = vld [vmem:[%s86 + $0x38] sm:$0xf]
  %v102 = vld [vmem:[%s86 + $0x3c] sm:$0xf]
  %v103 = vld [vmem:[%s86 + $0x40] sm:$0xf]
  %v104 = vld [vmem:[%s86 + $0x44] sm:$0xf]
  %v105 = vld [vmem:[%s86 + $0x48] sm:$0xf]
  %v106 = vld [vmem:[%s86 + $0x4c] sm:$0xf]
  %v107 = vld [vmem:[%s86 + $0x50] sm:$0xf]
  %v108 = vld [vmem:[%s86 + $0x54] sm:$0xf]
  %v109 = vld [vmem:[%s86 + $0x58] sm:$0xf]
  %v110 = vld [vmem:[%s86 + $0x5c] sm:$0xf]
  %v111 = vld [vmem:[%s86 + $0x60] sm:$0xf]
  %v112 = vld [vmem:[%s86 + $0x64] sm:$0xf]
  %v113 = vld [vmem:[%s86 + $0x68] sm:$0xf]
  %v114 = vld [vmem:[%s86 + $0x6c] sm:$0xf]
  %v115 = vld [vmem:[%s86 + $0x70] sm:$0xf]
  %v116 = vld [vmem:[%s86 + $0x74] sm:$0xf]
  %v117 = vld [vmem:[%s86 + $0x78] sm:$0xf]
  %v118 = vld [vmem:[%s86 + $0x7c] sm:$0xf]
  %v129 = vunpack.c.l.b16 %v76
  %v130 = vunpack.c.h.b16 %v76
  %v131 = vunpack.c.l.b16 %v77
  %v132 = vunpack.c.h.b16 %v77
  %v133 = vunpack.c.l.b16 %v78
  %v134 = vunpack.c.h.b16 %v78
  %v135 = vunpack.c.l.b16 %v79
  %v136 = vunpack.c.h.b16 %v79
  %v137 = vunpack.c.l.b16 %v80
  %v138 = vunpack.c.h.b16 %v80
  %v139 = vunpack.c.l.b16 %v81
  %v140 = vunpack.c.h.b16 %v81
  %v141 = vunpack.c.l.b16 %v82
  %v142 = vunpack.c.h.b16 %v82
  %v143 = vunpack.c.l.b16 %v83
  %v144 = vunpack.c.h.b16 %v83
  %v145 = vunpack.c.l.b16 %v84
  %v146 = vunpack.c.h.b16 %v84
  %v147 = vunpack.c.l.b16 %v85
  %v148 = vunpack.c.h.b16 %v85
  %v149 = vpack.c.b16 %v131, %v129
  %v150 = vpack.c.b16 %v132, %v130
  %v151 = vpack.c.b16 %v135, %v133
  %v152 = vpack.c.b16 %v136, %v134
  %v153 = vpack.c.b16 %v139, %v137
  %v154 = vpack.c.b16 %v140, %v138
  %v155 = vpack.c.b16 %v143, %v141
  %v156 = vpack.c.b16 %v144, %v142
  %v157 = vpack.c.b16 %v147, %v145
  %v158 = vpack.c.b16 %v148, %v146
  %v201 = vunpack.c.l.b16 %v87
  %v202 = vunpack.c.l.b16 %v88
  %v203 = vunpack.c.l.b16 %v89
  %v204 = vunpack.c.l.b16 %v90
  %v205 = vunpack.c.l.b16 %v91
  %v206 = vunpack.c.l.b16 %v92
  %v207 = vunpack.c.l.b16 %v93
  %v208 = vunpack.c.l.b16 %v94
  %v209 = vunpack.c.l.b16 %v95
  %v210 = vunpack.c.l.b16 %v96
  %v211 = vunpack.c.l.b16 %v97
  %v212 = vunpack.c.l.b16 %v98
  %v213 = vunpack.c.l.b16 %v99
  %v214 = vunpack.c.l.b16 %v100
  %v215 = vunpack.c.l.b16 %v101
  %v216 = vunpack.c.l.b16 %v102
  %v217 = vunpack.c.l.b16 %v103
  %v218 = vunpack.c.l.b16 %v104
  %v219 = vunpack.c.l.b16 %v105
  %v220 = vunpack.c.l.b16 %v106
  %v221 = vunpack.c.l.b16 %v107
  %v222 = vunpack.c.l.b16 %v108
  %v223 = vunpack.c.l.b16 %v109
  %v224 = vunpack.c.l.b16 %v110
  %v225 = vunpack.c.l.b16 %v111
  %v226 = vunpack.c.l.b16 %v112
  %v227 = vunpack.c.l.b16 %v113
  %v228 = vunpack.c.l.b16 %v114
  %v229 = vunpack.c.l.b16 %v115
  %v230 = vunpack.c.l.b16 %v116
  %v231 = vunpack.c.l.b16 %v117
  %v232 = vunpack.c.l.b16 %v118
  %v233 = vpack.c.b16 %v202, %v201
  %v234 = vpack.c.b16 %v204, %v203
  %v235 = vpack.c.b16 %v206, %v205
  %v236 = vpack.c.b16 %v208, %v207
  %v237 = vpack.c.b16 %v210, %v209
  %v238 = vpack.c.b16 %v212, %v211
  %v239 = vpack.c.b16 %v214, %v213
  %v240 = vpack.c.b16 %v216, %v215
  %v241 = vpack.c.b16 %v218, %v217
  %v242 = vpack.c.b16 %v220, %v219
  %v243 = vpack.c.b16 %v222, %v221
  %v244 = vpack.c.b16 %v224, %v223
  %v245 = vpack.c.b16 %v226, %v225
  %v246 = vpack.c.b16 %v228, %v227
  %v247 = vpack.c.b16 %v230, %v229
  %v248 = vpack.c.b16 %v232, %v231
  %265 = vmatpush.bf16.msra.mxu0 %v240
  %266 = vmatpush.bf16.msra.mxu0 %v239
  %267 = vmatpush.bf16.msra.mxu0 %v238
  %268 = vmatpush.bf16.msra.mxu0 %v237
  %269 = vmatpush.bf16.msra.mxu0 %v236
  %270 = vmatpush.bf16.msra.mxu0 %v235
  %271 = vmatpush.bf16.msra.mxu0 %v234
  %272 = vmatpush.bf16.msra.mxu0 %v233
  %273 = vmatmul.bf16.gmra.mxu0 %v149
  %v274 = vpop.f32.mrf.mxu0
  %v275 = vadd.f32 0.0, %v274
  %v276 = vpop.f32.mrf.mxu0
  %v277 = vadd.f32 0.0, %v276
  %278 = vmatmul.bf16.gmra.mxu0 %v151
  %v279 = vpop.f32.mrf.mxu0
  %v280 = vadd.f32 0.0, %v279
  %v281 = vpop.f32.mrf.mxu0
  %v282 = vadd.f32 0.0, %v281
  %283 = vmatmul.bf16.gmra.mxu0 %v153
  %v284 = vpop.f32.mrf.mxu0
  %v285 = vadd.f32 0.0, %v284
  %v286 = vpop.f32.mrf.mxu0
  %v287 = vadd.f32 0.0, %v286
  %288 = vmatmul.bf16.gmra.mxu0 %v155
  %v289 = vpop.f32.mrf.mxu0
  %v290 = vadd.f32 0.0, %v289
  %v291 = vpop.f32.mrf.mxu0
  %v292 = vadd.f32 0.0, %v291
  %293 = vmatmul.bf16.gmra.mxu0 %v157
  %v294 = vpop.f32.mrf.mxu0
  %v295 = vadd.f32 0.0, %v294
  %v296 = vpop.f32.mrf.mxu0
  %v297 = vadd.f32 0.0, %v296
  %298 = vdwg.mxu0
  %299 = vmatpush.bf16.msra.mxu0 %v248
  %300 = vmatpush.bf16.msra.mxu0 %v247
  %301 = vmatpush.bf16.msra.mxu0 %v246
  %302 = vmatpush.bf16.msra.mxu0 %v245
  %303 = vmatpush.bf16.msra.mxu0 %v244
  %304 = vmatpush.bf16.msra.mxu0 %v243
  %305 = vmatpush.bf16.msra.mxu0 %v242
  %306 = vmatpush.bf16.msra.mxu0 %v241
  %307 = vmatmul.bf16.gmra.mxu0 %v150
  %v308 = vpop.f32.mrf.mxu0
  %v309 = vadd.f32 %v275, %v308
  %v310 = vpop.f32.mrf.mxu0
  %v311 = vadd.f32 %v277, %v310
  %312 = vmatmul.bf16.gmra.mxu0 %v152
  %v313 = vpop.f32.mrf.mxu0
  %v314 = vadd.f32 %v280, %v313
  %v315 = vpop.f32.mrf.mxu0
  %v316 = vadd.f32 %v282, %v315
  %317 = vmatmul.bf16.gmra.mxu0 %v154
  %v318 = vpop.f32.mrf.mxu0
  %v319 = vadd.f32 %v285, %v318
  %v320 = vpop.f32.mrf.mxu0
  %v321 = vadd.f32 %v287, %v320
  %322 = vmatmul.bf16.gmra.mxu0 %v156
  %v323 = vpop.f32.mrf.mxu0
  %v324 = vadd.f32 %v290, %v323
  %v325 = vpop.f32.mrf.mxu0
  %v326 = vadd.f32 %v292, %v325
  %327 = vmatmul.bf16.gmra.mxu0 %v158
  %v328 = vpop.f32.mrf.mxu0
  %v329 = vadd.f32 %v295, %v328
  %v330 = vpop.f32.mrf.mxu0
  %v331 = vadd.f32 %v297, %v330
  %332 = vdwg.mxu0
  %v343 = vunpack.c.l.b16 %v33
  %v344 = vunpack.c.h.b16 %v33
  %v345 = vunpack.c.l.b16 %v34
  %v346 = vunpack.c.h.b16 %v34
  %v347 = vunpack.c.l.b16 %v35
  %v348 = vunpack.c.h.b16 %v35
  %v349 = vunpack.c.l.b16 %v36
  %v350 = vunpack.c.h.b16 %v36
  %v351 = vunpack.c.l.b16 %v37
  %v352 = vunpack.c.h.b16 %v37
  %v353 = vunpack.c.l.b16 %v38
  %v354 = vunpack.c.h.b16 %v38
  %v355 = vunpack.c.l.b16 %v39
  %v356 = vunpack.c.h.b16 %v39
  %v357 = vunpack.c.l.b16 %v40
  %v358 = vunpack.c.h.b16 %v40
  %v359 = vunpack.c.l.b16 %v41
  %v360 = vunpack.c.h.b16 %v41
  %v361 = vunpack.c.l.b16 %v42
  %v362 = vunpack.c.h.b16 %v42
  %v363 = vpack.c.b16 %v345, %v343
  %v364 = vpack.c.b16 %v346, %v344
  %v365 = vpack.c.b16 %v349, %v347
  %v366 = vpack.c.b16 %v350, %v348
  %v367 = vpack.c.b16 %v353, %v351
  %v368 = vpack.c.b16 %v354, %v352
  %v369 = vpack.c.b16 %v357, %v355
  %v370 = vpack.c.b16 %v358, %v356
  %v371 = vpack.c.b16 %v361, %v359
  %v372 = vpack.c.b16 %v362, %v360
  %v415 = vunpack.c.l.b16 %v43
  %v416 = vunpack.c.l.b16 %v44
  %v417 = vunpack.c.l.b16 %v45
  %v418 = vunpack.c.l.b16 %v46
  %v419 = vunpack.c.l.b16 %v47
  %v420 = vunpack.c.l.b16 %v48
  %v421 = vunpack.c.l.b16 %v49
  %v422 = vunpack.c.l.b16 %v50
  %v423 = vunpack.c.l.b16 %v51
  %v424 = vunpack.c.l.b16 %v52
  %v425 = vunpack.c.l.b16 %v53
  %v426 = vunpack.c.l.b16 %v54
  %v427 = vunpack.c.l.b16 %v55
  %v428 = vunpack.c.l.b16 %v56
  %v429 = vunpack.c.l.b16 %v57
  %v430 = vunpack.c.l.b16 %v58
  %v431 = vunpack.c.l.b16 %v59
  %v432 = vunpack.c.l.b16 %v60
  %v433 = vunpack.c.l.b16 %v61
  %v434 = vunpack.c.l.b16 %v62
  %v435 = vunpack.c.l.b16 %v63
  %v436 = vunpack.c.l.b16 %v64
  %v437 = vunpack.c.l.b16 %v65
  %v438 = vunpack.c.l.b16 %v66
  %v439 = vunpack.c.l.b16 %v67
  %v440 = vunpack.c.l.b16 %v68
  %v441 = vunpack.c.l.b16 %v69
  %v442 = vunpack.c.l.b16 %v70
  %v443 = vunpack.c.l.b16 %v71
  %v444 = vunpack.c.l.b16 %v72
  %v445 = vunpack.c.l.b16 %v73
  %v446 = vunpack.c.l.b16 %v74
  %v447 = vpack.c.b16 %v416, %v415
  %v448 = vpack.c.b16 %v418, %v417
  %v449 = vpack.c.b16 %v420, %v419
  %v450 = vpack.c.b16 %v422, %v421
  %v451 = vpack.c.b16 %v424, %v423
  %v452 = vpack.c.b16 %v426, %v425
  %v453 = vpack.c.b16 %v428, %v427
  %v454 = vpack.c.b16 %v430, %v429
  %v455 = vpack.c.b16 %v432, %v431
  %v456 = vpack.c.b16 %v434, %v433
  %v457 = vpack.c.b16 %v436, %v435
  %v458 = vpack.c.b16 %v438, %v437
  %v459 = vpack.c.b16 %v440, %v439
  %v460 = vpack.c.b16 %v442, %v441
  %v461 = vpack.c.b16 %v444, %v443
  %v462 = vpack.c.b16 %v446, %v445
  %479 = vmatpush.bf16.msra.mxu0 %v454
  %480 = vmatpush.bf16.msra.mxu0 %v453
  %481 = vmatpush.bf16.msra.mxu0 %v452
  %482 = vmatpush.bf16.msra.mxu0 %v451
  %483 = vmatpush.bf16.msra.mxu0 %v450
  %484 = vmatpush.bf16.msra.mxu0 %v449
  %485 = vmatpush.bf16.msra.mxu0 %v448
  %486 = vmatpush.bf16.msra.mxu0 %v447
  %487 = vmatmul.bf16.gmra.mxu0 %v363
  %v488 = vpop.f32.mrf.mxu0
  %v489 = vadd.f32 %v309, %v488
  %v490 = vpop.f32.mrf.mxu0
  %v491 = vadd.f32 %v311, %v490
  %492 = vmatmul.bf16.gmra.mxu0 %v365
  %v493 = vpop.f32.mrf.mxu0
  %v494 = vadd.f32 %v314, %v493
  %v495 = vpop.f32.mrf.mxu0
  %v496 = vadd.f32 %v316, %v495
  %497 = vmatmul.bf16.gmra.mxu0 %v367
  %v498 = vpop.f32.mrf.mxu0
  %v499 = vadd.f32 %v319, %v498
  %v500 = vpop.f32.mrf.mxu0
  %v501 = vadd.f32 %v321, %v500
  %502 = vmatmul.bf16.gmra.mxu0 %v369
  %v503 = vpop.f32.mrf.mxu0
  %v504 = vadd.f32 %v324, %v503
  %v505 = vpop.f32.mrf.mxu0
  %v506 = vadd.f32 %v326, %v505
  %507 = vmatmul.bf16.gmra.mxu0 %v371
  %v508 = vpop.f32.mrf.mxu0
  %v509 = vadd.f32 %v329, %v508
  %v510 = vpop.f32.mrf.mxu0
  %v511 = vadd.f32 %v331, %v510
  %512 = vdwg.mxu0
  %513 = vmatpush.bf16.msra.mxu0 %v462
  %514 = vmatpush.bf16.msra.mxu0 %v461
  %515 = vmatpush.bf16.msra.mxu0 %v460
  %516 = vmatpush.bf16.msra.mxu0 %v459
  %517 = vmatpush.bf16.msra.mxu0 %v458
  %518 = vmatpush.bf16.msra.mxu0 %v457
  %519 = vmatpush.bf16.msra.mxu0 %v456
  %520 = vmatpush.bf16.msra.mxu0 %v455
  %521 = vmatmul.bf16.gmra.mxu0 %v364
  %v522 = vpop.f32.mrf.mxu0
  %v523 = vadd.f32 %v489, %v522
  %v524 = vpop.f32.mrf.mxu0
  %v525 = vadd.f32 %v491, %v524
  %526 = vmatmul.bf16.gmra.mxu0 %v366
  %v527 = vpop.f32.mrf.mxu0
  %v528 = vadd.f32 %v494, %v527
  %v529 = vpop.f32.mrf.mxu0
  %v530 = vadd.f32 %v496, %v529
  %531 = vmatmul.bf16.gmra.mxu0 %v368
  %v532 = vpop.f32.mrf.mxu0
  %v533 = vadd.f32 %v499, %v532
  %v534 = vpop.f32.mrf.mxu0
  %v535 = vadd.f32 %v501, %v534
  %536 = vmatmul.bf16.gmra.mxu0 %v370
  %v537 = vpop.f32.mrf.mxu0
  %v538 = vadd.f32 %v504, %v537
  %v539 = vpop.f32.mrf.mxu0
  %v540 = vadd.f32 %v506, %v539
  %541 = vmatmul.bf16.gmra.mxu0 %v372
  %v542 = vpop.f32.mrf.mxu0
  %v543 = vadd.f32 %v509, %v542
  %v544 = vpop.f32.mrf.mxu0
  %v545 = vadd.f32 %v511, %v544
  %546 = vdwg.mxu0
  %s547 = scalar_lea.vmem %s0, 160
  %v548 = vld [vmem:[%s547] sm:$0xff]
  %v549 = vld [vmem:[%s547 + $0x8] sm:$0xff]
  %v550 = vld [vmem:[%s547 + $0x10] sm:$0xff]
  %v551 = vld [vmem:[%s547 + $0x18] sm:$0xff]
  %v552 = vld [vmem:[%s547 + $0x20] sm:$0xff]
  %v553 = vld [vmem:[%s547 + $0x28] sm:$0xff]
  %v554 = vld [vmem:[%s547 + $0x30] sm:$0xff]
  %v555 = vld [vmem:[%s547 + $0x38] sm:$0xff]
  %v556 = vld [vmem:[%s547 + $0x40] sm:$0xff]
  %v557 = vld [vmem:[%s547 + $0x48] sm:$0xff]
  %s558 = scalar_lea.vmem %s1, 256
  %v559 = vld [vmem:[%s558] sm:$0xf]
  %v560 = vld [vmem:[%s558 + $0x4] sm:$0xf]
  %v561 = vld [vmem:[%s558 + $0x8] sm:$0xf]
  %v562 = vld [vmem:[%s558 + $0xc] sm:$0xf]
  %v563 = vld [vmem:[%s558 + $0x10] sm:$0xf]
  %v564 = vld [vmem:[%s558 + $0x14] sm:$0xf]
  %v565 = vld [vmem:[%s558 + $0x18] sm:$0xf]
  %v566 = vld [vmem:[%s558 + $0x1c] sm:$0xf]
  %v567 = vld [vmem:[%s558 + $0x20] sm:$0xf]
  %v568 = vld [vmem:[%s558 + $0x24] sm:$0xf]
  %v569 = vld [vmem:[%s558 + $0x28] sm:$0xf]
  %v570 = vld [vmem:[%s558 + $0x2c] sm:$0xf]
  %v571 = vld [vmem:[%s558 + $0x30] sm:$0xf]
  %v572 = vld [vmem:[%s558 + $0x34] sm:$0xf]
  %v573 = vld [vmem:[%s558 + $0x38] sm:$0xf]
  %v574 = vld [vmem:[%s558 + $0x3c] sm:$0xf]
  %v575 = vld [vmem:[%s558 + $0x40] sm:$0xf]
  %v576 = vld [vmem:[%s558 + $0x44] sm:$0xf]
  %v577 = vld [vmem:[%s558 + $0x48] sm:$0xf]
  %v578 = vld [vmem:[%s558 + $0x4c] sm:$0xf]
  %v579 = vld [vmem:[%s558 + $0x50] sm:$0xf]
  %v580 = vld [vmem:[%s558 + $0x54] sm:$0xf]
  %v581 = vld [vmem:[%s558 + $0x58] sm:$0xf]
  %v582 = vld [vmem:[%s558 + $0x5c] sm:$0xf]
  %v583 = vld [vmem:[%s558 + $0x60] sm:$0xf]
  %v584 = vld [vmem:[%s558 + $0x64] sm:$0xf]
  %v585 = vld [vmem:[%s558 + $0x68] sm:$0xf]
  %v586 = vld [vmem:[%s558 + $0x6c] sm:$0xf]
  %v587 = vld [vmem:[%s558 + $0x70] sm:$0xf]
  %v588 = vld [vmem:[%s558 + $0x74] sm:$0xf]
  %v589 = vld [vmem:[%s558 + $0x78] sm:$0xf]
  %v590 = vld [vmem:[%s558 + $0x7c] sm:$0xf]
  %v601 = vunpack.c.l.b16 %v548
  %v602 = vunpack.c.h.b16 %v548
  %v603 = vunpack.c.l.b16 %v549
  %v604 = vunpack.c.h.b16 %v549
  %v605 = vunpack.c.l.b16 %v550
  %v606 = vunpack.c.h.b16 %v550
  %v607 = vunpack.c.l.b16 %v551
  %v608 = vunpack.c.h.b16 %v551
  %v609 = vunpack.c.l.b16 %v552
  %v610 = vunpack.c.h.b16 %v552
  %v611 = vunpack.c.l.b16 %v553
  %v612 = vunpack.c.h.b16 %v553
  %v613 = vunpack.c.l.b16 %v554
  %v614 = vunpack.c.h.b16 %v554
  %v615 = vunpack.c.l.b16 %v555
  %v616 = vunpack.c.h.b16 %v555
  %v617 = vunpack.c.l.b16 %v556
  %v618 = vunpack.c.h.b16 %v556
  %v619 = vunpack.c.l.b16 %v557
  %v620 = vunpack.c.h.b16 %v557
  %v621 = vpack.c.b16 %v603, %v601
  %v622 = vpack.c.b16 %v604, %v602
  %v623 = vpack.c.b16 %v607, %v605
  %v624 = vpack.c.b16 %v608, %v606
  %v625 = vpack.c.b16 %v611, %v609
  %v626 = vpack.c.b16 %v612, %v610
  %v627 = vpack.c.b16 %v615, %v613
  %v628 = vpack.c.b16 %v616, %v614
  %v629 = vpack.c.b16 %v619, %v617
  %v630 = vpack.c.b16 %v620, %v618
  %v673 = vunpack.c.l.b16 %v559
  %v674 = vunpack.c.l.b16 %v560
  %v675 = vunpack.c.l.b16 %v561
  %v676 = vunpack.c.l.b16 %v562
  %v677 = vunpack.c.l.b16 %v563
  %v678 = vunpack.c.l.b16 %v564
  %v679 = vunpack.c.l.b16 %v565
  %v680 = vunpack.c.l.b16 %v566
  %v681 = vunpack.c.l.b16 %v567
  %v682 = vunpack.c.l.b16 %v568
  %v683 = vunpack.c.l.b16 %v569
  %v684 = vunpack.c.l.b16 %v570
  %v685 = vunpack.c.l.b16 %v571
  %v686 = vunpack.c.l.b16 %v572
  %v687 = vunpack.c.l.b16 %v573
  %v688 = vunpack.c.l.b16 %v574
  %v689 = vunpack.c.l.b16 %v575
  %v690 = vunpack.c.l.b16 %v576
  %v691 = vunpack.c.l.b16 %v577
  %v692 = vunpack.c.l.b16 %v578
  %v693 = vunpack.c.l.b16 %v579
  %v694 = vunpack.c.l.b16 %v580
  %v695 = vunpack.c.l.b16 %v581
  %v696 = vunpack.c.l.b16 %v582
  %v697 = vunpack.c.l.b16 %v583
  %v698 = vunpack.c.l.b16 %v584
  %v699 = vunpack.c.l.b16 %v585
  %v700 = vunpack.c.l.b16 %v586
  %v701 = vunpack.c.l.b16 %v587
  %v702 = vunpack.c.l.b16 %v588
  %v703 = vunpack.c.l.b16 %v589
  %v704 = vunpack.c.l.b16 %v590
  %v705 = vpack.c.b16 %v674, %v673
  %v706 = vpack.c.b16 %v676, %v675
  %v707 = vpack.c.b16 %v678, %v677
  %v708 = vpack.c.b16 %v680, %v679
  %v709 = vpack.c.b16 %v682, %v681
  %v710 = vpack.c.b16 %v684, %v683
  %v711 = vpack.c.b16 %v686, %v685
  %v712 = vpack.c.b16 %v688, %v687
  %v713 = vpack.c.b16 %v690, %v689
  %v714 = vpack.c.b16 %v692, %v691
  %v715 = vpack.c.b16 %v694, %v693
  %v716 = vpack.c.b16 %v696, %v695
  %v717 = vpack.c.b16 %v698, %v697
  %v718 = vpack.c.b16 %v700, %v699
  %v719 = vpack.c.b16 %v702, %v701
  %v720 = vpack.c.b16 %v704, %v703
  %737 = vmatpush.bf16.msra.mxu0 %v712
  %738 = vmatpush.bf16.msra.mxu0 %v711
  %739 = vmatpush.bf16.msra.mxu0 %v710
  %740 = vmatpush.bf16.msra.mxu0 %v709
  %741 = vmatpush.bf16.msra.mxu0 %v708
  %742 = vmatpush.bf16.msra.mxu0 %v707
  %743 = vmatpush.bf16.msra.mxu0 %v706
  %744 = vmatpush.bf16.msra.mxu0 %v705
  %745 = vmatmul.bf16.gmra.mxu0 %v621
  %v746 = vpop.f32.mrf.mxu0
  %v747 = vadd.f32 0.0, %v746
  %v748 = vpop.f32.mrf.mxu0
  %v749 = vadd.f32 0.0, %v748
  %750 = vmatmul.bf16.gmra.mxu0 %v623
  %v751 = vpop.f32.mrf.mxu0
  %v752 = vadd.f32 0.0, %v751
  %v753 = vpop.f32.mrf.mxu0
  %v754 = vadd.f32 0.0, %v753
  %755 = vmatmul.bf16.gmra.mxu0 %v625
  %v756 = vpop.f32.mrf.mxu0
  %v757 = vadd.f32 0.0, %v756
  %v758 = vpop.f32.mrf.mxu0
  %v759 = vadd.f32 0.0, %v758
  %760 = vmatmul.bf16.gmra.mxu0 %v627
  %v761 = vpop.f32.mrf.mxu0
  %v762 = vadd.f32 0.0, %v761
  %v763 = vpop.f32.mrf.mxu0
  %v764 = vadd.f32 0.0, %v763
  %765 = vmatmul.bf16.gmra.mxu0 %v629
  %v766 = vpop.f32.mrf.mxu0
  %v767 = vadd.f32 0.0, %v766
  %v768 = vpop.f32.mrf.mxu0
  %v769 = vadd.f32 0.0, %v768
  %770 = vdwg.mxu0
  %771 = vmatpush.bf16.msra.mxu0 %v720
  %772 = vmatpush.bf16.msra.mxu0 %v719
  %773 = vmatpush.bf16.msra.mxu0 %v718
  %774 = vmatpush.bf16.msra.mxu0 %v717
  %775 = vmatpush.bf16.msra.mxu0 %v716
  %776 = vmatpush.bf16.msra.mxu0 %v715
  %777 = vmatpush.bf16.msra.mxu0 %v714
  %778 = vmatpush.bf16.msra.mxu0 %v713
  %779 = vmatmul.bf16.gmra.mxu0 %v622
  %v780 = vpop.f32.mrf.mxu0
  %v781 = vadd.f32 %v747, %v780
  %v782 = vpop.f32.mrf.mxu0
  %v783 = vadd.f32 %v749, %v782
  %784 = vmatmul.bf16.gmra.mxu0 %v624
  %v785 = vpop.f32.mrf.mxu0
  %v786 = vadd.f32 %v752, %v785
  %v787 = vpop.f32.mrf.mxu0
  %v788 = vadd.f32 %v754, %v787
  %789 = vmatmul.bf16.gmra.mxu0 %v626
  %v790 = vpop.f32.mrf.mxu0
  %v791 = vadd.f32 %v757, %v790
  %v792 = vpop.f32.mrf.mxu0
  %v793 = vadd.f32 %v759, %v792
  %794 = vmatmul.bf16.gmra.mxu0 %v628
  %v795 = vpop.f32.mrf.mxu0
  %v796 = vadd.f32 %v762, %v795
  %v797 = vpop.f32.mrf.mxu0
  %v798 = vadd.f32 %v764, %v797
  %799 = vmatmul.bf16.gmra.mxu0 %v630
  %v800 = vpop.f32.mrf.mxu0
  %v801 = vadd.f32 %v767, %v800
  %v802 = vpop.f32.mrf.mxu0
  %v803 = vadd.f32 %v769, %v802
  %804 = vdwg.mxu0
  %v805 = vadd.f32 %v523, %v781
  %v806 = vadd.f32 %v525, %v783
  %v807 = vadd.f32 %v528, %v786
  %v808 = vadd.f32 %v530, %v788
  %v809 = vadd.f32 %v533, %v791
  %v810 = vadd.f32 %v535, %v793
  %v811 = vadd.f32 %v538, %v796
  %v812 = vadd.f32 %v540, %v798
  %v813 = vadd.f32 %v543, %v801
  %v814 = vadd.f32 %v545, %v803
  %s815 = scalar_lea.vmem %s0, 240
  %v816 = vld [vmem:[%s815] sm:$0xff]
  %v817 = vld [vmem:[%s815 + $0x8] sm:$0xff]
  %v818 = vld [vmem:[%s815 + $0x10] sm:$0xff]
  %v819 = vld [vmem:[%s815 + $0x18] sm:$0xff]
  %v820 = vld [vmem:[%s815 + $0x20] sm:$0xff]
  %v821 = vld [vmem:[%s815 + $0x28] sm:$0xff]
  %v822 = vld [vmem:[%s815 + $0x30] sm:$0xff]
  %v823 = vld [vmem:[%s815 + $0x38] sm:$0xff]
  %v824 = vld [vmem:[%s815 + $0x40] sm:$0xff]
  %v825 = vld [vmem:[%s815 + $0x48] sm:$0xff]
  %s826 = scalar_lea.vmem %s1, 384
  %v827 = vld [vmem:[%s826] sm:$0xf]
  %v828 = vld [vmem:[%s826 + $0x4] sm:$0xf]
  %v829 = vld [vmem:[%s826 + $0x8] sm:$0xf]
  %v830 = vld [vmem:[%s826 + $0xc] sm:$0xf]
  %v831 = vld [vmem:[%s826 + $0x10] sm:$0xf]
  %v832 = vld [vmem:[%s826 + $0x14] sm:$0xf]
  %v833 = vld [vmem:[%s826 + $0x18] sm:$0xf]
  %v834 = vld [vmem:[%s826 + $0x1c] sm:$0xf]
  %v835 = vld [vmem:[%s826 + $0x20] sm:$0xf]
  %v836 = vld [vmem:[%s826 + $0x24] sm:$0xf]
  %v837 = vld [vmem:[%s826 + $0x28] sm:$0xf]
  %v838 = vld [vmem:[%s826 + $0x2c] sm:$0xf]
  %v839 = vld [vmem:[%s826 + $0x30] sm:$0xf]
  %v840 = vld [vmem:[%s826 + $0x34] sm:$0xf]
  %v841 = vld [vmem:[%s826 + $0x38] sm:$0xf]
  %v842 = vld [vmem:[%s826 + $0x3c] sm:$0xf]
  %v843 = vld [vmem:[%s826 + $0x40] sm:$0xf]
  %v844 = vld [vmem:[%s826 + $0x44] sm:$0xf]
  %v845 = vld [vmem:[%s826 + $0x48] sm:$0xf]
  %v846 = vld [vmem:[%s826 + $0x4c] sm:$0xf]
  %v847 = vld [vmem:[%s826 + $0x50] sm:$0xf]
  %v848 = vld [vmem:[%s826 + $0x54] sm:$0xf]
  %v849 = vld [vmem:[%s826 + $0x58] sm:$0xf]
  %v850 = vld [vmem:[%s826 + $0x5c] sm:$0xf]
  %v851 = vld [vmem:[%s826 + $0x60] sm:$0xf]
  %v852 = vld [vmem:[%s826 + $0x64] sm:$0xf]
  %v853 = vld [vmem:[%s826 + $0x68] sm:$0xf]
  %v854 = vld [vmem:[%s826 + $0x6c] sm:$0xf]
  %v855 = vld [vmem:[%s826 + $0x70] sm:$0xf]
  %v856 = vld [vmem:[%s826 + $0x74] sm:$0xf]
  %v857 = vld [vmem:[%s826 + $0x78] sm:$0xf]
  %v858 = vld [vmem:[%s826 + $0x7c] sm:$0xf]
  %v869 = vunpack.c.l.b16 %v816
  %v870 = vunpack.c.h.b16 %v816
  %v871 = vunpack.c.l.b16 %v817
  %v872 = vunpack.c.h.b16 %v817
  %v873 = vunpack.c.l.b16 %v818
  %v874 = vunpack.c.h.b16 %v818
  %v875 = vunpack.c.l.b16 %v819
  %v876 = vunpack.c.h.b16 %v819
  %v877 = vunpack.c.l.b16 %v820
  %v878 = vunpack.c.h.b16 %v820
  %v879 = vunpack.c.l.b16 %v821
  %v880 = vunpack.c.h.b16 %v821
  %v881 = vunpack.c.l.b16 %v822
  %v882 = vunpack.c.h.b16 %v822
  %v883 = vunpack.c.l.b16 %v823
  %v884 = vunpack.c.h.b16 %v823
  %v885 = vunpack.c.l.b16 %v824
  %v886 = vunpack.c.h.b16 %v824
  %v887 = vunpack.c.l.b16 %v825
  %v888 = vunpack.c.h.b16 %v825
  %v889 = vpack.c.b16 %v871, %v869
  %v890 = vpack.c.b16 %v872, %v870
  %v891 = vpack.c.b16 %v875, %v873
  %v892 = vpack.c.b16 %v876, %v874
  %v893 = vpack.c.b16 %v879, %v877
  %v894 = vpack.c.b16 %v880, %v878
  %v895 = vpack.c.b16 %v883, %v881
  %v896 = vpack.c.b16 %v884, %v882
  %v897 = vpack.c.b16 %v887, %v885
  %v898 = vpack.c.b16 %v888, %v886
  %v941 = vunpack.c.l.b16 %v827
  %v942 = vunpack.c.l.b16 %v828
  %v943 = vunpack.c.l.b16 %v829
  %v944 = vunpack.c.l.b16 %v830
  %v945 = vunpack.c.l.b16 %v831
  %v946 = vunpack.c.l.b16 %v832
  %v947 = vunpack.c.l.b16 %v833
  %v948 = vunpack.c.l.b16 %v834
  %v949 = vunpack.c.l.b16 %v835
  %v950 = vunpack.c.l.b16 %v836
  %v951 = vunpack.c.l.b16 %v837
  %v952 = vunpack.c.l.b16 %v838
  %v953 = vunpack.c.l.b16 %v839
  %v954 = vunpack.c.l.b16 %v840
  %v955 = vunpack.c.l.b16 %v841
  %v956 = vunpack.c.l.b16 %v842
  %v957 = vunpack.c.l.b16 %v843
  %v958 = vunpack.c.l.b16 %v844
  %v959 = vunpack.c.l.b16 %v845
  %v960 = vunpack.c.l.b16 %v846
  %v961 = vunpack.c.l.b16 %v847
  %v962 = vunpack.c.l.b16 %v848
  %v963 = vunpack.c.l.b16 %v849
  %v964 = vunpack.c.l.b16 %v850
  %v965 = vunpack.c.l.b16 %v851
  %v966 = vunpack.c.l.b16 %v852
  %v967 = vunpack.c.l.b16 %v853
  %v968 = vunpack.c.l.b16 %v854
  %v969 = vunpack.c.l.b16 %v855
  %v970 = vunpack.c.l.b16 %v856
  %v971 = vunpack.c.l.b16 %v857
  %v972 = vunpack.c.l.b16 %v858
  %v973 = vpack.c.b16 %v942, %v941
  %v974 = vpack.c.b16 %v944, %v943
  %v975 = vpack.c.b16 %v946, %v945
  %v976 = vpack.c.b16 %v948, %v947
  %v977 = vpack.c.b16 %v950, %v949
  %v978 = vpack.c.b16 %v952, %v951
  %v979 = vpack.c.b16 %v954, %v953
  %v980 = vpack.c.b16 %v956, %v955
  %v981 = vpack.c.b16 %v958, %v957
  %v982 = vpack.c.b16 %v960, %v959
  %v983 = vpack.c.b16 %v962, %v961
  %v984 = vpack.c.b16 %v964, %v963
  %v985 = vpack.c.b16 %v966, %v965
  %v986 = vpack.c.b16 %v968, %v967
  %v987 = vpack.c.b16 %v970, %v969
  %v988 = vpack.c.b16 %v972, %v971
  %1005 = vmatpush.bf16.msra.mxu0 %v980
  %1006 = vmatpush.bf16.msra.mxu0 %v979
  %1007 = vmatpush.bf16.msra.mxu0 %v978
  %1008 = vmatpush.bf16.msra.mxu0 %v977
  %1009 = vmatpush.bf16.msra.mxu0 %v976
  %1010 = vmatpush.bf16.msra.mxu0 %v975
  %1011 = vmatpush.bf16.msra.mxu0 %v974
  %1012 = vmatpush.bf16.msra.mxu0 %v973
  %1013 = vmatmul.bf16.gmra.mxu0 %v889
  %v1014 = vpop.f32.mrf.mxu0
  %v1015 = vadd.f32 0.0, %v1014
  %v1016 = vpop.f32.mrf.mxu0
  %v1017 = vadd.f32 0.0, %v1016
  %1018 = vmatmul.bf16.gmra.mxu0 %v891
  %v1019 = vpop.f32.mrf.mxu0
  %v1020 = vadd.f32 0.0, %v1019
  %v1021 = vpop.f32.mrf.mxu0
  %v1022 = vadd.f32 0.0, %v1021
  %1023 = vmatmul.bf16.gmra.mxu0 %v893
  %v1024 = vpop.f32.mrf.mxu0
  %v1025 = vadd.f32 0.0, %v1024
  %v1026 = vpop.f32.mrf.mxu0
  %v1027 = vadd.f32 0.0, %v1026
  %1028 = vmatmul.bf16.gmra.mxu0 %v895
  %v1029 = vpop.f32.mrf.mxu0
  %v1030 = vadd.f32 0.0, %v1029
  %v1031 = vpop.f32.mrf.mxu0
  %v1032 = vadd.f32 0.0, %v1031
  %1033 = vmatmul.bf16.gmra.mxu0 %v897
  %v1034 = vpop.f32.mrf.mxu0
  %v1035 = vadd.f32 0.0, %v1034
  %v1036 = vpop.f32.mrf.mxu0
  %v1037 = vadd.f32 0.0, %v1036
  %1038 = vdwg.mxu0
  %1039 = vmatpush.bf16.msra.mxu0 %v988
  %1040 = vmatpush.bf16.msra.mxu0 %v987
  %1041 = vmatpush.bf16.msra.mxu0 %v986
  %1042 = vmatpush.bf16.msra.mxu0 %v985
  %1043 = vmatpush.bf16.msra.mxu0 %v984
  %1044 = vmatpush.bf16.msra.mxu0 %v983
  %1045 = vmatpush.bf16.msra.mxu0 %v982
  %1046 = vmatpush.bf16.msra.mxu0 %v981
  %1047 = vmatmul.bf16.gmra.mxu0 %v890
  %v1048 = vpop.f32.mrf.mxu0
  %v1049 = vadd.f32 %v1015, %v1048
  %v1050 = vpop.f32.mrf.mxu0
  %v1051 = vadd.f32 %v1017, %v1050
  %1052 = vmatmul.bf16.gmra.mxu0 %v892
  %v1053 = vpop.f32.mrf.mxu0
  %v1054 = vadd.f32 %v1020, %v1053
  %v1055 = vpop.f32.mrf.mxu0
  %v1056 = vadd.f32 %v1022, %v1055
  %1057 = vmatmul.bf16.gmra.mxu0 %v894
  %v1058 = vpop.f32.mrf.mxu0
  %v1059 = vadd.f32 %v1025, %v1058
  %v1060 = vpop.f32.mrf.mxu0
  %v1061 = vadd.f32 %v1027, %v1060
  %1062 = vmatmul.bf16.gmra.mxu0 %v896
  %v1063 = vpop.f32.mrf.mxu0
  %v1064 = vadd.f32 %v1030, %v1063
  %v1065 = vpop.f32.mrf.mxu0
  %v1066 = vadd.f32 %v1032, %v1065
  %1067 = vmatmul.bf16.gmra.mxu0 %v898
  %v1068 = vpop.f32.mrf.mxu0
  %v1069 = vadd.f32 %v1035, %v1068
  %v1070 = vpop.f32.mrf.mxu0
  %v1071 = vadd.f32 %v1037, %v1070
  %1072 = vdwg.mxu0
  %v1073 = vadd.f32 %v805, %v1049
  %v1074 = vadd.f32 %v806, %v1051
  %v1075 = vadd.f32 %v807, %v1054
  %v1076 = vadd.f32 %v808, %v1056
  %v1077 = vadd.f32 %v809, %v1059
  %v1078 = vadd.f32 %v810, %v1061
  %v1079 = vadd.f32 %v811, %v1064
  %v1080 = vadd.f32 %v812, %v1066
  %v1081 = vadd.f32 %v813, %v1069
  %v1082 = vadd.f32 %v814, %v1071
  %v1083 = vperm.slane %v29, 0
  %v1084 = vadd.f32 %v1073, %v1083
  %v1085 = vadd.f32 %v1074, %v1083
  %v1086 = vadd.f32 %v1075, %v1083
  %v1087 = vadd.f32 %v1076, %v1083
  %v1088 = vadd.f32 %v1077, %v1083
  %v1089 = vadd.f32 %v1078, %v1083
  %v1090 = vadd.f32 %v1079, %v1083
  %v1091 = vadd.f32 %v1080, %v1083
  %v1092 = vadd.f32 %v1081, %v1083
  %v1093 = vadd.f32 %v1082, %v1083
  %v1094 = vmax.f32 %v1084, 0.0
  %v1095 = vmax.f32 %v1085, 0.0
  %v1096 = vmax.f32 %v1086, 0.0
  %v1097 = vmax.f32 %v1087, 0.0
  %v1098 = vmax.f32 %v1088, 0.0
  %v1099 = vmax.f32 %v1089, 0.0
  %v1100 = vmax.f32 %v1090, 0.0
  %v1101 = vmax.f32 %v1091, 0.0
  %v1102 = vmax.f32 %v1092, 0.0
  %v1103 = vmax.f32 %v1093, 0.0
  %v1104 = vpack.c.bf16 %v1094, %v1094
  %v1105 = vpack.c.bf16 %v1095, %v1095
  %v1106 = vpack.c.bf16 %v1096, %v1096
  %v1107 = vpack.c.bf16 %v1097, %v1097
  %v1108 = vpack.c.bf16 %v1098, %v1098
  %v1109 = vpack.c.bf16 %v1099, %v1099
  %v1110 = vpack.c.bf16 %v1100, %v1100
  %v1111 = vpack.c.bf16 %v1101, %v1101
  %v1112 = vpack.c.bf16 %v1102, %v1102
  %v1113 = vpack.c.bf16 %v1103, %v1103
  %1114 = vst [vmem:[#allocation2] sm:$0xf] %v1104
  %1115 = vst [vmem:[#allocation2 + $0x4] sm:$0xf] %v1105
  %1116 = vst [vmem:[#allocation2 + $0x8] sm:$0xf] %v1106
  %1117 = vst [vmem:[#allocation2 + $0xc] sm:$0xf] %v1107
  %1118 = vst [vmem:[#allocation2 + $0x10] sm:$0xf] %v1108
  %1119 = vst [vmem:[#allocation2 + $0x14] sm:$0xf] %v1109
  %1120 = vst [vmem:[#allocation2 + $0x18] sm:$0xf] %v1110
  %1121 = vst [vmem:[#allocation2 + $0x1c] sm:$0xf] %v1111
  %1122 = vst [vmem:[#allocation2 + $0x20] sm:$0xf] %v1112
  %1123 = vst [vmem:[#allocation2 + $0x24] sm:$0xf] %v1113
  %v1124 = vld [vmem:[#allocation2] sm:$0xf]
  %v1125 = vld [vmem:[#allocation2 + $0x4] sm:$0xf]
  %v1126 = vld [vmem:[#allocation2 + $0x8] sm:$0xf]
  %v1127 = vld [vmem:[#allocation2 + $0xc] sm:$0xf]
  %v1128 = vld [vmem:[#allocation2 + $0x10] sm:$0xf]
  %v1129 = vld [vmem:[#allocation2 + $0x14] sm:$0xf]
  %v1130 = vld [vmem:[#allocation2 + $0x18] sm:$0xf]
  %v1131 = vld [vmem:[#allocation2 + $0x1c] sm:$0xf]
  %v1132 = vld [vmem:[#allocation2 + $0x20] sm:$0xf]
  %v1133 = vld [vmem:[#allocation2 + $0x24] sm:$0xf]
  %v1134 = vld [vmem:[%s2] sm:$0xf]
  %v1135 = vld [vmem:[%s2 + $0x4] sm:$0xf]
  %v1136 = vld [vmem:[%s2 + $0x8] sm:$0xf]
  %v1137 = vld [vmem:[%s2 + $0xc] sm:$0xf]
  %v1138 = vld [vmem:[%s2 + $0x10] sm:$0xf]
  %v1139 = vld [vmem:[%s2 + $0x14] sm:$0xf]
  %v1140 = vld [vmem:[%s2 + $0x18] sm:$0xf]
  %v1141 = vld [vmem:[%s2 + $0x1c] sm:$0xf]
  %v1142 = vld [vmem:[%s2 + $0x20] sm:$0xf]
  %v1143 = vld [vmem:[%s2 + $0x24] sm:$0xf]
  %v1144 = vld [vmem:[%s2 + $0x28] sm:$0xf]
  %v1145 = vld [vmem:[%s2 + $0x2c] sm:$0xf]
  %v1146 = vld [vmem:[%s2 + $0x30] sm:$0xf]
  %v1147 = vld [vmem:[%s2 + $0x34] sm:$0xf]
  %v1148 = vld [vmem:[%s2 + $0x38] sm:$0xf]
  %v1149 = vld [vmem:[%s2 + $0x3c] sm:$0xf]
  %v1150 = vld [vmem:[#allocation2] sm:$0xf]
  %v1151 = vld [vmem:[#allocation2 + $0x4] sm:$0xf]
  %v1152 = vld [vmem:[#allocation2 + $0x8] sm:$0xf]
  %v1153 = vld [vmem:[#allocation2 + $0xc] sm:$0xf]
  %v1154 = vld [vmem:[#allocation2 + $0x10] sm:$0xf]
  %v1155 = vld [vmem:[#allocation2 + $0x14] sm:$0xf]
  %v1156 = vld [vmem:[#allocation2 + $0x18] sm:$0xf]
  %v1157 = vld [vmem:[#allocation2 + $0x1c] sm:$0xf]
  %v1158 = vld [vmem:[#allocation2 + $0x20] sm:$0xf]
  %v1159 = vld [vmem:[#allocation2 + $0x24] sm:$0xf]
  %v1160 = vld [vmem:[#allocation2 + $0x28] sm:$0x1]
  %s1161 = scalar_lea.vmem %s2, 64
  %v1162 = vld [vmem:[%s1161] sm:$0xf]
  %v1163 = vld [vmem:[%s1161 + $0x4] sm:$0xf]
  %v1164 = vld [vmem:[%s1161 + $0x8] sm:$0xf]
  %v1165 = vld [vmem:[%s1161 + $0xc] sm:$0xf]
  %v1166 = vld [vmem:[%s1161 + $0x10] sm:$0xf]
  %v1167 = vld [vmem:[%s1161 + $0x14] sm:$0xf]
  %v1168 = vld [vmem:[%s1161 + $0x18] sm:$0xf]
  %v1169 = vld [vmem:[%s1161 + $0x1c] sm:$0xf]
  %v1170 = vld [vmem:[%s1161 + $0x20] sm:$0xf]
  %v1171 = vld [vmem:[%s1161 + $0x24] sm:$0xf]
  %v1172 = vld [vmem:[%s1161 + $0x28] sm:$0xf]
  %v1173 = vld [vmem:[%s1161 + $0x2c] sm:$0xf]
  %v1174 = vld [vmem:[%s1161 + $0x30] sm:$0xf]
  %v1175 = vld [vmem:[%s1161 + $0x34] sm:$0xf]
  %v1176 = vld [vmem:[%s1161 + $0x38] sm:$0xf]
  %v1177 = vld [vmem:[%s1161 + $0x3c] sm:$0xf]
  %v1189 = vunpack.c.l.b16 %v1150
  %v1190 = vunpack.c.l.b16 %v1151
  %v1191 = vunpack.c.l.b16 %v1152
  %v1192 = vunpack.c.l.b16 %v1153
  %v1193 = vunpack.c.l.b16 %v1154
  %v1194 = vunpack.c.l.b16 %v1155
  %v1195 = vunpack.c.l.b16 %v1156
  %v1196 = vunpack.c.l.b16 %v1157
  %v1197 = vunpack.c.l.b16 %v1158
  %v1198 = vunpack.c.l.b16 %v1159
  %v1199 = vunpack.c.l.b16 %v1160
  %v1200 = vpack.c.b16 %v1190, %v1189
  %v1201 = vpack.c.b16 %v1192, %v1191
  %v1202 = vpack.c.b16 %v1194, %v1193
  %v1203 = vpack.c.b16 %v1196, %v1195
  %v1204 = vpack.c.b16 %v1198, %v1197
  %v1205 = vpack.c.b16 %v1199, %v1199
  %vm1206 = vsmask.f32 7424
  %v1208 = vshrl.u32 %v1200, 16
  %v1210 = vshll.u32 %v1200, 16
  %v1212 = vrot.slane %v1210, 1
  %v1213 = vor.u32 %v1208, %v1212
  %v1215 = vshll.u32 %v1201, 16
  %v1217 = vrot.slane %v1215, 1
  %v1218 = vsel %vm1206, %v1213, %v1217
  %v1219 = vshrl.u32 %v1201, 16
  %v1221 = vor.u32 %v1219, %v1217
  %v1223 = vshll.u32 %v1202, 16
  %v1225 = vrot.slane %v1223, 1
  %v1226 = vsel %vm1206, %v1221, %v1225
  %v1227 = vshrl.u32 %v1202, 16
  %v1229 = vor.u32 %v1227, %v1225
  %v1231 = vshll.u32 %v1203, 16
  %v1233 = vrot.slane %v1231, 1
  %v1234 = vsel %vm1206, %v1229, %v1233
  %v1235 = vshrl.u32 %v1203, 16
  %v1237 = vor.u32 %v1235, %v1233
  %v1239 = vshll.u32 %v1204, 16
  %v1241 = vrot.slane %v1239, 1
  %v1242 = vsel %vm1206, %v1237, %v1241
  %v1243 = vshrl.u32 %v1204, 16
  %v1245 = vor.u32 %v1243, %v1241
  %v1247 = vshll.u32 %v1205, 16
  %v1249 = vrot.slane %v1247, 1
  %v1250 = vsel %vm1206, %v1245, %v1249
  %v1272 = vunpack.c.l.b16 %v1162
  %v1273 = vunpack.c.l.b16 %v1163
  %v1274 = vunpack.c.l.b16 %v1164
  %v1275 = vunpack.c.l.b16 %v1165
  %v1276 = vunpack.c.l.b16 %v1166
  %v1277 = vunpack.c.l.b16 %v1167
  %v1278 = vunpack.c.l.b16 %v1168
  %v1279 = vunpack.c.l.b16 %v1169
  %v1280 = vunpack.c.l.b16 %v1170
  %v1281 = vunpack.c.l.b16 %v1171
  %v1282 = vunpack.c.l.b16 %v1172
  %v1283 = vunpack.c.l.b16 %v1173
  %v1284 = vunpack.c.l.b16 %v1174
  %v1285 = vunpack.c.l.b16 %v1175
  %v1286 = vunpack.c.l.b16 %v1176
  %v1287 = vunpack.c.l.b16 %v1177
  %v1288 = vpack.c.b16 %v1273, %v1272
  %v1289 = vpack.c.b16 %v1275, %v1274
  %v1290 = vpack.c.b16 %v1277, %v1276
  %v1291 = vpack.c.b16 %v1279, %v1278
  %v1292 = vpack.c.b16 %v1281, %v1280
  %v1293 = vpack.c.b16 %v1283, %v1282
  %v1294 = vpack.c.b16 %v1285, %v1284
  %v1295 = vpack.c.b16 %v1287, %v1286
  %1304 = vmatpush.bf16.msra.mxu0 %v1295
  %1305 = vmatpush.bf16.msra.mxu0 %v1294
  %1306 = vmatpush.bf16.msra.mxu0 %v1293
  %1307 = vmatpush.bf16.msra.mxu0 %v1292
  %1308 = vmatpush.bf16.msra.mxu0 %v1291
  %1309 = vmatpush.bf16.msra.mxu0 %v1290
  %1310 = vmatpush.bf16.msra.mxu0 %v1289
  %1311 = vmatpush.bf16.msra.mxu0 %v1288
  %1312 = vmatmul.bf16.gmra.mxu0 %v1218
  %v1313 = vpop.f32.mrf.mxu0
  %v1314 = vadd.f32 0.0, %v1313
  %v1315 = vpop.f32.mrf.mxu0
  %v1316 = vadd.f32 0.0, %v1315
  %1317 = vmatmul.bf16.gmra.mxu0 %v1226
  %v1318 = vpop.f32.mrf.mxu0
  %v1319 = vadd.f32 0.0, %v1318
  %v1320 = vpop.f32.mrf.mxu0
  %v1321 = vadd.f32 0.0, %v1320
  %1322 = vmatmul.bf16.gmra.mxu0 %v1234
  %v1323 = vpop.f32.mrf.mxu0
  %v1324 = vadd.f32 0.0, %v1323
  %v1325 = vpop.f32.mrf.mxu0
  %v1326 = vadd.f32 0.0, %v1325
  %1327 = vmatmul.bf16.gmra.mxu0 %v1242
  %v1328 = vpop.f32.mrf.mxu0
  %v1329 = vadd.f32 0.0, %v1328
  %v1330 = vpop.f32.mrf.mxu0
  %v1331 = vadd.f32 0.0, %v1330
  %1332 = vmatmul.bf16.gmra.mxu0 %v1250
  %v1333 = vpop.f32.mrf.mxu0
  %v1334 = vadd.f32 0.0, %v1333
  %v1335 = vpop.f32.mrf.mxu0
  %v1336 = vadd.f32 0.0, %v1335
  %1337 = vdwg.mxu0
  %v1348 = vunpack.c.l.b16 %v1124
  %v1349 = vunpack.c.l.b16 %v1125
  %v1350 = vunpack.c.l.b16 %v1126
  %v1351 = vunpack.c.l.b16 %v1127
  %v1352 = vunpack.c.l.b16 %v1128
  %v1353 = vunpack.c.l.b16 %v1129
  %v1354 = vunpack.c.l.b16 %v1130
  %v1355 = vunpack.c.l.b16 %v1131
  %v1356 = vunpack.c.l.b16 %v1132
  %v1357 = vunpack.c.l.b16 %v1133
  %v1358 = vpack.c.b16 %v1349, %v1348
  %v1359 = vpack.c.b16 %v1351, %v1350
  %v1360 = vpack.c.b16 %v1353, %v1352
  %v1361 = vpack.c.b16 %v1355, %v1354
  %v1362 = vpack.c.b16 %v1357, %v1356
  %v1384 = vunpack.c.l.b16 %v1134
  %v1385 = vunpack.c.l.b16 %v1135
  %v1386 = vunpack.c.l.b16 %v1136
  %v1387 = vunpack.c.l.b16 %v1137
  %v1388 = vunpack.c.l.b16 %v1138
  %v1389 = vunpack.c.l.b16 %v1139
  %v1390 = vunpack.c.l.b16 %v1140
  %v1391 = vunpack.c.l.b16 %v1141
  %v1392 = vunpack.c.l.b16 %v1142
  %v1393 = vunpack.c.l.b16 %v1143
  %v1394 = vunpack.c.l.b16 %v1144
  %v1395 = vunpack.c.l.b16 %v1145
  %v1396 = vunpack.c.l.b16 %v1146
  %v1397 = vunpack.c.l.b16 %v1147
  %v1398 = vunpack.c.l.b16 %v1148
  %v1399 = vunpack.c.l.b16 %v1149
  %v1400 = vpack.c.b16 %v1385, %v1384
  %v1401 = vpack.c.b16 %v1387, %v1386
  %v1402 = vpack.c.b16 %v1389, %v1388
  %v1403 = vpack.c.b16 %v1391, %v1390
  %v1404 = vpack.c.b16 %v1393, %v1392
  %v1405 = vpack.c.b16 %v1395, %v1394
  %v1406 = vpack.c.b16 %v1397, %v1396
  %v1407 = vpack.c.b16 %v1399, %v1398
  %1416 = vmatpush.bf16.msra.mxu0 %v1407
  %1417 = vmatpush.bf16.msra.mxu0 %v1406
  %1418 = vmatpush.bf16.msra.mxu0 %v1405
  %1419 = vmatpush.bf16.msra.mxu0 %v1404
  %1420 = vmatpush.bf16.msra.mxu0 %v1403
  %1421 = vmatpush.bf16.msra.mxu0 %v1402
  %1422 = vmatpush.bf16.msra.mxu0 %v1401
  %1423 = vmatpush.bf16.msra.mxu0 %v1400
  %1424 = vmatmul.bf16.gmra.mxu0 %v1358
  %v1425 = vpop.f32.mrf.mxu0
  %v1426 = vadd.f32 %v1314, %v1425
  %v1427 = vpop.f32.mrf.mxu0
  %v1428 = vadd.f32 %v1316, %v1427
  %1429 = vmatmul.bf16.gmra.mxu0 %v1359
  %v1430 = vpop.f32.mrf.mxu0
  %v1431 = vadd.f32 %v1319, %v1430
  %v1432 = vpop.f32.mrf.mxu0
  %v1433 = vadd.f32 %v1321, %v1432
  %1434 = vmatmul.bf16.gmra.mxu0 %v1360
  %v1435 = vpop.f32.mrf.mxu0
  %v1436 = vadd.f32 %v1324, %v1435
  %v1437 = vpop.f32.mrf.mxu0
  %v1438 = vadd.f32 %v1326, %v1437
  %1439 = vmatmul.bf16.gmra.mxu0 %v1361
  %v1440 = vpop.f32.mrf.mxu0
  %v1441 = vadd.f32 %v1329, %v1440
  %v1442 = vpop.f32.mrf.mxu0
  %v1443 = vadd.f32 %v1331, %v1442
  %1444 = vmatmul.bf16.gmra.mxu0 %v1362
  %v1445 = vpop.f32.mrf.mxu0
  %v1446 = vadd.f32 %v1334, %v1445
  %v1447 = vpop.f32.mrf.mxu0
  %v1448 = vadd.f32 %v1336, %v1447
  %1449 = vdwg.mxu0
  %v1450 = vld [vmem:[#allocation2] sm:$0x8]
  %v1451 = vld [vmem:[#allocation2 + $0x28] sm:$0x7]
  %s1452 = scalar_lea.vmem %s2, 128
  %v1453 = vld [vmem:[%s1452] sm:$0xf]
  %v1454 = vld [vmem:[%s1452 + $0x4] sm:$0xf]
  %v1455 = vld [vmem:[%s1452 + $0x8] sm:$0xf]
  %v1456 = vld [vmem:[%s1452 + $0xc] sm:$0xf]
  %v1457 = vld [vmem:[%s1452 + $0x10] sm:$0xf]
  %v1458 = vld [vmem:[%s1452 + $0x14] sm:$0xf]
  %v1459 = vld [vmem:[%s1452 + $0x18] sm:$0xf]
  %v1460 = vld [vmem:[%s1452 + $0x1c] sm:$0xf]
  %v1461 = vld [vmem:[%s1452 + $0x20] sm:$0xf]
  %v1462 = vld [vmem:[%s1452 + $0x24] sm:$0xf]
  %v1463 = vld [vmem:[%s1452 + $0x28] sm:$0xf]
  %v1464 = vld [vmem:[%s1452 + $0x2c] sm:$0xf]
  %v1465 = vld [vmem:[%s1452 + $0x30] sm:$0xf]
  %v1466 = vld [vmem:[%s1452 + $0x34] sm:$0xf]
  %v1467 = vld [vmem:[%s1452 + $0x38] sm:$0xf]
  %v1468 = vld [vmem:[%s1452 + $0x3c] sm:$0xf]
  %v1471 = vunpack.c.l.b16 %v1450
  %v1472 = vunpack.c.l.b16 %v1451
  %v1473 = vpack.c.b16 %v1190, %v1471
  %v1474 = vpack.c.b16 %v1472, %v1472
  %vm1475 = vcmask 1044480
  %v1476 = vrot.slane %v1473, 3
  %v1477 = vrot.slane %v1201, 3
  %v1478 = vsel %vm1475, %v1476, %v1477
  %v1479 = vrot.slane %v1202, 3
  %v1480 = vsel %vm1475, %v1477, %v1479
  %v1481 = vrot.slane %v1203, 3
  %v1482 = vsel %vm1475, %v1479, %v1481
  %v1483 = vrot.slane %v1204, 3
  %v1484 = vsel %vm1475, %v1481, %v1483
  %v1485 = vrot.slane %v1474, 3
  %v1486 = vsel %vm1475, %v1483, %v1485
  %v1508 = vunpack.c.l.b16 %v1453
  %v1509 = vunpack.c.l.b16 %v1454
  %v1510 = vunpack.c.l.b16 %v1455
  %v1511 = vunpack.c.l.b16 %v1456
  %v1512 = vunpack.c.l.b16 %v1457
  %v1513 = vunpack.c.l.b16 %v1458
  %v1514 = vunpack.c.l.b16 %v1459
  %v1515 = vunpack.c.l.b16 %v1460
  %v1516 = vunpack.c.l.b16 %v1461
  %v1517 = vunpack.c.l.b16 %v1462
  %v1518 = vunpack.c.l.b16 %v1463
  %v1519 = vunpack.c.l.b16 %v1464
  %v1520 = vunpack.c.l.b16 %v1465
  %v1521 = vunpack.c.l.b16 %v1466
  %v1522 = vunpack.c.l.b16 %v1467
  %v1523 = vunpack.c.l.b16 %v1468
  %v1524 = vpack.c.b16 %v1509, %v1508
  %v1525 = vpack.c.b16 %v1511, %v1510
  %v1526 = vpack.c.b16 %v1513, %v1512
  %v1527 = vpack.c.b16 %v1515, %v1514
  %v1528 = vpack.c.b16 %v1517, %v1516
  %v1529 = vpack.c.b16 %v1519, %v1518
  %v1530 = vpack.c.b16 %v1521, %v1520
  %v1531 = vpack.c.b16 %v1523, %v1522
  %1540 = vmatpush.bf16.msra.mxu0 %v1531
  %1541 = vmatpush.bf16.msra.mxu0 %v1530
  %1542 = vmatpush.bf16.msra.mxu0 %v1529
  %1543 = vmatpush.bf16.msra.mxu0 %v1528
  %1544 = vmatpush.bf16.msra.mxu0 %v1527
  %1545 = vmatpush.bf16.msra.mxu0 %v1526
  %1546 = vmatpush.bf16.msra.mxu0 %v1525
  %1547 = vmatpush.bf16.msra.mxu0 %v1524
  %1548 = vmatmul.bf16.gmra.mxu0 %v1478
  %v1549 = vpop.f32.mrf.mxu0
  %v1550 = vadd.f32 0.0, %v1549
  %v1551 = vpop.f32.mrf.mxu0
  %v1552 = vadd.f32 0.0, %v1551
  %1553 = vmatmul.bf16.gmra.mxu0 %v1480
  %v1554 = vpop.f32.mrf.mxu0
  %v1555 = vadd.f32 0.0, %v1554
  %v1556 = vpop.f32.mrf.mxu0
  %v1557 = vadd.f32 0.0, %v1556
  %1558 = vmatmul.bf16.gmra.mxu0 %v1482
  %v1559 = vpop.f32.mrf.mxu0
  %v1560 = vadd.f32 0.0, %v1559
  %v1561 = vpop.f32.mrf.mxu0
  %v1562 = vadd.f32 0.0, %v1561
  %1563 = vmatmul.bf16.gmra.mxu0 %v1484
  %v1564 = vpop.f32.mrf.mxu0
  %v1565 = vadd.f32 0.0, %v1564
  %v1566 = vpop.f32.mrf.mxu0
  %v1567 = vadd.f32 0.0, %v1566
  %1568 = vmatmul.bf16.gmra.mxu0 %v1486
  %v1569 = vpop.f32.mrf.mxu0
  %v1570 = vadd.f32 0.0, %v1569
  %v1571 = vpop.f32.mrf.mxu0
  %v1572 = vadd.f32 0.0, %v1571
  %1573 = vdwg.mxu0
  %v1574 = vadd.f32 %v1426, %v1550
  %v1575 = vadd.f32 %v1428, %v1552
  %v1576 = vadd.f32 %v1431, %v1555
  %v1577 = vadd.f32 %v1433, %v1557
  %v1578 = vadd.f32 %v1436, %v1560
  %v1579 = vadd.f32 %v1438, %v1562
  %v1580 = vadd.f32 %v1441, %v1565
  %v1581 = vadd.f32 %v1443, %v1567
  %v1582 = vadd.f32 %v1446, %v1570
  %v1583 = vadd.f32 %v1448, %v1572
  %v1584 = vld [vmem:[#allocation2 + $0x28] sm:$0xf]
  %s1585 = scalar_lea.vmem %s2, 192
  %v1586 = vld [vmem:[%s1585] sm:$0xf]
  %v1587 = vld [vmem:[%s1585 + $0x4] sm:$0xf]
  %v1588 = vld [vmem:[%s1585 + $0x8] sm:$0xf]
  %v1589 = vld [vmem:[%s1585 + $0xc] sm:$0xf]
  %v1590 = vld [vmem:[%s1585 + $0x10] sm:$0xf]
  %v1591 = vld [vmem:[%s1585 + $0x14] sm:$0xf]
  %v1592 = vld [vmem:[%s1585 + $0x18] sm:$0xf]
  %v1593 = vld [vmem:[%s1585 + $0x1c] sm:$0xf]
  %v1594 = vld [vmem:[%s1585 + $0x20] sm:$0xf]
  %v1595 = vld [vmem:[%s1585 + $0x24] sm:$0xf]
  %v1596 = vld [vmem:[%s1585 + $0x28] sm:$0xf]
  %v1597 = vld [vmem:[%s1585 + $0x2c] sm:$0xf]
  %v1598 = vld [vmem:[%s1585 + $0x30] sm:$0xf]
  %v1599 = vld [vmem:[%s1585 + $0x34] sm:$0xf]
  %v1600 = vld [vmem:[%s1585 + $0x38] sm:$0xf]
  %v1601 = vld [vmem:[%s1585 + $0x3c] sm:$0xf]
  %v1603 = vunpack.c.l.b16 %v1584
  %v1604 = vpack.c.b16 %v1603, %v1603
  %vm1605 = vsmask.f32 4352
  %v1607 = vshrl.u32 %v1473, 16
  %v1609 = vrot.slane %v1607, 3
  %v1610 = vshll.u32 %v1473, 16
  %v1612 = vrot.slane %v1610, 4
  %v1613 = vor.u32 %v1609, %v1612
  %v1614 = vrot.slane %v1219, 3
  %v1615 = vrot.slane %v1215, 4
  %v1616 = vor.u32 %v1614, %v1615
  %v1617 = vsel %vm1605, %v1613, %v1616
  %v1618 = vrot.slane %v1227, 3
  %v1619 = vrot.slane %v1223, 4
  %v1620 = vor.u32 %v1618, %v1619
  %v1621 = vsel %vm1605, %v1616, %v1620
  %v1622 = vrot.slane %v1235, 3
  %v1623 = vrot.slane %v1231, 4
  %v1624 = vor.u32 %v1622, %v1623
  %v1625 = vsel %vm1605, %v1620, %v1624
  %v1626 = vrot.slane %v1243, 3
  %v1627 = vrot.slane %v1239, 4
  %v1628 = vor.u32 %v1626, %v1627
  %v1629 = vsel %vm1605, %v1624, %v1628
  %v1631 = vshrl.u32 %v1604, 16
  %v1633 = vrot.slane %v1631, 3
  %v1634 = vshll.u32 %v1604, 16
  %v1636 = vrot.slane %v1634, 4
  %v1637 = vor.u32 %v1633, %v1636
  %v1638 = vsel %vm1605, %v1628, %v1637
  %v1660 = vunpack.c.l.b16 %v1586
  %v1661 = vunpack.c.l.b16 %v1587
  %v1662 = vunpack.c.l.b16 %v1588
  %v1663 = vunpack.c.l.b16 %v1589
  %v1664 = vunpack.c.l.b16 %v1590
  %v1665 = vunpack.c.l.b16 %v1591
  %v1666 = vunpack.c.l.b16 %v1592
  %v1667 = vunpack.c.l.b16 %v1593
  %v1668 = vunpack.c.l.b16 %v1594
  %v1669 = vunpack.c.l.b16 %v1595
  %v1670 = vunpack.c.l.b16 %v1596
  %v1671 = vunpack.c.l.b16 %v1597
  %v1672 = vunpack.c.l.b16 %v1598
  %v1673 = vunpack.c.l.b16 %v1599
  %v1674 = vunpack.c.l.b16 %v1600
  %v1675 = vunpack.c.l.b16 %v1601
  %v1676 = vpack.c.b16 %v1661, %v1660
  %v1677 = vpack.c.b16 %v1663, %v1662
  %v1678 = vpack.c.b16 %v1665, %v1664
  %v1679 = vpack.c.b16 %v1667, %v1666
  %v1680 = vpack.c.b16 %v1669, %v1668
  %v1681 = vpack.c.b16 %v1671, %v1670
  %v1682 = vpack.c.b16 %v1673, %v1672
  %v1683 = vpack.c.b16 %v1675, %v1674
  %1692 = vmatpush.bf16.msra.mxu0 %v1683
  %1693 = vmatpush.bf16.msra.mxu0 %v1682
  %1694 = vmatpush.bf16.msra.mxu0 %v1681
  %1695 = vmatpush.bf16.msra.mxu0 %v1680
  %1696 = vmatpush.bf16.msra.mxu0 %v1679
  %1697 = vmatpush.bf16.msra.mxu0 %v1678
  %1698 = vmatpush.bf16.msra.mxu0 %v1677
  %1699 = vmatpush.bf16.msra.mxu0 %v1676
  %1700 = vmatmul.bf16.gmra.mxu0 %v1617
  %v1701 = vpop.f32.mrf.mxu0
  %v1702 = vadd.f32 0.0, %v1701
  %v1703 = vpop.f32.mrf.mxu0
  %v1704 = vadd.f32 0.0, %v1703
  %1705 = vmatmul.bf16.gmra.mxu0 %v1621
  %v1706 = vpop.f32.mrf.mxu0
  %v1707 = vadd.f32 0.0, %v1706
  %v1708 = vpop.f32.mrf.mxu0
  %v1709 = vadd.f32 0.0, %v1708
  %1710 = vmatmul.bf16.gmra.mxu0 %v1625
  %v1711 = vpop.f32.mrf.mxu0
  %v1712 = vadd.f32 0.0, %v1711
  %v1713 = vpop.f32.mrf.mxu0
  %v1714 = vadd.f32 0.0, %v1713
  %1715 = vmatmul.bf16.gmra.mxu0 %v1629
  %v1716 = vpop.f32.mrf.mxu0
  %v1717 = vadd.f32 0.0, %v1716
  %v1718 = vpop.f32.mrf.mxu0
  %v1719 = vadd.f32 0.0, %v1718
  %1720 = vmatmul.bf16.gmra.mxu0 %v1638
  %v1721 = vpop.f32.mrf.mxu0
  %v1722 = vadd.f32 0.0, %v1721
  %v1723 = vpop.f32.mrf.mxu0
  %v1724 = vadd.f32 0.0, %v1723
  %1725 = vdwg.mxu0
  %v1726 = vadd.f32 %v1574, %v1702
  %v1727 = vadd.f32 %v1575, %v1704
  %v1728 = vadd.f32 %v1576, %v1707
  %v1729 = vadd.f32 %v1577, %v1709
  %v1730 = vadd.f32 %v1578, %v1712
  %v1731 = vadd.f32 %v1579, %v1714
  %v1732 = vadd.f32 %v1580, %v1717
  %v1733 = vadd.f32 %v1581, %v1719
  %v1734 = vadd.f32 %v1582, %v1722
  %v1735 = vadd.f32 %v1583, %v1724
  %v1736 = vperm.slane %v30, 0
  %v1737 = vadd.f32 %v1726, %v1736
  %v1738 = vadd.f32 %v1727, %v1736
  %v1739 = vadd.f32 %v1728, %v1736
  %v1740 = vadd.f32 %v1729, %v1736
  %v1741 = vadd.f32 %v1730, %v1736
  %v1742 = vadd.f32 %v1731, %v1736
  %v1743 = vadd.f32 %v1732, %v1736
  %v1744 = vadd.f32 %v1733, %v1736
  %v1745 = vadd.f32 %v1734, %v1736
  %v1746 = vadd.f32 %v1735, %v1736
  %v1747 = vmax.f32 %v1737, 0.0
  %v1748 = vmax.f32 %v1738, 0.0
  %v1749 = vmax.f32 %v1739, 0.0
  %v1750 = vmax.f32 %v1740, 0.0
  %v1751 = vmax.f32 %v1741, 0.0
  %v1752 = vmax.f32 %v1742, 0.0
  %v1753 = vmax.f32 %v1743, 0.0
  %v1754 = vmax.f32 %v1744, 0.0
  %v1755 = vmax.f32 %v1745, 0.0
  %v1756 = vmax.f32 %v1746, 0.0
  %v1757 = vpack.c.bf16 %v1747, %v1747
  %v1758 = vpack.c.bf16 %v1748, %v1748
  %v1759 = vpack.c.bf16 %v1749, %v1749
  %v1760 = vpack.c.bf16 %v1750, %v1750
  %v1761 = vpack.c.bf16 %v1751, %v1751
  %v1762 = vpack.c.bf16 %v1752, %v1752
  %v1763 = vpack.c.bf16 %v1753, %v1753
  %v1764 = vpack.c.bf16 %v1754, %v1754
  %v1765 = vpack.c.bf16 %v1755, %v1755
  %v1766 = vpack.c.bf16 %v1756, %v1756
  %1767 = vst [vmem:[#allocation3] sm:$0xf] %v1757
  %1768 = vst [vmem:[#allocation3 + $0x4] sm:$0xf] %v1758
  %1769 = vst [vmem:[#allocation3 + $0x8] sm:$0xf] %v1759
  %1770 = vst [vmem:[#allocation3 + $0xc] sm:$0xf] %v1760
  %1771 = vst [vmem:[#allocation3 + $0x10] sm:$0xf] %v1761
  %1772 = vst [vmem:[#allocation3 + $0x14] sm:$0xf] %v1762
  %1773 = vst [vmem:[#allocation3 + $0x18] sm:$0xf] %v1763
  %1774 = vst [vmem:[#allocation3 + $0x1c] sm:$0xf] %v1764
  %1775 = vst [vmem:[#allocation3 + $0x20] sm:$0xf] %v1765
  %1776 = vst [vmem:[#allocation3 + $0x24] sm:$0xf] %v1766
  %v1777 = vld [vmem:[#allocation3] sm:$0xf]
  %v1778 = vld [vmem:[#allocation3 + $0x4] sm:$0xf]
  %v1779 = vld [vmem:[#allocation3 + $0x8] sm:$0xf]
  %v1780 = vld [vmem:[#allocation3 + $0xc] sm:$0xf]
  %v1781 = vld [vmem:[#allocation3 + $0x10] sm:$0xf]
  %v1782 = vld [vmem:[#allocation3 + $0x14] sm:$0xf]
  %v1783 = vld [vmem:[#allocation3 + $0x18] sm:$0xf]
  %v1784 = vld [vmem:[#allocation3 + $0x1c] sm:$0xf]
  %v1785 = vld [vmem:[#allocation3 + $0x20] sm:$0xf]
  %v1786 = vld [vmem:[#allocation3 + $0x24] sm:$0xf]
  %v1787 = vld [vmem:[%s3] sm:$0xf]
  %v1788 = vld [vmem:[%s3 + $0x4] sm:$0xf]
  %v1789 = vld [vmem:[%s3 + $0x8] sm:$0xf]
  %v1790 = vld [vmem:[%s3 + $0xc] sm:$0xf]
  %v1791 = vld [vmem:[%s3 + $0x10] sm:$0xf]
  %v1792 = vld [vmem:[%s3 + $0x14] sm:$0xf]
  %v1793 = vld [vmem:[%s3 + $0x18] sm:$0xf]
  %v1794 = vld [vmem:[%s3 + $0x1c] sm:$0xf]
  %v1795 = vld [vmem:[%s3 + $0x20] sm:$0xf]
  %v1796 = vld [vmem:[%s3 + $0x24] sm:$0xf]
  %v1797 = vld [vmem:[%s3 + $0x28] sm:$0xf]
  %v1798 = vld [vmem:[%s3 + $0x2c] sm:$0xf]
  %v1799 = vld [vmem:[%s3 + $0x30] sm:$0xf]
  %v1800 = vld [vmem:[%s3 + $0x34] sm:$0xf]
  %v1801 = vld [vmem:[%s3 + $0x38] sm:$0xf]
  %v1802 = vld [vmem:[%s3 + $0x3c] sm:$0xf]
  %v1803 = vld [vmem:[#allocation3 + $0x28] sm:$0x1]
  %s1804 = scalar_lea.vmem %s3, 64
  %v1805 = vld [vmem:[%s1804] sm:$0xf]
  %v1806 = vld [vmem:[%s1804 + $0x4] sm:$0xf]
  %v1807 = vld [vmem:[%s1804 + $0x8] sm:$0xf]
  %v1808 = vld [vmem:[%s1804 + $0xc] sm:$0xf]
  %v1809 = vld [vmem:[%s1804 + $0x10] sm:$0xf]
  %v1810 = vld [vmem:[%s1804 + $0x14] sm:$0xf]
  %v1811 = vld [vmem:[%s1804 + $0x18] sm:$0xf]
  %v1812 = vld [vmem:[%s1804 + $0x1c] sm:$0xf]
  %v1813 = vld [vmem:[%s1804 + $0x20] sm:$0xf]
  %v1814 = vld [vmem:[%s1804 + $0x24] sm:$0xf]
  %v1815 = vld [vmem:[%s1804 + $0x28] sm:$0xf]
  %v1816 = vld [vmem:[%s1804 + $0x2c] sm:$0xf]
  %v1817 = vld [vmem:[%s1804 + $0x30] sm:$0xf]
  %v1818 = vld [vmem:[%s1804 + $0x34] sm:$0xf]
  %v1819 = vld [vmem:[%s1804 + $0x38] sm:$0xf]
  %v1820 = vld [vmem:[%s1804 + $0x3c] sm:$0xf]
  %v1832 = vunpack.c.l.b16 %v1777
  %v1833 = vunpack.c.l.b16 %v1778
  %v1834 = vunpack.c.l.b16 %v1779
  %v1835 = vunpack.c.l.b16 %v1780
  %v1836 = vunpack.c.l.b16 %v1781
  %v1837 = vunpack.c.l.b16 %v1782
  %v1838 = vunpack.c.l.b16 %v1783
  %v1839 = vunpack.c.l.b16 %v1784
  %v1840 = vunpack.c.l.b16 %v1785
  %v1841 = vunpack.c.l.b16 %v1786
  %v1842 = vunpack.c.l.b16 %v1803
  %v1843 = vpack.c.b16 %v1833, %v1832
  %v1844 = vpack.c.b16 %v1835, %v1834
  %v1845 = vpack.c.b16 %v1837, %v1836
  %v1846 = vpack.c.b16 %v1839, %v1838
  %v1847 = vpack.c.b16 %v1841, %v1840
  %v1848 = vpack.c.b16 %v1842, %v1842
  %v1850 = vshrl.u32 %v1843, 16
  %v1852 = vshll.u32 %v1843, 16
  %v1854 = vrot.slane %v1852, 1
  %v1855 = vor.u32 %v1850, %v1854
  %v1857 = vshll.u32 %v1844, 16
  %v1859 = vrot.slane %v1857, 1
  %v1860 = vsel %vm1206, %v1855, %v1859
  %v1861 = vshrl.u32 %v1844, 16
  %v1863 = vor.u32 %v1861, %v1859
  %v1865 = vshll.u32 %v1845, 16
  %v1867 = vrot.slane %v1865, 1
  %v1868 = vsel %vm1206, %v1863, %v1867
  %v1869 = vshrl.u32 %v1845, 16
  %v1871 = vor.u32 %v1869, %v1867
  %v1873 = vshll.u32 %v1846, 16
  %v1875 = vrot.slane %v1873, 1
  %v1876 = vsel %vm1206, %v1871, %v1875
  %v1877 = vshrl.u32 %v1846, 16
  %v1879 = vor.u32 %v1877, %v1875
  %v1881 = vshll.u32 %v1847, 16
  %v1883 = vrot.slane %v1881, 1
  %v1884 = vsel %vm1206, %v1879, %v1883
  %v1885 = vshrl.u32 %v1847, 16
  %v1887 = vor.u32 %v1885, %v1883
  %v1889 = vshll.u32 %v1848, 16
  %v1891 = vrot.slane %v1889, 1
  %v1892 = vsel %vm1206, %v1887, %v1891
  %v1914 = vunpack.c.l.b16 %v1805
  %v1915 = vunpack.c.l.b16 %v1806
  %v1916 = vunpack.c.l.b16 %v1807
  %v1917 = vunpack.c.l.b16 %v1808
  %v1918 = vunpack.c.l.b16 %v1809
  %v1919 = vunpack.c.l.b16 %v1810
  %v1920 = vunpack.c.l.b16 %v1811
  %v1921 = vunpack.c.l.b16 %v1812
  %v1922 = vunpack.c.l.b16 %v1813
  %v1923 = vunpack.c.l.b16 %v1814
  %v1924 = vunpack.c.l.b16 %v1815
  %v1925 = vunpack.c.l.b16 %v1816
  %v1926 = vunpack.c.l.b16 %v1817
  %v1927 = vunpack.c.l.b16 %v1818
  %v1928 = vunpack.c.l.b16 %v1819
  %v1929 = vunpack.c.l.b16 %v1820
  %v1930 = vpack.c.b16 %v1915, %v1914
  %v1931 = vpack.c.b16 %v1917, %v1916
  %v1932 = vpack.c.b16 %v1919, %v1918
  %v1933 = vpack.c.b16 %v1921, %v1920
  %v1934 = vpack.c.b16 %v1923, %v1922
  %v1935 = vpack.c.b16 %v1925, %v1924
  %v1936 = vpack.c.b16 %v1927, %v1926
  %v1937 = vpack.c.b16 %v1929, %v1928
  %1946 = vmatpush.bf16.msra.mxu0 %v1937
  %1947 = vmatpush.bf16.msra.mxu0 %v1936
  %1948 = vmatpush.bf16.msra.mxu0 %v1935
  %1949 = vmatpush.bf16.msra.mxu0 %v1934
  %1950 = vmatpush.bf16.msra.mxu0 %v1933
  %1951 = vmatpush.bf16.msra.mxu0 %v1932
  %1952 = vmatpush.bf16.msra.mxu0 %v1931
  %1953 = vmatpush.bf16.msra.mxu0 %v1930
  %1954 = vmatmul.bf16.gmra.mxu0 %v1860
  %v1955 = vpop.f32.mrf.mxu0
  %v1956 = vadd.f32 0.0, %v1955
  %v1957 = vpop.f32.mrf.mxu0
  %v1958 = vadd.f32 0.0, %v1957
  %1959 = vmatmul.bf16.gmra.mxu0 %v1868
  %v1960 = vpop.f32.mrf.mxu0
  %v1961 = vadd.f32 0.0, %v1960
  %v1962 = vpop.f32.mrf.mxu0
  %v1963 = vadd.f32 0.0, %v1962
  %1964 = vmatmul.bf16.gmra.mxu0 %v1876
  %v1965 = vpop.f32.mrf.mxu0
  %v1966 = vadd.f32 0.0, %v1965
  %v1967 = vpop.f32.mrf.mxu0
  %v1968 = vadd.f32 0.0, %v1967
  %1969 = vmatmul.bf16.gmra.mxu0 %v1884
  %v1970 = vpop.f32.mrf.mxu0
  %v1971 = vadd.f32 0.0, %v1970
  %v1972 = vpop.f32.mrf.mxu0
  %v1973 = vadd.f32 0.0, %v1972
  %1974 = vmatmul.bf16.gmra.mxu0 %v1892
  %v1975 = vpop.f32.mrf.mxu0
  %v1976 = vadd.f32 0.0, %v1975
  %v1977 = vpop.f32.mrf.mxu0
  %v1978 = vadd.f32 0.0, %v1977
  %1979 = vdwg.mxu0
  %v2001 = vunpack.c.l.b16 %v1787
  %v2002 = vunpack.c.l.b16 %v1788
  %v2003 = vunpack.c.l.b16 %v1789
  %v2004 = vunpack.c.l.b16 %v1790
  %v2005 = vunpack.c.l.b16 %v1791
  %v2006 = vunpack.c.l.b16 %v1792
  %v2007 = vunpack.c.l.b16 %v1793
  %v2008 = vunpack.c.l.b16 %v1794
  %v2009 = vunpack.c.l.b16 %v1795
  %v2010 = vunpack.c.l.b16 %v1796
  %v2011 = vunpack.c.l.b16 %v1797
  %v2012 = vunpack.c.l.b16 %v1798
  %v2013 = vunpack.c.l.b16 %v1799
  %v2014 = vunpack.c.l.b16 %v1800
  %v2015 = vunpack.c.l.b16 %v1801
  %v2016 = vunpack.c.l.b16 %v1802
  %v2017 = vpack.c.b16 %v2002, %v2001
  %v2018 = vpack.c.b16 %v2004, %v2003
  %v2019 = vpack.c.b16 %v2006, %v2005
  %v2020 = vpack.c.b16 %v2008, %v2007
  %v2021 = vpack.c.b16 %v2010, %v2009
  %v2022 = vpack.c.b16 %v2012, %v2011
  %v2023 = vpack.c.b16 %v2014, %v2013
  %v2024 = vpack.c.b16 %v2016, %v2015
  %2033 = vmatpush.bf16.msra.mxu0 %v2024
  %2034 = vmatpush.bf16.msra.mxu0 %v2023
  %2035 = vmatpush.bf16.msra.mxu0 %v2022
  %2036 = vmatpush.bf16.msra.mxu0 %v2021
  %2037 = vmatpush.bf16.msra.mxu0 %v2020
  %2038 = vmatpush.bf16.msra.mxu0 %v2019
  %2039 = vmatpush.bf16.msra.mxu0 %v2018
  %2040 = vmatpush.bf16.msra.mxu0 %v2017
  %2041 = vmatmul.bf16.gmra.mxu0 %v1843
  %v2042 = vpop.f32.mrf.mxu0
  %v2043 = vadd.f32 %v1956, %v2042
  %v2044 = vpop.f32.mrf.mxu0
  %v2045 = vadd.f32 %v1958, %v2044
  %2046 = vmatmul.bf16.gmra.mxu0 %v1844
  %v2047 = vpop.f32.mrf.mxu0
  %v2048 = vadd.f32 %v1961, %v2047
  %v2049 = vpop.f32.mrf.mxu0
  %v2050 = vadd.f32 %v1963, %v2049
  %2051 = vmatmul.bf16.gmra.mxu0 %v1845
  %v2052 = vpop.f32.mrf.mxu0
  %v2053 = vadd.f32 %v1966, %v2052
  %v2054 = vpop.f32.mrf.mxu0
  %v2055 = vadd.f32 %v1968, %v2054
  %2056 = vmatmul.bf16.gmra.mxu0 %v1846
  %v2057 = vpop.f32.mrf.mxu0
  %v2058 = vadd.f32 %v1971, %v2057
  %v2059 = vpop.f32.mrf.mxu0
  %v2060 = vadd.f32 %v1973, %v2059
  %2061 = vmatmul.bf16.gmra.mxu0 %v1847
  %v2062 = vpop.f32.mrf.mxu0
  %v2063 = vadd.f32 %v1976, %v2062
  %v2064 = vpop.f32.mrf.mxu0
  %v2065 = vadd.f32 %v1978, %v2064
  %2066 = vdwg.mxu0
  %v2067 = vld [vmem:[#allocation3] sm:$0xe]
  %s2068 = scalar_lea.vmem %s3, 128
  %v2069 = vld [vmem:[%s2068] sm:$0xf]
  %v2070 = vld [vmem:[%s2068 + $0x4] sm:$0xf]
  %v2071 = vld [vmem:[%s2068 + $0x8] sm:$0xf]
  %v2072 = vld [vmem:[%s2068 + $0xc] sm:$0xf]
  %v2073 = vld [vmem:[%s2068 + $0x10] sm:$0xf]
  %v2074 = vld [vmem:[%s2068 + $0x14] sm:$0xf]
  %v2075 = vld [vmem:[%s2068 + $0x18] sm:$0xf]
  %v2076 = vld [vmem:[%s2068 + $0x1c] sm:$0xf]
  %v2077 = vld [vmem:[%s2068 + $0x20] sm:$0xf]
  %v2078 = vld [vmem:[%s2068 + $0x24] sm:$0xf]
  %v2079 = vld [vmem:[%s2068 + $0x28] sm:$0xf]
  %v2080 = vld [vmem:[%s2068 + $0x2c] sm:$0xf]
  %v2081 = vld [vmem:[%s2068 + $0x30] sm:$0xf]
  %v2082 = vld [vmem:[%s2068 + $0x34] sm:$0xf]
  %v2083 = vld [vmem:[%s2068 + $0x38] sm:$0xf]
  %v2084 = vld [vmem:[%s2068 + $0x3c] sm:$0xf]
  %v2086 = vunpack.c.l.b16 %v2067
  %v2087 = vpack.c.b16 %v1833, %v2086
  %vm2088 = vcmask 1046528
  %v2089 = vrot.slane %v2087, 1
  %v2090 = vrot.slane %v1844, 1
  %v2091 = vsel %vm2088, %v2089, %v2090
  %v2092 = vrot.slane %v1845, 1
  %v2093 = vsel %vm2088, %v2090, %v2092
  %v2094 = vrot.slane %v1846, 1
  %v2095 = vsel %vm2088, %v2092, %v2094
  %v2096 = vrot.slane %v1847, 1
  %v2097 = vsel %vm2088, %v2094, %v2096
  %v2098 = vrot.slane %v1848, 1
  %v2099 = vsel %vm2088, %v2096, %v2098
  %v2121 = vunpack.c.l.b16 %v2069
  %v2122 = vunpack.c.l.b16 %v2070
  %v2123 = vunpack.c.l.b16 %v2071
  %v2124 = vunpack.c.l.b16 %v2072
  %v2125 = vunpack.c.l.b16 %v2073
  %v2126 = vunpack.c.l.b16 %v2074
  %v2127 = vunpack.c.l.b16 %v2075
  %v2128 = vunpack.c.l.b16 %v2076
  %v2129 = vunpack.c.l.b16 %v2077
  %v2130 = vunpack.c.l.b16 %v2078
  %v2131 = vunpack.c.l.b16 %v2079
  %v2132 = vunpack.c.l.b16 %v2080
  %v2133 = vunpack.c.l.b16 %v2081
  %v2134 = vunpack.c.l.b16 %v2082
  %v2135 = vunpack.c.l.b16 %v2083
  %v2136 = vunpack.c.l.b16 %v2084
  %v2137 = vpack.c.b16 %v2122, %v2121
  %v2138 = vpack.c.b16 %v2124, %v2123
  %v2139 = vpack.c.b16 %v2126, %v2125
  %v2140 = vpack.c.b16 %v2128, %v2127
  %v2141 = vpack.c.b16 %v2130, %v2129
  %v2142 = vpack.c.b16 %v2132, %v2131
  %v2143 = vpack.c.b16 %v2134, %v2133
  %v2144 = vpack.c.b16 %v2136, %v2135
  %2153 = vmatpush.bf16.msra.mxu0 %v2144
  %2154 = vmatpush.bf16.msra.mxu0 %v2143
  %2155 = vmatpush.bf16.msra.mxu0 %v2142
  %2156 = vmatpush.bf16.msra.mxu0 %v2141
  %2157 = vmatpush.bf16.msra.mxu0 %v2140
  %2158 = vmatpush.bf16.msra.mxu0 %v2139
  %2159 = vmatpush.bf16.msra.mxu0 %v2138
  %2160 = vmatpush.bf16.msra.mxu0 %v2137
  %2161 = vmatmul.bf16.gmra.mxu0 %v2091
  %v2162 = vpop.f32.mrf.mxu0
  %v2163 = vadd.f32 0.0, %v2162
  %v2164 = vpop.f32.mrf.mxu0
  %v2165 = vadd.f32 0.0, %v2164
  %2166 = vmatmul.bf16.gmra.mxu0 %v2093
  %v2167 = vpop.f32.mrf.mxu0
  %v2168 = vadd.f32 0.0, %v2167
  %v2169 = vpop.f32.mrf.mxu0
  %v2170 = vadd.f32 0.0, %v2169
  %2171 = vmatmul.bf16.gmra.mxu0 %v2095
  %v2172 = vpop.f32.mrf.mxu0
  %v2173 = vadd.f32 0.0, %v2172
  %v2174 = vpop.f32.mrf.mxu0
  %v2175 = vadd.f32 0.0, %v2174
  %2176 = vmatmul.bf16.gmra.mxu0 %v2097
  %v2177 = vpop.f32.mrf.mxu0
  %v2178 = vadd.f32 0.0, %v2177
  %v2179 = vpop.f32.mrf.mxu0
  %v2180 = vadd.f32 0.0, %v2179
  %2181 = vmatmul.bf16.gmra.mxu0 %v2099
  %v2182 = vpop.f32.mrf.mxu0
  %v2183 = vadd.f32 0.0, %v2182
  %v2184 = vpop.f32.mrf.mxu0
  %v2185 = vadd.f32 0.0, %v2184
  %2186 = vdwg.mxu0
  %v2187 = vadd.f32 %v2043, %v2163
  %v2188 = vadd.f32 %v2045, %v2165
  %v2189 = vadd.f32 %v2048, %v2168
  %v2190 = vadd.f32 %v2050, %v2170
  %v2191 = vadd.f32 %v2053, %v2173
  %v2192 = vadd.f32 %v2055, %v2175
  %v2193 = vadd.f32 %v2058, %v2178
  %v2194 = vadd.f32 %v2060, %v2180
  %v2195 = vadd.f32 %v2063, %v2183
  %v2196 = vadd.f32 %v2065, %v2185
  %v2197 = vld [vmem:[#allocation3] sm:$0x8]
  %v2198 = vld [vmem:[#allocation3 + $0x28] sm:$0x7]
  %s2199 = scalar_lea.vmem %s3, 192
  %v2200 = vld [vmem:[%s2199] sm:$0xf]
  %v2201 = vld [vmem:[%s2199 + $0x4] sm:$0xf]
  %v2202 = vld [vmem:[%s2199 + $0x8] sm:$0xf]
  %v2203 = vld [vmem:[%s2199 + $0xc] sm:$0xf]
  %v2204 = vld [vmem:[%s2199 + $0x10] sm:$0xf]
  %v2205 = vld [vmem:[%s2199 + $0x14] sm:$0xf]
  %v2206 = vld [vmem:[%s2199 + $0x18] sm:$0xf]
  %v2207 = vld [vmem:[%s2199 + $0x1c] sm:$0xf]
  %v2208 = vld [vmem:[%s2199 + $0x20] sm:$0xf]
  %v2209 = vld [vmem:[%s2199 + $0x24] sm:$0xf]
  %v2210 = vld [vmem:[%s2199 + $0x28] sm:$0xf]
  %v2211 = vld [vmem:[%s2199 + $0x2c] sm:$0xf]
  %v2212 = vld [vmem:[%s2199 + $0x30] sm:$0xf]
  %v2213 = vld [vmem:[%s2199 + $0x34] sm:$0xf]
  %v2214 = vld [vmem:[%s2199 + $0x38] sm:$0xf]
  %v2215 = vld [vmem:[%s2199 + $0x3c] sm:$0xf]
  %v2218 = vunpack.c.l.b16 %v2197
  %v2219 = vunpack.c.l.b16 %v2198
  %v2220 = vpack.c.b16 %v1833, %v2218
  %v2221 = vpack.c.b16 %v2219, %v2219
  %v2222 = vrot.slane %v2220, 3
  %v2223 = vrot.slane %v1844, 3
  %v2224 = vsel %vm1475, %v2222, %v2223
  %v2225 = vrot.slane %v1845, 3
  %v2226 = vsel %vm1475, %v2223, %v2225
  %v2227 = vrot.slane %v1846, 3
  %v2228 = vsel %vm1475, %v2225, %v2227
  %v2229 = vrot.slane %v1847, 3
  %v2230 = vsel %vm1475, %v2227, %v2229
  %v2231 = vrot.slane %v2221, 3
  %v2232 = vsel %vm1475, %v2229, %v2231
  %v2254 = vunpack.c.l.b16 %v2200
  %v2255 = vunpack.c.l.b16 %v2201
  %v2256 = vunpack.c.l.b16 %v2202
  %v2257 = vunpack.c.l.b16 %v2203
  %v2258 = vunpack.c.l.b16 %v2204
  %v2259 = vunpack.c.l.b16 %v2205
  %v2260 = vunpack.c.l.b16 %v2206
  %v2261 = vunpack.c.l.b16 %v2207
  %v2262 = vunpack.c.l.b16 %v2208
  %v2263 = vunpack.c.l.b16 %v2209
  %v2264 = vunpack.c.l.b16 %v2210
  %v2265 = vunpack.c.l.b16 %v2211
  %v2266 = vunpack.c.l.b16 %v2212
  %v2267 = vunpack.c.l.b16 %v2213
  %v2268 = vunpack.c.l.b16 %v2214
  %v2269 = vunpack.c.l.b16 %v2215
  %v2270 = vpack.c.b16 %v2255, %v2254
  %v2271 = vpack.c.b16 %v2257, %v2256
  %v2272 = vpack.c.b16 %v2259, %v2258
  %v2273 = vpack.c.b16 %v2261, %v2260
  %v2274 = vpack.c.b16 %v2263, %v2262
  %v2275 = vpack.c.b16 %v2265, %v2264
  %v2276 = vpack.c.b16 %v2267, %v2266
  %v2277 = vpack.c.b16 %v2269, %v2268
  %2286 = vmatpush.bf16.msra.mxu0 %v2277
  %2287 = vmatpush.bf16.msra.mxu0 %v2276
  %2288 = vmatpush.bf16.msra.mxu0 %v2275
  %2289 = vmatpush.bf16.msra.mxu0 %v2274
  %2290 = vmatpush.bf16.msra.mxu0 %v2273
  %2291 = vmatpush.bf16.msra.mxu0 %v2272
  %2292 = vmatpush.bf16.msra.mxu0 %v2271
  %2293 = vmatpush.bf16.msra.mxu0 %v2270
  %2294 = vmatmul.bf16.gmra.mxu0 %v2224
  %v2295 = vpop.f32.mrf.mxu0
  %v2296 = vadd.f32 0.0, %v2295
  %v2297 = vpop.f32.mrf.mxu0
  %v2298 = vadd.f32 0.0, %v2297
  %2299 = vmatmul.bf16.gmra.mxu0 %v2226
  %v2300 = vpop.f32.mrf.mxu0
  %v2301 = vadd.f32 0.0, %v2300
  %v2302 = vpop.f32.mrf.mxu0
  %v2303 = vadd.f32 0.0, %v2302
  %2304 = vmatmul.bf16.gmra.mxu0 %v2228
  %v2305 = vpop.f32.mrf.mxu0
  %v2306 = vadd.f32 0.0, %v2305
  %v2307 = vpop.f32.mrf.mxu0
  %v2308 = vadd.f32 0.0, %v2307
  %2309 = vmatmul.bf16.gmra.mxu0 %v2230
  %v2310 = vpop.f32.mrf.mxu0
  %v2311 = vadd.f32 0.0, %v2310
  %v2312 = vpop.f32.mrf.mxu0
  %v2313 = vadd.f32 0.0, %v2312
  %2314 = vmatmul.bf16.gmra.mxu0 %v2232
  %v2315 = vpop.f32.mrf.mxu0
  %v2316 = vadd.f32 0.0, %v2315
  %v2317 = vpop.f32.mrf.mxu0
  %v2318 = vadd.f32 0.0, %v2317
  %2319 = vdwg.mxu0
  %v2320 = vadd.f32 %v2187, %v2296
  %v2321 = vadd.f32 %v2188, %v2298
  %v2322 = vadd.f32 %v2189, %v2301
  %v2323 = vadd.f32 %v2190, %v2303
  %v2324 = vadd.f32 %v2191, %v2306
  %v2325 = vadd.f32 %v2192, %v2308
  %v2326 = vadd.f32 %v2193, %v2311
  %v2327 = vadd.f32 %v2194, %v2313
  %v2328 = vadd.f32 %v2195, %v2316
  %v2329 = vadd.f32 %v2196, %v2318
  %v2330 = vld [vmem:[#allocation3 + $0x28] sm:$0xf]
  %s2331 = scalar_lea.vmem %s3, 256
  %v2332 = vld [vmem:[%s2331] sm:$0xf]
  %v2333 = vld [vmem:[%s2331 + $0x4] sm:$0xf]
  %v2334 = vld [vmem:[%s2331 + $0x8] sm:$0xf]
  %v2335 = vld [vmem:[%s2331 + $0xc] sm:$0xf]
  %v2336 = vld [vmem:[%s2331 + $0x10] sm:$0xf]
  %v2337 = vld [vmem:[%s2331 + $0x14] sm:$0xf]
  %v2338 = vld [vmem:[%s2331 + $0x18] sm:$0xf]
  %v2339 = vld [vmem:[%s2331 + $0x1c] sm:$0xf]
  %v2340 = vld [vmem:[%s2331 + $0x20] sm:$0xf]
  %v2341 = vld [vmem:[%s2331 + $0x24] sm:$0xf]
  %v2342 = vld [vmem:[%s2331 + $0x28] sm:$0xf]
  %v2343 = vld [vmem:[%s2331 + $0x2c] sm:$0xf]
  %v2344 = vld [vmem:[%s2331 + $0x30] sm:$0xf]
  %v2345 = vld [vmem:[%s2331 + $0x34] sm:$0xf]
  %v2346 = vld [vmem:[%s2331 + $0x38] sm:$0xf]
  %v2347 = vld [vmem:[%s2331 + $0x3c] sm:$0xf]
  %v2349 = vunpack.c.l.b16 %v2330
  %v2350 = vpack.c.b16 %v2349, %v2349
  %v2352 = vshrl.u32 %v2220, 16
  %v2354 = vrot.slane %v2352, 3
  %v2355 = vshll.u32 %v2220, 16
  %v2357 = vrot.slane %v2355, 4
  %v2358 = vor.u32 %v2354, %v2357
  %v2359 = vrot.slane %v1861, 3
  %v2360 = vrot.slane %v1857, 4
  %v2361 = vor.u32 %v2359, %v2360
  %v2362 = vsel %vm1605, %v2358, %v2361
  %v2363 = vrot.slane %v1869, 3
  %v2364 = vrot.slane %v1865, 4
  %v2365 = vor.u32 %v2363, %v2364
  %v2366 = vsel %vm1605, %v2361, %v2365
  %v2367 = vrot.slane %v1877, 3
  %v2368 = vrot.slane %v1873, 4
  %v2369 = vor.u32 %v2367, %v2368
  %v2370 = vsel %vm1605, %v2365, %v2369
  %v2371 = vrot.slane %v1885, 3
  %v2372 = vrot.slane %v1881, 4
  %v2373 = vor.u32 %v2371, %v2372
  %v2374 = vsel %vm1605, %v2369, %v2373
  %v2376 = vshrl.u32 %v2350, 16
  %v2378 = vrot.slane %v2376, 3
  %v2379 = vshll.u32 %v2350, 16
  %v2381 = vrot.slane %v2379, 4
  %v2382 = vor.u32 %v2378, %v2381
  %v2383 = vsel %vm1605, %v2373, %v2382
  %v2405 = vunpack.c.l.b16 %v2332
  %v2406 = vunpack.c.l.b16 %v2333
  %v2407 = vunpack.c.l.b16 %v2334
  %v2408 = vunpack.c.l.b16 %v2335
  %v2409 = vunpack.c.l.b16 %v2336
  %v2410 = vunpack.c.l.b16 %v2337
  %v2411 = vunpack.c.l.b16 %v2338
  %v2412 = vunpack.c.l.b16 %v2339
  %v2413 = vunpack.c.l.b16 %v2340
  %v2414 = vunpack.c.l.b16 %v2341
  %v2415 = vunpack.c.l.b16 %v2342
  %v2416 = vunpack.c.l.b16 %v2343
  %v2417 = vunpack.c.l.b16 %v2344
  %v2418 = vunpack.c.l.b16 %v2345
  %v2419 = vunpack.c.l.b16 %v2346
  %v2420 = vunpack.c.l.b16 %v2347
  %v2421 = vpack.c.b16 %v2406, %v2405
  %v2422 = vpack.c.b16 %v2408, %v2407
  %v2423 = vpack.c.b16 %v2410, %v2409
  %v2424 = vpack.c.b16 %v2412, %v2411
  %v2425 = vpack.c.b16 %v2414, %v2413
  %v2426 = vpack.c.b16 %v2416, %v2415
  %v2427 = vpack.c.b16 %v2418, %v2417
  %v2428 = vpack.c.b16 %v2420, %v2419
  %2437 = vmatpush.bf16.msra.mxu0 %v2428
  %2438 = vmatpush.bf16.msra.mxu0 %v2427
  %2439 = vmatpush.bf16.msra.mxu0 %v2426
  %2440 = vmatpush.bf16.msra.mxu0 %v2425
  %2441 = vmatpush.bf16.msra.mxu0 %v2424
  %2442 = vmatpush.bf16.msra.mxu0 %v2423
  %2443 = vmatpush.bf16.msra.mxu0 %v2422
  %2444 = vmatpush.bf16.msra.mxu0 %v2421
  %2445 = vmatmul.bf16.gmra.mxu0 %v2362
  %v2446 = vpop.f32.mrf.mxu0
  %v2447 = vadd.f32 0.0, %v2446
  %v2448 = vpop.f32.mrf.mxu0
  %v2449 = vadd.f32 0.0, %v2448
  %2450 = vmatmul.bf16.gmra.mxu0 %v2366
  %v2451 = vpop.f32.mrf.mxu0
  %v2452 = vadd.f32 0.0, %v2451
  %v2453 = vpop.f32.mrf.mxu0
  %v2454 = vadd.f32 0.0, %v2453
  %2455 = vmatmul.bf16.gmra.mxu0 %v2370
  %v2456 = vpop.f32.mrf.mxu0
  %v2457 = vadd.f32 0.0, %v2456
  %v2458 = vpop.f32.mrf.mxu0
  %v2459 = vadd.f32 0.0, %v2458
  %2460 = vmatmul.bf16.gmra.mxu0 %v2374
  %v2461 = vpop.f32.mrf.mxu0
  %v2462 = vadd.f32 0.0, %v2461
  %v2463 = vpop.f32.mrf.mxu0
  %v2464 = vadd.f32 0.0, %v2463
  %2465 = vmatmul.bf16.gmra.mxu0 %v2383
  %v2466 = vpop.f32.mrf.mxu0
  %v2467 = vadd.f32 0.0, %v2466
  %v2468 = vpop.f32.mrf.mxu0
  %v2469 = vadd.f32 0.0, %v2468
  %2470 = vdwg.mxu0
  %v2471 = vadd.f32 %v2320, %v2447
  %v2472 = vadd.f32 %v2321, %v2449
  %v2473 = vadd.f32 %v2322, %v2452
  %v2474 = vadd.f32 %v2323, %v2454
  %v2475 = vadd.f32 %v2324, %v2457
  %v2476 = vadd.f32 %v2325, %v2459
  %v2477 = vadd.f32 %v2326, %v2462
  %v2478 = vadd.f32 %v2327, %v2464
  %v2479 = vadd.f32 %v2328, %v2467
  %v2480 = vadd.f32 %v2329, %v2469
  %s2481 = scalar_lea.vmem %s3, 320
  %v2482 = vld [vmem:[%s2481] sm:$0xf]
  %v2483 = vld [vmem:[%s2481 + $0x4] sm:$0xf]
  %v2484 = vld [vmem:[%s2481 + $0x8] sm:$0xf]
  %v2485 = vld [vmem:[%s2481 + $0xc] sm:$0xf]
  %v2486 = vld [vmem:[%s2481 + $0x10] sm:$0xf]
  %v2487 = vld [vmem:[%s2481 + $0x14] sm:$0xf]
  %v2488 = vld [vmem:[%s2481 + $0x18] sm:$0xf]
  %v2489 = vld [vmem:[%s2481 + $0x1c] sm:$0xf]
  %v2490 = vld [vmem:[%s2481 + $0x20] sm:$0xf]
  %v2491 = vld [vmem:[%s2481 + $0x24] sm:$0xf]
  %v2492 = vld [vmem:[%s2481 + $0x28] sm:$0xf]
  %v2493 = vld [vmem:[%s2481 + $0x2c] sm:$0xf]
  %v2494 = vld [vmem:[%s2481 + $0x30] sm:$0xf]
  %v2495 = vld [vmem:[%s2481 + $0x34] sm:$0xf]
  %v2496 = vld [vmem:[%s2481 + $0x38] sm:$0xf]
  %v2497 = vld [vmem:[%s2481 + $0x3c] sm:$0xf]
  %v2498 = vpack.c.b16 %v1834, %v1833
  %v2499 = vpack.c.b16 %v1836, %v1835
  %v2500 = vpack.c.b16 %v1838, %v1837
  %v2501 = vpack.c.b16 %v1840, %v1839
  %v2502 = vpack.c.b16 %v2349, %v1841
  %v2524 = vunpack.c.l.b16 %v2482
  %v2525 = vunpack.c.l.b16 %v2483
  %v2526 = vunpack.c.l.b16 %v2484
  %v2527 = vunpack.c.l.b16 %v2485
  %v2528 = vunpack.c.l.b16 %v2486
  %v2529 = vunpack.c.l.b16 %v2487
  %v2530 = vunpack.c.l.b16 %v2488
  %v2531 = vunpack.c.l.b16 %v2489
  %v2532 = vunpack.c.l.b16 %v2490
  %v2533 = vunpack.c.l.b16 %v2491
  %v2534 = vunpack.c.l.b16 %v2492
  %v2535 = vunpack.c.l.b16 %v2493
  %v2536 = vunpack.c.l.b16 %v2494
  %v2537 = vunpack.c.l.b16 %v2495
  %v2538 = vunpack.c.l.b16 %v2496
  %v2539 = vunpack.c.l.b16 %v2497
  %v2540 = vpack.c.b16 %v2525, %v2524
  %v2541 = vpack.c.b16 %v2527, %v2526
  %v2542 = vpack.c.b16 %v2529, %v2528
  %v2543 = vpack.c.b16 %v2531, %v2530
  %v2544 = vpack.c.b16 %v2533, %v2532
  %v2545 = vpack.c.b16 %v2535, %v2534
  %v2546 = vpack.c.b16 %v2537, %v2536
  %v2547 = vpack.c.b16 %v2539, %v2538
  %2556 = vmatpush.bf16.msra.mxu0 %v2547
  %2557 = vmatpush.bf16.msra.mxu0 %v2546
  %2558 = vmatpush.bf16.msra.mxu0 %v2545
  %2559 = vmatpush.bf16.msra.mxu0 %v2544
  %2560 = vmatpush.bf16.msra.mxu0 %v2543
  %2561 = vmatpush.bf16.msra.mxu0 %v2542
  %2562 = vmatpush.bf16.msra.mxu0 %v2541
  %2563 = vmatpush.bf16.msra.mxu0 %v2540
  %2564 = vmatmul.bf16.gmra.mxu0 %v2498
  %v2565 = vpop.f32.mrf.mxu0
  %v2566 = vadd.f32 0.0, %v2565
  %v2567 = vpop.f32.mrf.mxu0
  %v2568 = vadd.f32 0.0, %v2567
  %2569 = vmatmul.bf16.gmra.mxu0 %v2499
  %v2570 = vpop.f32.mrf.mxu0
  %v2571 = vadd.f32 0.0, %v2570
  %v2572 = vpop.f32.mrf.mxu0
  %v2573 = vadd.f32 0.0, %v2572
  %2574 = vmatmul.bf16.gmra.mxu0 %v2500
  %v2575 = vpop.f32.mrf.mxu0
  %v2576 = vadd.f32 0.0, %v2575
  %v2577 = vpop.f32.mrf.mxu0
  %v2578 = vadd.f32 0.0, %v2577
  %2579 = vmatmul.bf16.gmra.mxu0 %v2501
  %v2580 = vpop.f32.mrf.mxu0
  %v2581 = vadd.f32 0.0, %v2580
  %v2582 = vpop.f32.mrf.mxu0
  %v2583 = vadd.f32 0.0, %v2582
  %2584 = vmatmul.bf16.gmra.mxu0 %v2502
  %v2585 = vpop.f32.mrf.mxu0
  %v2586 = vadd.f32 0.0, %v2585
  %v2587 = vpop.f32.mrf.mxu0
  %v2588 = vadd.f32 0.0, %v2587
  %2589 = vdwg.mxu0
  %v2590 = vadd.f32 %v2471, %v2566
  %v2591 = vadd.f32 %v2472, %v2568
  %v2592 = vadd.f32 %v2473, %v2571
  %v2593 = vadd.f32 %v2474, %v2573
  %v2594 = vadd.f32 %v2475, %v2576
  %v2595 = vadd.f32 %v2476, %v2578
  %v2596 = vadd.f32 %v2477, %v2581
  %v2597 = vadd.f32 %v2478, %v2583
  %v2598 = vadd.f32 %v2479, %v2586
  %v2599 = vadd.f32 %v2480, %v2588
  %v2600 = vld [vmem:[#allocation3 + $0x4] sm:$0xc]
  %v2601 = vld [vmem:[#allocation3 + $0x8] sm:$0xf]
  %v2602 = vld [vmem:[#allocation3 + $0xc] sm:$0xf]
  %v2603 = vld [vmem:[#allocation3 + $0x10] sm:$0xf]
  %v2604 = vld [vmem:[#allocation3 + $0x14] sm:$0xf]
  %v2605 = vld [vmem:[#allocation3 + $0x18] sm:$0xf]
  %v2606 = vld [vmem:[#allocation3 + $0x1c] sm:$0xf]
  %v2607 = vld [vmem:[#allocation3 + $0x20] sm:$0xf]
  %v2608 = vld [vmem:[#allocation3 + $0x24] sm:$0xf]
  %v2609 = vld [vmem:[#allocation3 + $0x28] sm:$0xf]
  %v2610 = vld [vmem:[#allocation3 + $0x2c] sm:$0x3]
  %s2611 = scalar_lea.vmem %s3, 384
  %v2612 = vld [vmem:[%s2611] sm:$0xf]
  %v2613 = vld [vmem:[%s2611 + $0x4] sm:$0xf]
  %v2614 = vld [vmem:[%s2611 + $0x8] sm:$0xf]
  %v2615 = vld [vmem:[%s2611 + $0xc] sm:$0xf]
  %v2616 = vld [vmem:[%s2611 + $0x10] sm:$0xf]
  %v2617 = vld [vmem:[%s2611 + $0x14] sm:$0xf]
  %v2618 = vld [vmem:[%s2611 + $0x18] sm:$0xf]
  %v2619 = vld [vmem:[%s2611 + $0x1c] sm:$0xf]
  %v2620 = vld [vmem:[%s2611 + $0x20] sm:$0xf]
  %v2621 = vld [vmem:[%s2611 + $0x24] sm:$0xf]
  %v2622 = vld [vmem:[%s2611 + $0x28] sm:$0xf]
  %v2623 = vld [vmem:[%s2611 + $0x2c] sm:$0xf]
  %v2624 = vld [vmem:[%s2611 + $0x30] sm:$0xf]
  %v2625 = vld [vmem:[%s2611 + $0x34] sm:$0xf]
  %v2626 = vld [vmem:[%s2611 + $0x38] sm:$0xf]
  %v2627 = vld [vmem:[%s2611 + $0x3c] sm:$0xf]
  %v2639 = vunpack.c.l.b16 %v2600
  %v2640 = vunpack.c.l.b16 %v2601
  %v2641 = vunpack.c.l.b16 %v2602
  %v2642 = vunpack.c.l.b16 %v2603
  %v2643 = vunpack.c.l.b16 %v2604
  %v2644 = vunpack.c.l.b16 %v2605
  %v2645 = vunpack.c.l.b16 %v2606
  %v2646 = vunpack.c.l.b16 %v2607
  %v2647 = vunpack.c.l.b16 %v2608
  %v2648 = vunpack.c.l.b16 %v2609
  %v2649 = vunpack.c.l.b16 %v2610
  %v2650 = vpack.c.b16 %v2640, %v2639
  %v2651 = vpack.c.b16 %v2642, %v2641
  %v2652 = vpack.c.b16 %v2644, %v2643
  %v2653 = vpack.c.b16 %v2646, %v2645
  %v2654 = vpack.c.b16 %v2648, %v2647
  %v2655 = vpack.c.b16 %v2649, %v2649
  %vm2656 = vcmask 1045504
  %v2657 = vrot.slane %v2650, 2
  %v2658 = vrot.slane %v2651, 2
  %v2659 = vsel %vm2656, %v2657, %v2658
  %v2660 = vrot.slane %v2652, 2
  %v2661 = vsel %vm2656, %v2658, %v2660
  %v2662 = vrot.slane %v2653, 2
  %v2663 = vsel %vm2656, %v2660, %v2662
  %v2664 = vrot.slane %v2654, 2
  %v2665 = vsel %vm2656, %v2662, %v2664
  %v2666 = vrot.slane %v2655, 2
  %v2667 = vsel %vm2656, %v2664, %v2666
  %v2689 = vunpack.c.l.b16 %v2612
  %v2690 = vunpack.c.l.b16 %v2613
  %v2691 = vunpack.c.l.b16 %v2614
  %v2692 = vunpack.c.l.b16 %v2615
  %v2693 = vunpack.c.l.b16 %v2616
  %v2694 = vunpack.c.l.b16 %v2617
  %v2695 = vunpack.c.l.b16 %v2618
  %v2696 = vunpack.c.l.b16 %v2619
  %v2697 = vunpack.c.l.b16 %v2620
  %v2698 = vunpack.c.l.b16 %v2621
  %v2699 = vunpack.c.l.b16 %v2622
  %v2700 = vunpack.c.l.b16 %v2623
  %v2701 = vunpack.c.l.b16 %v2624
  %v2702 = vunpack.c.l.b16 %v2625
  %v2703 = vunpack.c.l.b16 %v2626
  %v2704 = vunpack.c.l.b16 %v2627
  %v2705 = vpack.c.b16 %v2690, %v2689
  %v2706 = vpack.c.b16 %v2692, %v2691
  %v2707 = vpack.c.b16 %v2694, %v2693
  %v2708 = vpack.c.b16 %v2696, %v2695
  %v2709 = vpack.c.b16 %v2698, %v2697
  %v2710 = vpack.c.b16 %v2700, %v2699
  %v2711 = vpack.c.b16 %v2702, %v2701
  %v2712 = vpack.c.b16 %v2704, %v2703
  %2721 = vmatpush.bf16.msra.mxu0 %v2712
  %2722 = vmatpush.bf16.msra.mxu0 %v2711
  %2723 = vmatpush.bf16.msra.mxu0 %v2710
  %2724 = vmatpush.bf16.msra.mxu0 %v2709
  %2725 = vmatpush.bf16.msra.mxu0 %v2708
  %2726 = vmatpush.bf16.msra.mxu0 %v2707
  %2727 = vmatpush.bf16.msra.mxu0 %v2706
  %2728 = vmatpush.bf16.msra.mxu0 %v2705
  %2729 = vmatmul.bf16.gmra.mxu0 %v2659
  %v2730 = vpop.f32.mrf.mxu0
  %v2731 = vadd.f32 0.0, %v2730
  %v2732 = vpop.f32.mrf.mxu0
  %v2733 = vadd.f32 0.0, %v2732
  %2734 = vmatmul.bf16.gmra.mxu0 %v2661
  %v2735 = vpop.f32.mrf.mxu0
  %v2736 = vadd.f32 0.0, %v2735
  %v2737 = vpop.f32.mrf.mxu0
  %v2738 = vadd.f32 0.0, %v2737
  %2739 = vmatmul.bf16.gmra.mxu0 %v2663
  %v2740 = vpop.f32.mrf.mxu0
  %v2741 = vadd.f32 0.0, %v2740
  %v2742 = vpop.f32.mrf.mxu0
  %v2743 = vadd.f32 0.0, %v2742
  %2744 = vmatmul.bf16.gmra.mxu0 %v2665
  %v2745 = vpop.f32.mrf.mxu0
  %v2746 = vadd.f32 0.0, %v2745
  %v2747 = vpop.f32.mrf.mxu0
  %v2748 = vadd.f32 0.0, %v2747
  %2749 = vmatmul.bf16.gmra.mxu0 %v2667
  %v2750 = vpop.f32.mrf.mxu0
  %v2751 = vadd.f32 0.0, %v2750
  %v2752 = vpop.f32.mrf.mxu0
  %v2753 = vadd.f32 0.0, %v2752
  %2754 = vdwg.mxu0
  %v2755 = vadd.f32 %v2590, %v2731
  %v2756 = vadd.f32 %v2591, %v2733
  %v2757 = vadd.f32 %v2592, %v2736
  %v2758 = vadd.f32 %v2593, %v2738
  %v2759 = vadd.f32 %v2594, %v2741
  %v2760 = vadd.f32 %v2595, %v2743
  %v2761 = vadd.f32 %v2596, %v2746
  %v2762 = vadd.f32 %v2597, %v2748
  %v2763 = vadd.f32 %v2598, %v2751
  %v2764 = vadd.f32 %v2599, %v2753
  %v2765 = vld [vmem:[#allocation3 + $0x2c] sm:$0x7]
  %s2766 = scalar_lea.vmem %s3, 448
  %v2767 = vld [vmem:[%s2766] sm:$0xf]
  %v2768 = vld [vmem:[%s2766 + $0x4] sm:$0xf]
  %v2769 = vld [vmem:[%s2766 + $0x8] sm:$0xf]
  %v2770 = vld [vmem:[%s2766 + $0xc] sm:$0xf]
  %v2771 = vld [vmem:[%s2766 + $0x10] sm:$0xf]
  %v2772 = vld [vmem:[%s2766 + $0x14] sm:$0xf]
  %v2773 = vld [vmem:[%s2766 + $0x18] sm:$0xf]
  %v2774 = vld [vmem:[%s2766 + $0x1c] sm:$0xf]
  %v2775 = vld [vmem:[%s2766 + $0x20] sm:$0xf]
  %v2776 = vld [vmem:[%s2766 + $0x24] sm:$0xf]
  %v2777 = vld [vmem:[%s2766 + $0x28] sm:$0xf]
  %v2778 = vld [vmem:[%s2766 + $0x2c] sm:$0xf]
  %v2779 = vld [vmem:[%s2766 + $0x30] sm:$0xf]
  %v2780 = vld [vmem:[%s2766 + $0x34] sm:$0xf]
  %v2781 = vld [vmem:[%s2766 + $0x38] sm:$0xf]
  %v2782 = vld [vmem:[%s2766 + $0x3c] sm:$0xf]
  %v2784 = vunpack.c.l.b16 %v2765
  %v2785 = vpack.c.b16 %v2784, %v2784
  %vm2786 = vsmask.f32 5376
  %v2788 = vshrl.u32 %v2650, 16
  %v2790 = vrot.slane %v2788, 2
  %v2791 = vshll.u32 %v2650, 16
  %v2793 = vrot.slane %v2791, 3
  %v2794 = vor.u32 %v2790, %v2793
  %v2796 = vshrl.u32 %v2651, 16
  %v2798 = vrot.slane %v2796, 2
  %v2799 = vshll.u32 %v2651, 16
  %v2801 = vrot.slane %v2799, 3
  %v2802 = vor.u32 %v2798, %v2801
  %v2803 = vsel %vm2786, %v2794, %v2802
  %v2805 = vshrl.u32 %v2652, 16
  %v2807 = vrot.slane %v2805, 2
  %v2808 = vshll.u32 %v2652, 16
  %v2810 = vrot.slane %v2808, 3
  %v2811 = vor.u32 %v2807, %v2810
  %v2812 = vsel %vm2786, %v2802, %v2811
  %v2814 = vshrl.u32 %v2653, 16
  %v2816 = vrot.slane %v2814, 2
  %v2817 = vshll.u32 %v2653, 16
  %v2819 = vrot.slane %v2817, 3
  %v2820 = vor.u32 %v2816, %v2819
  %v2821 = vsel %vm2786, %v2811, %v2820
  %v2823 = vshrl.u32 %v2654, 16
  %v2825 = vrot.slane %v2823, 2
  %v2826 = vshll.u32 %v2654, 16
  %v2828 = vrot.slane %v2826, 3
  %v2829 = vor.u32 %v2825, %v2828
  %v2830 = vsel %vm2786, %v2820, %v2829
  %v2832 = vshrl.u32 %v2785, 16
  %v2834 = vrot.slane %v2832, 2
  %v2835 = vshll.u32 %v2785, 16
  %v2837 = vrot.slane %v2835, 3
  %v2838 = vor.u32 %v2834, %v2837
  %v2839 = vsel %vm2786, %v2829, %v2838
  %v2861 = vunpack.c.l.b16 %v2767
  %v2862 = vunpack.c.l.b16 %v2768
  %v2863 = vunpack.c.l.b16 %v2769
  %v2864 = vunpack.c.l.b16 %v2770
  %v2865 = vunpack.c.l.b16 %v2771
  %v2866 = vunpack.c.l.b16 %v2772
  %v2867 = vunpack.c.l.b16 %v2773
  %v2868 = vunpack.c.l.b16 %v2774
  %v2869 = vunpack.c.l.b16 %v2775
  %v2870 = vunpack.c.l.b16 %v2776
  %v2871 = vunpack.c.l.b16 %v2777
  %v2872 = vunpack.c.l.b16 %v2778
  %v2873 = vunpack.c.l.b16 %v2779
  %v2874 = vunpack.c.l.b16 %v2780
  %v2875 = vunpack.c.l.b16 %v2781
  %v2876 = vunpack.c.l.b16 %v2782
  %v2877 = vpack.c.b16 %v2862, %v2861
  %v2878 = vpack.c.b16 %v2864, %v2863
  %v2879 = vpack.c.b16 %v2866, %v2865
  %v2880 = vpack.c.b16 %v2868, %v2867
  %v2881 = vpack.c.b16 %v2870, %v2869
  %v2882 = vpack.c.b16 %v2872, %v2871
  %v2883 = vpack.c.b16 %v2874, %v2873
  %v2884 = vpack.c.b16 %v2876, %v2875
  %2893 = vmatpush.bf16.msra.mxu0 %v2884
  %2894 = vmatpush.bf16.msra.mxu0 %v2883
  %2895 = vmatpush.bf16.msra.mxu0 %v2882
  %2896 = vmatpush.bf16.msra.mxu0 %v2881
  %2897 = vmatpush.bf16.msra.mxu0 %v2880
  %2898 = vmatpush.bf16.msra.mxu0 %v2879
  %2899 = vmatpush.bf16.msra.mxu0 %v2878
  %2900 = vmatpush.bf16.msra.mxu0 %v2877
  %2901 = vmatmul.bf16.gmra.mxu0 %v2803
  %v2902 = vpop.f32.mrf.mxu0
  %v2903 = vadd.f32 0.0, %v2902
  %v2904 = vpop.f32.mrf.mxu0
  %v2905 = vadd.f32 0.0, %v2904
  %2906 = vmatmul.bf16.gmra.mxu0 %v2812
  %v2907 = vpop.f32.mrf.mxu0
  %v2908 = vadd.f32 0.0, %v2907
  %v2909 = vpop.f32.mrf.mxu0
  %v2910 = vadd.f32 0.0, %v2909
  %2911 = vmatmul.bf16.gmra.mxu0 %v2821
  %v2912 = vpop.f32.mrf.mxu0
  %v2913 = vadd.f32 0.0, %v2912
  %v2914 = vpop.f32.mrf.mxu0
  %v2915 = vadd.f32 0.0, %v2914
  %2916 = vmatmul.bf16.gmra.mxu0 %v2830
  %v2917 = vpop.f32.mrf.mxu0
  %v2918 = vadd.f32 0.0, %v2917
  %v2919 = vpop.f32.mrf.mxu0
  %v2920 = vadd.f32 0.0, %v2919
  %2921 = vmatmul.bf16.gmra.mxu0 %v2839
  %v2922 = vpop.f32.mrf.mxu0
  %v2923 = vadd.f32 0.0, %v2922
  %v2924 = vpop.f32.mrf.mxu0
  %v2925 = vadd.f32 0.0, %v2924
  %2926 = vdwg.mxu0
  %v2927 = vadd.f32 %v2755, %v2903
  %v2928 = vadd.f32 %v2756, %v2905
  %v2929 = vadd.f32 %v2757, %v2908
  %v2930 = vadd.f32 %v2758, %v2910
  %v2931 = vadd.f32 %v2759, %v2913
  %v2932 = vadd.f32 %v2760, %v2915
  %v2933 = vadd.f32 %v2761, %v2918
  %v2934 = vadd.f32 %v2762, %v2920
  %v2935 = vadd.f32 %v2763, %v2923
  %v2936 = vadd.f32 %v2764, %v2925
  %v2937 = vld [vmem:[#allocation3 + $0x4] sm:$0x8]
  %s2938 = scalar_lea.vmem %s3, 512
  %v2939 = vld [vmem:[%s2938] sm:$0xf]
  %v2940 = vld [vmem:[%s2938 + $0x4] sm:$0xf]
  %v2941 = vld [vmem:[%s2938 + $0x8] sm:$0xf]
  %v2942 = vld [vmem:[%s2938 + $0xc] sm:$0xf]
  %v2943 = vld [vmem:[%s2938 + $0x10] sm:$0xf]
  %v2944 = vld [vmem:[%s2938 + $0x14] sm:$0xf]
  %v2945 = vld [vmem:[%s2938 + $0x18] sm:$0xf]
  %v2946 = vld [vmem:[%s2938 + $0x1c] sm:$0xf]
  %v2947 = vld [vmem:[%s2938 + $0x20] sm:$0xf]
  %v2948 = vld [vmem:[%s2938 + $0x24] sm:$0xf]
  %v2949 = vld [vmem:[%s2938 + $0x28] sm:$0xf]
  %v2950 = vld [vmem:[%s2938 + $0x2c] sm:$0xf]
  %v2951 = vld [vmem:[%s2938 + $0x30] sm:$0xf]
  %v2952 = vld [vmem:[%s2938 + $0x34] sm:$0xf]
  %v2953 = vld [vmem:[%s2938 + $0x38] sm:$0xf]
  %v2954 = vld [vmem:[%s2938 + $0x3c] sm:$0xf]
  %v2956 = vunpack.c.l.b16 %v2937
  %v2957 = vpack.c.b16 %v2640, %v2956
  %v2958 = vrot.slane %v2957, 3
  %v2959 = vrot.slane %v2651, 3
  %v2960 = vsel %vm1475, %v2958, %v2959
  %v2961 = vrot.slane %v2652, 3
  %v2962 = vsel %vm1475, %v2959, %v2961
  %v2963 = vrot.slane %v2653, 3
  %v2964 = vsel %vm1475, %v2961, %v2963
  %v2965 = vrot.slane %v2654, 3
  %v2966 = vsel %vm1475, %v2963, %v2965
  %v2967 = vrot.slane %v2785, 3
  %v2968 = vsel %vm1475, %v2965, %v2967
  %v2990 = vunpack.c.l.b16 %v2939
  %v2991 = vunpack.c.l.b16 %v2940
  %v2992 = vunpack.c.l.b16 %v2941
  %v2993 = vunpack.c.l.b16 %v2942
  %v2994 = vunpack.c.l.b16 %v2943
  %v2995 = vunpack.c.l.b16 %v2944
  %v2996 = vunpack.c.l.b16 %v2945
  %v2997 = vunpack.c.l.b16 %v2946
  %v2998 = vunpack.c.l.b16 %v2947
  %v2999 = vunpack.c.l.b16 %v2948
  %v3000 = vunpack.c.l.b16 %v2949
  %v3001 = vunpack.c.l.b16 %v2950
  %v3002 = vunpack.c.l.b16 %v2951
  %v3003 = vunpack.c.l.b16 %v2952
  %v3004 = vunpack.c.l.b16 %v2953
  %v3005 = vunpack.c.l.b16 %v2954
  %v3006 = vpack.c.b16 %v2991, %v2990
  %v3007 = vpack.c.b16 %v2993, %v2992
  %v3008 = vpack.c.b16 %v2995, %v2994
  %v3009 = vpack.c.b16 %v2997, %v2996
  %v3010 = vpack.c.b16 %v2999, %v2998
  %v3011 = vpack.c.b16 %v3001, %v3000
  %v3012 = vpack.c.b16 %v3003, %v3002
  %v3013 = vpack.c.b16 %v3005, %v3004
  %3022 = vmatpush.bf16.msra.mxu0 %v3013
  %3023 = vmatpush.bf16.msra.mxu0 %v3012
  %3024 = vmatpush.bf16.msra.mxu0 %v3011
  %3025 = vmatpush.bf16.msra.mxu0 %v3010
  %3026 = vmatpush.bf16.msra.mxu0 %v3009
  %3027 = vmatpush.bf16.msra.mxu0 %v3008
  %3028 = vmatpush.bf16.msra.mxu0 %v3007
  %3029 = vmatpush.bf16.msra.mxu0 %v3006
  %3030 = vmatmul.bf16.gmra.mxu0 %v2960
  %v3031 = vpop.f32.mrf.mxu0
  %v3032 = vadd.f32 0.0, %v3031
  %v3033 = vpop.f32.mrf.mxu0
  %v3034 = vadd.f32 0.0, %v3033
  %3035 = vmatmul.bf16.gmra.mxu0 %v2962
  %v3036 = vpop.f32.mrf.mxu0
  %v3037 = vadd.f32 0.0, %v3036
  %v3038 = vpop.f32.mrf.mxu0
  %v3039 = vadd.f32 0.0, %v3038
  %3040 = vmatmul.bf16.gmra.mxu0 %v2964
  %v3041 = vpop.f32.mrf.mxu0
  %v3042 = vadd.f32 0.0, %v3041
  %v3043 = vpop.f32.mrf.mxu0
  %v3044 = vadd.f32 0.0, %v3043
  %3045 = vmatmul.bf16.gmra.mxu0 %v2966
  %v3046 = vpop.f32.mrf.mxu0
  %v3047 = vadd.f32 0.0, %v3046
  %v3048 = vpop.f32.mrf.mxu0
  %v3049 = vadd.f32 0.0, %v3048
  %3050 = vmatmul.bf16.gmra.mxu0 %v2968
  %v3051 = vpop.f32.mrf.mxu0
  %v3052 = vadd.f32 0.0, %v3051
  %v3053 = vpop.f32.mrf.mxu0
  %v3054 = vadd.f32 0.0, %v3053
  %3055 = vdwg.mxu0
  %v3056 = vadd.f32 %v2927, %v3032
  %v3057 = vadd.f32 %v2928, %v3034
  %v3058 = vadd.f32 %v2929, %v3037
  %v3059 = vadd.f32 %v2930, %v3039
  %v3060 = vadd.f32 %v2931, %v3042
  %v3061 = vadd.f32 %v2932, %v3044
  %v3062 = vadd.f32 %v2933, %v3047
  %v3063 = vadd.f32 %v2934, %v3049
  %v3064 = vadd.f32 %v2935, %v3052
  %v3065 = vadd.f32 %v2936, %v3054
  %v3066 = vperm.slane %v31, 0
  %v3067 = vadd.f32 %v3056, %v3066
  %v3068 = vadd.f32 %v3057, %v3066
  %v3069 = vadd.f32 %v3058, %v3066
  %v3070 = vadd.f32 %v3059, %v3066
  %v3071 = vadd.f32 %v3060, %v3066
  %v3072 = vadd.f32 %v3061, %v3066
  %v3073 = vadd.f32 %v3062, %v3066
  %v3074 = vadd.f32 %v3063, %v3066
  %v3075 = vadd.f32 %v3064, %v3066
  %v3076 = vadd.f32 %v3065, %v3066
  %v3077 = vmax.f32 %v3067, 0.0
  %v3078 = vmax.f32 %v3068, 0.0
  %v3079 = vmax.f32 %v3069, 0.0
  %v3080 = vmax.f32 %v3070, 0.0
  %v3081 = vmax.f32 %v3071, 0.0
  %v3082 = vmax.f32 %v3072, 0.0
  %v3083 = vmax.f32 %v3073, 0.0
  %v3084 = vmax.f32 %v3074, 0.0
  %v3085 = vmax.f32 %v3075, 0.0
  %v3086 = vmax.f32 %v3076, 0.0
  %v3087 = vpack.c.bf16 %v3077, %v3077
  %v3088 = vpack.c.bf16 %v3078, %v3078
  %v3089 = vpack.c.bf16 %v3079, %v3079
  %v3090 = vpack.c.bf16 %v3080, %v3080
  %v3091 = vpack.c.bf16 %v3081, %v3081
  %v3092 = vpack.c.bf16 %v3082, %v3082
  %v3093 = vpack.c.bf16 %v3083, %v3083
  %v3094 = vpack.c.bf16 %v3084, %v3084
  %v3095 = vpack.c.bf16 %v3085, %v3085
  %v3096 = vpack.c.bf16 %v3086, %v3086
  %3097 = vst [vmem:[#allocation4] sm:$0xf] %v3087
  %3098 = vst [vmem:[#allocation4 + $0x4] sm:$0xf] %v3088
  %3099 = vst [vmem:[#allocation4 + $0x8] sm:$0xf] %v3089
  %3100 = vst [vmem:[#allocation4 + $0xc] sm:$0xf] %v3090
  %3101 = vst [vmem:[#allocation4 + $0x10] sm:$0xf] %v3091
  %3102 = vst [vmem:[#allocation4 + $0x14] sm:$0xf] %v3092
  %3103 = vst [vmem:[#allocation4 + $0x18] sm:$0xf] %v3093
  %3104 = vst [vmem:[#allocation4 + $0x1c] sm:$0xf] %v3094
  %3105 = vst [vmem:[#allocation4 + $0x20] sm:$0xf] %v3095
  %3106 = vst [vmem:[#allocation4 + $0x24] sm:$0xf] %v3096
  %v3107 = vld [vmem:[#allocation4] sm:$0xf]
  %v3108 = vld [vmem:[#allocation4 + $0x4] sm:$0xf]
  %v3109 = vld [vmem:[#allocation4 + $0x8] sm:$0xf]
  %v3110 = vld [vmem:[#allocation4 + $0xc] sm:$0xf]
  %v3111 = vld [vmem:[#allocation4 + $0x10] sm:$0xf]
  %v3112 = vld [vmem:[#allocation4 + $0x14] sm:$0xf]
  %v3113 = vld [vmem:[#allocation4 + $0x18] sm:$0xf]
  %v3114 = vld [vmem:[#allocation4 + $0x1c] sm:$0xf]
  %v3115 = vld [vmem:[#allocation4 + $0x20] sm:$0xf]
  %v3116 = vld [vmem:[#allocation4 + $0x24] sm:$0xf]
  %v3117 = vld [vmem:[%s4] sm:$0xf]
  %v3118 = vld [vmem:[%s4 + $0x4] sm:$0xf]
  %v3119 = vld [vmem:[%s4 + $0x8] sm:$0xf]
  %v3120 = vld [vmem:[%s4 + $0xc] sm:$0xf]
  %v3121 = vld [vmem:[%s4 + $0x10] sm:$0xf]
  %v3122 = vld [vmem:[%s4 + $0x14] sm:$0xf]
  %v3123 = vld [vmem:[%s4 + $0x18] sm:$0xf]
  %v3124 = vld [vmem:[%s4 + $0x1c] sm:$0xf]
  %v3125 = vld [vmem:[%s4 + $0x20] sm:$0xf]
  %v3126 = vld [vmem:[%s4 + $0x24] sm:$0xf]
  %v3127 = vld [vmem:[%s4 + $0x28] sm:$0xf]
  %v3128 = vld [vmem:[%s4 + $0x2c] sm:$0xf]
  %v3129 = vld [vmem:[%s4 + $0x30] sm:$0xf]
  %v3130 = vld [vmem:[%s4 + $0x34] sm:$0xf]
  %v3131 = vld [vmem:[%s4 + $0x38] sm:$0xf]
  %v3132 = vld [vmem:[%s4 + $0x3c] sm:$0xf]
  %v3133 = vld [vmem:[#allocation4 + $0x28] sm:$0x1]
  %s3134 = scalar_lea.vmem %s4, 64
  %v3135 = vld [vmem:[%s3134] sm:$0xf]
  %v3136 = vld [vmem:[%s3134 + $0x4] sm:$0xf]
  %v3137 = vld [vmem:[%s3134 + $0x8] sm:$0xf]
  %v3138 = vld [vmem:[%s3134 + $0xc] sm:$0xf]
  %v3139 = vld [vmem:[%s3134 + $0x10] sm:$0xf]
  %v3140 = vld [vmem:[%s3134 + $0x14] sm:$0xf]
  %v3141 = vld [vmem:[%s3134 + $0x18] sm:$0xf]
  %v3142 = vld [vmem:[%s3134 + $0x1c] sm:$0xf]
  %v3143 = vld [vmem:[%s3134 + $0x20] sm:$0xf]
  %v3144 = vld [vmem:[%s3134 + $0x24] sm:$0xf]
  %v3145 = vld [vmem:[%s3134 + $0x28] sm:$0xf]
  %v3146 = vld [vmem:[%s3134 + $0x2c] sm:$0xf]
  %v3147 = vld [vmem:[%s3134 + $0x30] sm:$0xf]
  %v3148 = vld [vmem:[%s3134 + $0x34] sm:$0xf]
  %v3149 = vld [vmem:[%s3134 + $0x38] sm:$0xf]
  %v3150 = vld [vmem:[%s3134 + $0x3c] sm:$0xf]
  %v3162 = vunpack.c.l.b16 %v3107
  %v3163 = vunpack.c.l.b16 %v3108
  %v3164 = vunpack.c.l.b16 %v3109
  %v3165 = vunpack.c.l.b16 %v3110
  %v3166 = vunpack.c.l.b16 %v3111
  %v3167 = vunpack.c.l.b16 %v3112
  %v3168 = vunpack.c.l.b16 %v3113
  %v3169 = vunpack.c.l.b16 %v3114
  %v3170 = vunpack.c.l.b16 %v3115
  %v3171 = vunpack.c.l.b16 %v3116
  %v3172 = vunpack.c.l.b16 %v3133
  %v3173 = vpack.c.b16 %v3163, %v3162
  %v3174 = vpack.c.b16 %v3165, %v3164
  %v3175 = vpack.c.b16 %v3167, %v3166
  %v3176 = vpack.c.b16 %v3169, %v3168
  %v3177 = vpack.c.b16 %v3171, %v3170
  %v3178 = vpack.c.b16 %v3172, %v3172
  %v3180 = vshrl.u32 %v3173, 16
  %v3182 = vshll.u32 %v3173, 16
  %v3184 = vrot.slane %v3182, 1
  %v3185 = vor.u32 %v3180, %v3184
  %v3187 = vshll.u32 %v3174, 16
  %v3189 = vrot.slane %v3187, 1
  %v3190 = vsel %vm1206, %v3185, %v3189
  %v3191 = vshrl.u32 %v3174, 16
  %v3193 = vor.u32 %v3191, %v3189
  %v3195 = vshll.u32 %v3175, 16
  %v3197 = vrot.slane %v3195, 1
  %v3198 = vsel %vm1206, %v3193, %v3197
  %v3199 = vshrl.u32 %v3175, 16
  %v3201 = vor.u32 %v3199, %v3197
  %v3203 = vshll.u32 %v3176, 16
  %v3205 = vrot.slane %v3203, 1
  %v3206 = vsel %vm1206, %v3201, %v3205
  %v3207 = vshrl.u32 %v3176, 16
  %v3209 = vor.u32 %v3207, %v3205
  %v3211 = vshll.u32 %v3177, 16
  %v3213 = vrot.slane %v3211, 1
  %v3214 = vsel %vm1206, %v3209, %v3213
  %v3215 = vshrl.u32 %v3177, 16
  %v3217 = vor.u32 %v3215, %v3213
  %v3219 = vshll.u32 %v3178, 16
  %v3221 = vrot.slane %v3219, 1
  %v3222 = vsel %vm1206, %v3217, %v3221
  %v3244 = vunpack.c.l.b16 %v3135
  %v3245 = vunpack.c.l.b16 %v3136
  %v3246 = vunpack.c.l.b16 %v3137
  %v3247 = vunpack.c.l.b16 %v3138
  %v3248 = vunpack.c.l.b16 %v3139
  %v3249 = vunpack.c.l.b16 %v3140
  %v3250 = vunpack.c.l.b16 %v3141
  %v3251 = vunpack.c.l.b16 %v3142
  %v3252 = vunpack.c.l.b16 %v3143
  %v3253 = vunpack.c.l.b16 %v3144
  %v3254 = vunpack.c.l.b16 %v3145
  %v3255 = vunpack.c.l.b16 %v3146
  %v3256 = vunpack.c.l.b16 %v3147
  %v3257 = vunpack.c.l.b16 %v3148
  %v3258 = vunpack.c.l.b16 %v3149
  %v3259 = vunpack.c.l.b16 %v3150
  %v3260 = vpack.c.b16 %v3245, %v3244
  %v3261 = vpack.c.b16 %v3247, %v3246
  %v3262 = vpack.c.b16 %v3249, %v3248
  %v3263 = vpack.c.b16 %v3251, %v3250
  %v3264 = vpack.c.b16 %v3253, %v3252
  %v3265 = vpack.c.b16 %v3255, %v3254
  %v3266 = vpack.c.b16 %v3257, %v3256
  %v3267 = vpack.c.b16 %v3259, %v3258
  %3276 = vmatpush.bf16.msra.mxu0 %v3267
  %3277 = vmatpush.bf16.msra.mxu0 %v3266
  %3278 = vmatpush.bf16.msra.mxu0 %v3265
  %3279 = vmatpush.bf16.msra.mxu0 %v3264
  %3280 = vmatpush.bf16.msra.mxu0 %v3263
  %3281 = vmatpush.bf16.msra.mxu0 %v3262
  %3282 = vmatpush.bf16.msra.mxu0 %v3261
  %3283 = vmatpush.bf16.msra.mxu0 %v3260
  %3284 = vmatmul.bf16.gmra.mxu0 %v3190
  %v3285 = vpop.f32.mrf.mxu0
  %v3286 = vadd.f32 0.0, %v3285
  %v3287 = vpop.f32.mrf.mxu0
  %v3288 = vadd.f32 0.0, %v3287
  %3289 = vmatmul.bf16.gmra.mxu0 %v3198
  %v3290 = vpop.f32.mrf.mxu0
  %v3291 = vadd.f32 0.0, %v3290
  %v3292 = vpop.f32.mrf.mxu0
  %v3293 = vadd.f32 0.0, %v3292
  %3294 = vmatmul.bf16.gmra.mxu0 %v3206
  %v3295 = vpop.f32.mrf.mxu0
  %v3296 = vadd.f32 0.0, %v3295
  %v3297 = vpop.f32.mrf.mxu0
  %v3298 = vadd.f32 0.0, %v3297
  %3299 = vmatmul.bf16.gmra.mxu0 %v3214
  %v3300 = vpop.f32.mrf.mxu0
  %v3301 = vadd.f32 0.0, %v3300
  %v3302 = vpop.f32.mrf.mxu0
  %v3303 = vadd.f32 0.0, %v3302
  %3304 = vmatmul.bf16.gmra.mxu0 %v3222
  %v3305 = vpop.f32.mrf.mxu0
  %v3306 = vadd.f32 0.0, %v3305
  %v3307 = vpop.f32.mrf.mxu0
  %v3308 = vadd.f32 0.0, %v3307
  %3309 = vdwg.mxu0
  %v3331 = vunpack.c.l.b16 %v3117
  %v3332 = vunpack.c.l.b16 %v3118
  %v3333 = vunpack.c.l.b16 %v3119
  %v3334 = vunpack.c.l.b16 %v3120
  %v3335 = vunpack.c.l.b16 %v3121
  %v3336 = vunpack.c.l.b16 %v3122
  %v3337 = vunpack.c.l.b16 %v3123
  %v3338 = vunpack.c.l.b16 %v3124
  %v3339 = vunpack.c.l.b16 %v3125
  %v3340 = vunpack.c.l.b16 %v3126
  %v3341 = vunpack.c.l.b16 %v3127
  %v3342 = vunpack.c.l.b16 %v3128
  %v3343 = vunpack.c.l.b16 %v3129
  %v3344 = vunpack.c.l.b16 %v3130
  %v3345 = vunpack.c.l.b16 %v3131
  %v3346 = vunpack.c.l.b16 %v3132
  %v3347 = vpack.c.b16 %v3332, %v3331
  %v3348 = vpack.c.b16 %v3334, %v3333
  %v3349 = vpack.c.b16 %v3336, %v3335
  %v3350 = vpack.c.b16 %v3338, %v3337
  %v3351 = vpack.c.b16 %v3340, %v3339
  %v3352 = vpack.c.b16 %v3342, %v3341
  %v3353 = vpack.c.b16 %v3344, %v3343
  %v3354 = vpack.c.b16 %v3346, %v3345
  %3363 = vmatpush.bf16.msra.mxu0 %v3354
  %3364 = vmatpush.bf16.msra.mxu0 %v3353
  %3365 = vmatpush.bf16.msra.mxu0 %v3352
  %3366 = vmatpush.bf16.msra.mxu0 %v3351
  %3367 = vmatpush.bf16.msra.mxu0 %v3350
  %3368 = vmatpush.bf16.msra.mxu0 %v3349
  %3369 = vmatpush.bf16.msra.mxu0 %v3348
  %3370 = vmatpush.bf16.msra.mxu0 %v3347
  %3371 = vmatmul.bf16.gmra.mxu0 %v3173
  %v3372 = vpop.f32.mrf.mxu0
  %v3373 = vadd.f32 %v3286, %v3372
  %v3374 = vpop.f32.mrf.mxu0
  %v3375 = vadd.f32 %v3288, %v3374
  %3376 = vmatmul.bf16.gmra.mxu0 %v3174
  %v3377 = vpop.f32.mrf.mxu0
  %v3378 = vadd.f32 %v3291, %v3377
  %v3379 = vpop.f32.mrf.mxu0
  %v3380 = vadd.f32 %v3293, %v3379
  %3381 = vmatmul.bf16.gmra.mxu0 %v3175
  %v3382 = vpop.f32.mrf.mxu0
  %v3383 = vadd.f32 %v3296, %v3382
  %v3384 = vpop.f32.mrf.mxu0
  %v3385 = vadd.f32 %v3298, %v3384
  %3386 = vmatmul.bf16.gmra.mxu0 %v3176
  %v3387 = vpop.f32.mrf.mxu0
  %v3388 = vadd.f32 %v3301, %v3387
  %v3389 = vpop.f32.mrf.mxu0
  %v3390 = vadd.f32 %v3303, %v3389
  %3391 = vmatmul.bf16.gmra.mxu0 %v3177
  %v3392 = vpop.f32.mrf.mxu0
  %v3393 = vadd.f32 %v3306, %v3392
  %v3394 = vpop.f32.mrf.mxu0
  %v3395 = vadd.f32 %v3308, %v3394
  %3396 = vdwg.mxu0
  %v3397 = vld [vmem:[#allocation4] sm:$0xe]
  %s3398 = scalar_lea.vmem %s4, 128
  %v3399 = vld [vmem:[%s3398] sm:$0xf]
  %v3400 = vld [vmem:[%s3398 + $0x4] sm:$0xf]
  %v3401 = vld [vmem:[%s3398 + $0x8] sm:$0xf]
  %v3402 = vld [vmem:[%s3398 + $0xc] sm:$0xf]
  %v3403 = vld [vmem:[%s3398 + $0x10] sm:$0xf]
  %v3404 = vld [vmem:[%s3398 + $0x14] sm:$0xf]
  %v3405 = vld [vmem:[%s3398 + $0x18] sm:$0xf]
  %v3406 = vld [vmem:[%s3398 + $0x1c] sm:$0xf]
  %v3407 = vld [vmem:[%s3398 + $0x20] sm:$0xf]
  %v3408 = vld [vmem:[%s3398 + $0x24] sm:$0xf]
  %v3409 = vld [vmem:[%s3398 + $0x28] sm:$0xf]
  %v3410 = vld [vmem:[%s3398 + $0x2c] sm:$0xf]
  %v3411 = vld [vmem:[%s3398 + $0x30] sm:$0xf]
  %v3412 = vld [vmem:[%s3398 + $0x34] sm:$0xf]
  %v3413 = vld [vmem:[%s3398 + $0x38] sm:$0xf]
  %v3414 = vld [vmem:[%s3398 + $0x3c] sm:$0xf]
  %v3416 = vunpack.c.l.b16 %v3397
  %v3417 = vpack.c.b16 %v3163, %v3416
  %v3418 = vrot.slane %v3417, 1
  %v3419 = vrot.slane %v3174, 1
  %v3420 = vsel %vm2088, %v3418, %v3419
  %v3421 = vrot.slane %v3175, 1
  %v3422 = vsel %vm2088, %v3419, %v3421
  %v3423 = vrot.slane %v3176, 1
  %v3424 = vsel %vm2088, %v3421, %v3423
  %v3425 = vrot.slane %v3177, 1
  %v3426 = vsel %vm2088, %v3423, %v3425
  %v3427 = vrot.slane %v3178, 1
  %v3428 = vsel %vm2088, %v3425, %v3427
  %v3450 = vunpack.c.l.b16 %v3399
  %v3451 = vunpack.c.l.b16 %v3400
  %v3452 = vunpack.c.l.b16 %v3401
  %v3453 = vunpack.c.l.b16 %v3402
  %v3454 = vunpack.c.l.b16 %v3403
  %v3455 = vunpack.c.l.b16 %v3404
  %v3456 = vunpack.c.l.b16 %v3405
  %v3457 = vunpack.c.l.b16 %v3406
  %v3458 = vunpack.c.l.b16 %v3407
  %v3459 = vunpack.c.l.b16 %v3408
  %v3460 = vunpack.c.l.b16 %v3409
  %v3461 = vunpack.c.l.b16 %v3410
  %v3462 = vunpack.c.l.b16 %v3411
  %v3463 = vunpack.c.l.b16 %v3412
  %v3464 = vunpack.c.l.b16 %v3413
  %v3465 = vunpack.c.l.b16 %v3414
  %v3466 = vpack.c.b16 %v3451, %v3450
  %v3467 = vpack.c.b16 %v3453, %v3452
  %v3468 = vpack.c.b16 %v3455, %v3454
  %v3469 = vpack.c.b16 %v3457, %v3456
  %v3470 = vpack.c.b16 %v3459, %v3458
  %v3471 = vpack.c.b16 %v3461, %v3460
  %v3472 = vpack.c.b16 %v3463, %v3462
  %v3473 = vpack.c.b16 %v3465, %v3464
  %3482 = vmatpush.bf16.msra.mxu0 %v3473
  %3483 = vmatpush.bf16.msra.mxu0 %v3472
  %3484 = vmatpush.bf16.msra.mxu0 %v3471
  %3485 = vmatpush.bf16.msra.mxu0 %v3470
  %3486 = vmatpush.bf16.msra.mxu0 %v3469
  %3487 = vmatpush.bf16.msra.mxu0 %v3468
  %3488 = vmatpush.bf16.msra.mxu0 %v3467
  %3489 = vmatpush.bf16.msra.mxu0 %v3466
  %3490 = vmatmul.bf16.gmra.mxu0 %v3420
  %v3491 = vpop.f32.mrf.mxu0
  %v3492 = vadd.f32 0.0, %v3491
  %v3493 = vpop.f32.mrf.mxu0
  %v3494 = vadd.f32 0.0, %v3493
  %3495 = vmatmul.bf16.gmra.mxu0 %v3422
  %v3496 = vpop.f32.mrf.mxu0
  %v3497 = vadd.f32 0.0, %v3496
  %v3498 = vpop.f32.mrf.mxu0
  %v3499 = vadd.f32 0.0, %v3498
  %3500 = vmatmul.bf16.gmra.mxu0 %v3424
  %v3501 = vpop.f32.mrf.mxu0
  %v3502 = vadd.f32 0.0, %v3501
  %v3503 = vpop.f32.mrf.mxu0
  %v3504 = vadd.f32 0.0, %v3503
  %3505 = vmatmul.bf16.gmra.mxu0 %v3426
  %v3506 = vpop.f32.mrf.mxu0
  %v3507 = vadd.f32 0.0, %v3506
  %v3508 = vpop.f32.mrf.mxu0
  %v3509 = vadd.f32 0.0, %v3508
  %3510 = vmatmul.bf16.gmra.mxu0 %v3428
  %v3511 = vpop.f32.mrf.mxu0
  %v3512 = vadd.f32 0.0, %v3511
  %v3513 = vpop.f32.mrf.mxu0
  %v3514 = vadd.f32 0.0, %v3513
  %3515 = vdwg.mxu0
  %v3516 = vadd.f32 %v3373, %v3492
  %v3517 = vadd.f32 %v3375, %v3494
  %v3518 = vadd.f32 %v3378, %v3497
  %v3519 = vadd.f32 %v3380, %v3499
  %v3520 = vadd.f32 %v3383, %v3502
  %v3521 = vadd.f32 %v3385, %v3504
  %v3522 = vadd.f32 %v3388, %v3507
  %v3523 = vadd.f32 %v3390, %v3509
  %v3524 = vadd.f32 %v3393, %v3512
  %v3525 = vadd.f32 %v3395, %v3514
  %v3526 = vld [vmem:[#allocation4] sm:$0x8]
  %v3527 = vld [vmem:[#allocation4 + $0x28] sm:$0x7]
  %s3528 = scalar_lea.vmem %s4, 192
  %v3529 = vld [vmem:[%s3528] sm:$0xf]
  %v3530 = vld [vmem:[%s3528 + $0x4] sm:$0xf]
  %v3531 = vld [vmem:[%s3528 + $0x8] sm:$0xf]
  %v3532 = vld [vmem:[%s3528 + $0xc] sm:$0xf]
  %v3533 = vld [vmem:[%s3528 + $0x10] sm:$0xf]
  %v3534 = vld [vmem:[%s3528 + $0x14] sm:$0xf]
  %v3535 = vld [vmem:[%s3528 + $0x18] sm:$0xf]
  %v3536 = vld [vmem:[%s3528 + $0x1c] sm:$0xf]
  %v3537 = vld [vmem:[%s3528 + $0x20] sm:$0xf]
  %v3538 = vld [vmem:[%s3528 + $0x24] sm:$0xf]
  %v3539 = vld [vmem:[%s3528 + $0x28] sm:$0xf]
  %v3540 = vld [vmem:[%s3528 + $0x2c] sm:$0xf]
  %v3541 = vld [vmem:[%s3528 + $0x30] sm:$0xf]
  %v3542 = vld [vmem:[%s3528 + $0x34] sm:$0xf]
  %v3543 = vld [vmem:[%s3528 + $0x38] sm:$0xf]
  %v3544 = vld [vmem:[%s3528 + $0x3c] sm:$0xf]
  %v3547 = vunpack.c.l.b16 %v3526
  %v3548 = vunpack.c.l.b16 %v3527
  %v3549 = vpack.c.b16 %v3163, %v3547
  %v3550 = vpack.c.b16 %v3548, %v3548
  %v3551 = vrot.slane %v3549, 3
  %v3552 = vrot.slane %v3174, 3
  %v3553 = vsel %vm1475, %v3551, %v3552
  %v3554 = vrot.slane %v3175, 3
  %v3555 = vsel %vm1475, %v3552, %v3554
  %v3556 = vrot.slane %v3176, 3
  %v3557 = vsel %vm1475, %v3554, %v3556
  %v3558 = vrot.slane %v3177, 3
  %v3559 = vsel %vm1475, %v3556, %v3558
  %v3560 = vrot.slane %v3550, 3
  %v3561 = vsel %vm1475, %v3558, %v3560
  %v3583 = vunpack.c.l.b16 %v3529
  %v3584 = vunpack.c.l.b16 %v3530
  %v3585 = vunpack.c.l.b16 %v3531
  %v3586 = vunpack.c.l.b16 %v3532
  %v3587 = vunpack.c.l.b16 %v3533
  %v3588 = vunpack.c.l.b16 %v3534
  %v3589 = vunpack.c.l.b16 %v3535
  %v3590 = vunpack.c.l.b16 %v3536
  %v3591 = vunpack.c.l.b16 %v3537
  %v3592 = vunpack.c.l.b16 %v3538
  %v3593 = vunpack.c.l.b16 %v3539
  %v3594 = vunpack.c.l.b16 %v3540
  %v3595 = vunpack.c.l.b16 %v3541
  %v3596 = vunpack.c.l.b16 %v3542
  %v3597 = vunpack.c.l.b16 %v3543
  %v3598 = vunpack.c.l.b16 %v3544
  %v3599 = vpack.c.b16 %v3584, %v3583
  %v3600 = vpack.c.b16 %v3586, %v3585
  %v3601 = vpack.c.b16 %v3588, %v3587
  %v3602 = vpack.c.b16 %v3590, %v3589
  %v3603 = vpack.c.b16 %v3592, %v3591
  %v3604 = vpack.c.b16 %v3594, %v3593
  %v3605 = vpack.c.b16 %v3596, %v3595
  %v3606 = vpack.c.b16 %v3598, %v3597
  %3615 = vmatpush.bf16.msra.mxu0 %v3606
  %3616 = vmatpush.bf16.msra.mxu0 %v3605
  %3617 = vmatpush.bf16.msra.mxu0 %v3604
  %3618 = vmatpush.bf16.msra.mxu0 %v3603
  %3619 = vmatpush.bf16.msra.mxu0 %v3602
  %3620 = vmatpush.bf16.msra.mxu0 %v3601
  %3621 = vmatpush.bf16.msra.mxu0 %v3600
  %3622 = vmatpush.bf16.msra.mxu0 %v3599
  %3623 = vmatmul.bf16.gmra.mxu0 %v3553
  %v3624 = vpop.f32.mrf.mxu0
  %v3625 = vadd.f32 0.0, %v3624
  %v3626 = vpop.f32.mrf.mxu0
  %v3627 = vadd.f32 0.0, %v3626
  %3628 = vmatmul.bf16.gmra.mxu0 %v3555
  %v3629 = vpop.f32.mrf.mxu0
  %v3630 = vadd.f32 0.0, %v3629
  %v3631 = vpop.f32.mrf.mxu0
  %v3632 = vadd.f32 0.0, %v3631
  %3633 = vmatmul.bf16.gmra.mxu0 %v3557
  %v3634 = vpop.f32.mrf.mxu0
  %v3635 = vadd.f32 0.0, %v3634
  %v3636 = vpop.f32.mrf.mxu0
  %v3637 = vadd.f32 0.0, %v3636
  %3638 = vmatmul.bf16.gmra.mxu0 %v3559
  %v3639 = vpop.f32.mrf.mxu0
  %v3640 = vadd.f32 0.0, %v3639
  %v3641 = vpop.f32.mrf.mxu0
  %v3642 = vadd.f32 0.0, %v3641
  %3643 = vmatmul.bf16.gmra.mxu0 %v3561
  %v3644 = vpop.f32.mrf.mxu0
  %v3645 = vadd.f32 0.0, %v3644
  %v3646 = vpop.f32.mrf.mxu0
  %v3647 = vadd.f32 0.0, %v3646
  %3648 = vdwg.mxu0
  %v3649 = vadd.f32 %v3516, %v3625
  %v3650 = vadd.f32 %v3517, %v3627
  %v3651 = vadd.f32 %v3518, %v3630
  %v3652 = vadd.f32 %v3519, %v3632
  %v3653 = vadd.f32 %v3520, %v3635
  %v3654 = vadd.f32 %v3521, %v3637
  %v3655 = vadd.f32 %v3522, %v3640
  %v3656 = vadd.f32 %v3523, %v3642
  %v3657 = vadd.f32 %v3524, %v3645
  %v3658 = vadd.f32 %v3525, %v3647
  %v3659 = vld [vmem:[#allocation4 + $0x28] sm:$0xf]
  %s3660 = scalar_lea.vmem %s4, 256
  %v3661 = vld [vmem:[%s3660] sm:$0xf]
  %v3662 = vld [vmem:[%s3660 + $0x4] sm:$0xf]
  %v3663 = vld [vmem:[%s3660 + $0x8] sm:$0xf]
  %v3664 = vld [vmem:[%s3660 + $0xc] sm:$0xf]
  %v3665 = vld [vmem:[%s3660 + $0x10] sm:$0xf]
  %v3666 = vld [vmem:[%s3660 + $0x14] sm:$0xf]
  %v3667 = vld [vmem:[%s3660 + $0x18] sm:$0xf]
  %v3668 = vld [vmem:[%s3660 + $0x1c] sm:$0xf]
  %v3669 = vld [vmem:[%s3660 + $0x20] sm:$0xf]
  %v3670 = vld [vmem:[%s3660 + $0x24] sm:$0xf]
  %v3671 = vld [vmem:[%s3660 + $0x28] sm:$0xf]
  %v3672 = vld [vmem:[%s3660 + $0x2c] sm:$0xf]
  %v3673 = vld [vmem:[%s3660 + $0x30] sm:$0xf]
  %v3674 = vld [vmem:[%s3660 + $0x34] sm:$0xf]
  %v3675 = vld [vmem:[%s3660 + $0x38] sm:$0xf]
  %v3676 = vld [vmem:[%s3660 + $0x3c] sm:$0xf]
  %v3678 = vunpack.c.l.b16 %v3659
  %v3679 = vpack.c.b16 %v3678, %v3678
  %v3681 = vshrl.u32 %v3549, 16
  %v3683 = vrot.slane %v3681, 3
  %v3684 = vshll.u32 %v3549, 16
  %v3686 = vrot.slane %v3684, 4
  %v3687 = vor.u32 %v3683, %v3686
  %v3688 = vrot.slane %v3191, 3
  %v3689 = vrot.slane %v3187, 4
  %v3690 = vor.u32 %v3688, %v3689
  %v3691 = vsel %vm1605, %v3687, %v3690
  %v3692 = vrot.slane %v3199, 3
  %v3693 = vrot.slane %v3195, 4
  %v3694 = vor.u32 %v3692, %v3693
  %v3695 = vsel %vm1605, %v3690, %v3694
  %v3696 = vrot.slane %v3207, 3
  %v3697 = vrot.slane %v3203, 4
  %v3698 = vor.u32 %v3696, %v3697
  %v3699 = vsel %vm1605, %v3694, %v3698
  %v3700 = vrot.slane %v3215, 3
  %v3701 = vrot.slane %v3211, 4
  %v3702 = vor.u32 %v3700, %v3701
  %v3703 = vsel %vm1605, %v3698, %v3702
  %v3705 = vshrl.u32 %v3679, 16
  %v3707 = vrot.slane %v3705, 3
  %v3708 = vshll.u32 %v3679, 16
  %v3710 = vrot.slane %v3708, 4
  %v3711 = vor.u32 %v3707, %v3710
  %v3712 = vsel %vm1605, %v3702, %v3711
  %v3734 = vunpack.c.l.b16 %v3661
  %v3735 = vunpack.c.l.b16 %v3662
  %v3736 = vunpack.c.l.b16 %v3663
  %v3737 = vunpack.c.l.b16 %v3664
  %v3738 = vunpack.c.l.b16 %v3665
  %v3739 = vunpack.c.l.b16 %v3666
  %v3740 = vunpack.c.l.b16 %v3667
  %v3741 = vunpack.c.l.b16 %v3668
  %v3742 = vunpack.c.l.b16 %v3669
  %v3743 = vunpack.c.l.b16 %v3670
  %v3744 = vunpack.c.l.b16 %v3671
  %v3745 = vunpack.c.l.b16 %v3672
  %v3746 = vunpack.c.l.b16 %v3673
  %v3747 = vunpack.c.l.b16 %v3674
  %v3748 = vunpack.c.l.b16 %v3675
  %v3749 = vunpack.c.l.b16 %v3676
  %v3750 = vpack.c.b16 %v3735, %v3734
  %v3751 = vpack.c.b16 %v3737, %v3736
  %v3752 = vpack.c.b16 %v3739, %v3738
  %v3753 = vpack.c.b16 %v3741, %v3740
  %v3754 = vpack.c.b16 %v3743, %v3742
  %v3755 = vpack.c.b16 %v3745, %v3744
  %v3756 = vpack.c.b16 %v3747, %v3746
  %v3757 = vpack.c.b16 %v3749, %v3748
  %3766 = vmatpush.bf16.msra.mxu0 %v3757
  %3767 = vmatpush.bf16.msra.mxu0 %v3756
  %3768 = vmatpush.bf16.msra.mxu0 %v3755
  %3769 = vmatpush.bf16.msra.mxu0 %v3754
  %3770 = vmatpush.bf16.msra.mxu0 %v3753
  %3771 = vmatpush.bf16.msra.mxu0 %v3752
  %3772 = vmatpush.bf16.msra.mxu0 %v3751
  %3773 = vmatpush.bf16.msra.mxu0 %v3750
  %3774 = vmatmul.bf16.gmra.mxu0 %v3691
  %v3775 = vpop.f32.mrf.mxu0
  %v3776 = vadd.f32 0.0, %v3775
  %v3777 = vpop.f32.mrf.mxu0
  %v3778 = vadd.f32 0.0, %v3777
  %3779 = vmatmul.bf16.gmra.mxu0 %v3695
  %v3780 = vpop.f32.mrf.mxu0
  %v3781 = vadd.f32 0.0, %v3780
  %v3782 = vpop.f32.mrf.mxu0
  %v3783 = vadd.f32 0.0, %v3782
  %3784 = vmatmul.bf16.gmra.mxu0 %v3699
  %v3785 = vpop.f32.mrf.mxu0
  %v3786 = vadd.f32 0.0, %v3785
  %v3787 = vpop.f32.mrf.mxu0
  %v3788 = vadd.f32 0.0, %v3787
  %3789 = vmatmul.bf16.gmra.mxu0 %v3703
  %v3790 = vpop.f32.mrf.mxu0
  %v3791 = vadd.f32 0.0, %v3790
  %v3792 = vpop.f32.mrf.mxu0
  %v3793 = vadd.f32 0.0, %v3792
  %3794 = vmatmul.bf16.gmra.mxu0 %v3712
  %v3795 = vpop.f32.mrf.mxu0
  %v3796 = vadd.f32 0.0, %v3795
  %v3797 = vpop.f32.mrf.mxu0
  %v3798 = vadd.f32 0.0, %v3797
  %3799 = vdwg.mxu0
  %v3800 = vadd.f32 %v3649, %v3776
  %v3801 = vadd.f32 %v3650, %v3778
  %v3802 = vadd.f32 %v3651, %v3781
  %v3803 = vadd.f32 %v3652, %v3783
  %v3804 = vadd.f32 %v3653, %v3786
  %v3805 = vadd.f32 %v3654, %v3788
  %v3806 = vadd.f32 %v3655, %v3791
  %v3807 = vadd.f32 %v3656, %v3793
  %v3808 = vadd.f32 %v3657, %v3796
  %v3809 = vadd.f32 %v3658, %v3798
  %s3810 = scalar_lea.vmem %s4, 320
  %v3811 = vld [vmem:[%s3810] sm:$0xf]
  %v3812 = vld [vmem:[%s3810 + $0x4] sm:$0xf]
  %v3813 = vld [vmem:[%s3810 + $0x8] sm:$0xf]
  %v3814 = vld [vmem:[%s3810 + $0xc] sm:$0xf]
  %v3815 = vld [vmem:[%s3810 + $0x10] sm:$0xf]
  %v3816 = vld [vmem:[%s3810 + $0x14] sm:$0xf]
  %v3817 = vld [vmem:[%s3810 + $0x18] sm:$0xf]
  %v3818 = vld [vmem:[%s3810 + $0x1c] sm:$0xf]
  %v3819 = vld [vmem:[%s3810 + $0x20] sm:$0xf]
  %v3820 = vld [vmem:[%s3810 + $0x24] sm:$0xf]
  %v3821 = vld [vmem:[%s3810 + $0x28] sm:$0xf]
  %v3822 = vld [vmem:[%s3810 + $0x2c] sm:$0xf]
  %v3823 = vld [vmem:[%s3810 + $0x30] sm:$0xf]
  %v3824 = vld [vmem:[%s3810 + $0x34] sm:$0xf]
  %v3825 = vld [vmem:[%s3810 + $0x38] sm:$0xf]
  %v3826 = vld [vmem:[%s3810 + $0x3c] sm:$0xf]
  %v3827 = vpack.c.b16 %v3164, %v3163
  %v3828 = vpack.c.b16 %v3166, %v3165
  %v3829 = vpack.c.b16 %v3168, %v3167
  %v3830 = vpack.c.b16 %v3170, %v3169
  %v3831 = vpack.c.b16 %v3678, %v3171
  %v3853 = vunpack.c.l.b16 %v3811
  %v3854 = vunpack.c.l.b16 %v3812
  %v3855 = vunpack.c.l.b16 %v3813
  %v3856 = vunpack.c.l.b16 %v3814
  %v3857 = vunpack.c.l.b16 %v3815
  %v3858 = vunpack.c.l.b16 %v3816
  %v3859 = vunpack.c.l.b16 %v3817
  %v3860 = vunpack.c.l.b16 %v3818
  %v3861 = vunpack.c.l.b16 %v3819
  %v3862 = vunpack.c.l.b16 %v3820
  %v3863 = vunpack.c.l.b16 %v3821
  %v3864 = vunpack.c.l.b16 %v3822
  %v3865 = vunpack.c.l.b16 %v3823
  %v3866 = vunpack.c.l.b16 %v3824
  %v3867 = vunpack.c.l.b16 %v3825
  %v3868 = vunpack.c.l.b16 %v3826
  %v3869 = vpack.c.b16 %v3854, %v3853
  %v3870 = vpack.c.b16 %v3856, %v3855
  %v3871 = vpack.c.b16 %v3858, %v3857
  %v3872 = vpack.c.b16 %v3860, %v3859
  %v3873 = vpack.c.b16 %v3862, %v3861
  %v3874 = vpack.c.b16 %v3864, %v3863
  %v3875 = vpack.c.b16 %v3866, %v3865
  %v3876 = vpack.c.b16 %v3868, %v3867
  %3885 = vmatpush.bf16.msra.mxu0 %v3876
  %3886 = vmatpush.bf16.msra.mxu0 %v3875
  %3887 = vmatpush.bf16.msra.mxu0 %v3874
  %3888 = vmatpush.bf16.msra.mxu0 %v3873
  %3889 = vmatpush.bf16.msra.mxu0 %v3872
  %3890 = vmatpush.bf16.msra.mxu0 %v3871
  %3891 = vmatpush.bf16.msra.mxu0 %v3870
  %3892 = vmatpush.bf16.msra.mxu0 %v3869
  %3893 = vmatmul.bf16.gmra.mxu0 %v3827
  %v3894 = vpop.f32.mrf.mxu0
  %v3895 = vadd.f32 0.0, %v3894
  %v3896 = vpop.f32.mrf.mxu0
  %v3897 = vadd.f32 0.0, %v3896
  %3898 = vmatmul.bf16.gmra.mxu0 %v3828
  %v3899 = vpop.f32.mrf.mxu0
  %v3900 = vadd.f32 0.0, %v3899
  %v3901 = vpop.f32.mrf.mxu0
  %v3902 = vadd.f32 0.0, %v3901
  %3903 = vmatmul.bf16.gmra.mxu0 %v3829
  %v3904 = vpop.f32.mrf.mxu0
  %v3905 = vadd.f32 0.0, %v3904
  %v3906 = vpop.f32.mrf.mxu0
  %v3907 = vadd.f32 0.0, %v3906
  %3908 = vmatmul.bf16.gmra.mxu0 %v3830
  %v3909 = vpop.f32.mrf.mxu0
  %v3910 = vadd.f32 0.0, %v3909
  %v3911 = vpop.f32.mrf.mxu0
  %v3912 = vadd.f32 0.0, %v3911
  %3913 = vmatmul.bf16.gmra.mxu0 %v3831
  %v3914 = vpop.f32.mrf.mxu0
  %v3915 = vadd.f32 0.0, %v3914
  %v3916 = vpop.f32.mrf.mxu0
  %v3917 = vadd.f32 0.0, %v3916
  %3918 = vdwg.mxu0
  %v3919 = vadd.f32 %v3800, %v3895
  %v3920 = vadd.f32 %v3801, %v3897
  %v3921 = vadd.f32 %v3802, %v3900
  %v3922 = vadd.f32 %v3803, %v3902
  %v3923 = vadd.f32 %v3804, %v3905
  %v3924 = vadd.f32 %v3805, %v3907
  %v3925 = vadd.f32 %v3806, %v3910
  %v3926 = vadd.f32 %v3807, %v3912
  %v3927 = vadd.f32 %v3808, %v3915
  %v3928 = vadd.f32 %v3809, %v3917
  %v3929 = vld [vmem:[#allocation4 + $0x4] sm:$0xc]
  %v3930 = vld [vmem:[#allocation4 + $0x8] sm:$0xf]
  %v3931 = vld [vmem:[#allocation4 + $0xc] sm:$0xf]
  %v3932 = vld [vmem:[#allocation4 + $0x10] sm:$0xf]
  %v3933 = vld [vmem:[#allocation4 + $0x14] sm:$0xf]
  %v3934 = vld [vmem:[#allocation4 + $0x18] sm:$0xf]
  %v3935 = vld [vmem:[#allocation4 + $0x1c] sm:$0xf]
  %v3936 = vld [vmem:[#allocation4 + $0x20] sm:$0xf]
  %v3937 = vld [vmem:[#allocation4 + $0x24] sm:$0xf]
  %v3938 = vld [vmem:[#allocation4 + $0x28] sm:$0xf]
  %v3939 = vld [vmem:[#allocation4 + $0x2c] sm:$0x3]
  %s3940 = scalar_lea.vmem %s4, 384
  %v3941 = vld [vmem:[%s3940] sm:$0xf]
  %v3942 = vld [vmem:[%s3940 + $0x4] sm:$0xf]
  %v3943 = vld [vmem:[%s3940 + $0x8] sm:$0xf]
  %v3944 = vld [vmem:[%s3940 + $0xc] sm:$0xf]
  %v3945 = vld [vmem:[%s3940 + $0x10] sm:$0xf]
  %v3946 = vld [vmem:[%s3940 + $0x14] sm:$0xf]
  %v3947 = vld [vmem:[%s3940 + $0x18] sm:$0xf]
  %v3948 = vld [vmem:[%s3940 + $0x1c] sm:$0xf]
  %v3949 = vld [vmem:[%s3940 + $0x20] sm:$0xf]
  %v3950 = vld [vmem:[%s3940 + $0x24] sm:$0xf]
  %v3951 = vld [vmem:[%s3940 + $0x28] sm:$0xf]
  %v3952 = vld [vmem:[%s3940 + $0x2c] sm:$0xf]
  %v3953 = vld [vmem:[%s3940 + $0x30] sm:$0xf]
  %v3954 = vld [vmem:[%s3940 + $0x34] sm:$0xf]
  %v3955 = vld [vmem:[%s3940 + $0x38] sm:$0xf]
  %v3956 = vld [vmem:[%s3940 + $0x3c] sm:$0xf]
  %v3968 = vunpack.c.l.b16 %v3929
  %v3969 = vunpack.c.l.b16 %v3930
  %v3970 = vunpack.c.l.b16 %v3931
  %v3971 = vunpack.c.l.b16 %v3932
  %v3972 = vunpack.c.l.b16 %v3933
  %v3973 = vunpack.c.l.b16 %v3934
  %v3974 = vunpack.c.l.b16 %v3935
  %v3975 = vunpack.c.l.b16 %v3936
  %v3976 = vunpack.c.l.b16 %v3937
  %v3977 = vunpack.c.l.b16 %v3938
  %v3978 = vunpack.c.l.b16 %v3939
  %v3979 = vpack.c.b16 %v3969, %v3968
  %v3980 = vpack.c.b16 %v3971, %v3970
  %v3981 = vpack.c.b16 %v3973, %v3972
  %v3982 = vpack.c.b16 %v3975, %v3974
  %v3983 = vpack.c.b16 %v3977, %v3976
  %v3984 = vpack.c.b16 %v3978, %v3978
  %v3985 = vrot.slane %v3979, 2
  %v3986 = vrot.slane %v3980, 2
  %v3987 = vsel %vm2656, %v3985, %v3986
  %v3988 = vrot.slane %v3981, 2
  %v3989 = vsel %vm2656, %v3986, %v3988
  %v3990 = vrot.slane %v3982, 2
  %v3991 = vsel %vm2656, %v3988, %v3990
  %v3992 = vrot.slane %v3983, 2
  %v3993 = vsel %vm2656, %v3990, %v3992
  %v3994 = vrot.slane %v3984, 2
  %v3995 = vsel %vm2656, %v3992, %v3994
  %v4017 = vunpack.c.l.b16 %v3941
  %v4018 = vunpack.c.l.b16 %v3942
  %v4019 = vunpack.c.l.b16 %v3943
  %v4020 = vunpack.c.l.b16 %v3944
  %v4021 = vunpack.c.l.b16 %v3945
  %v4022 = vunpack.c.l.b16 %v3946
  %v4023 = vunpack.c.l.b16 %v3947
  %v4024 = vunpack.c.l.b16 %v3948
  %v4025 = vunpack.c.l.b16 %v3949
  %v4026 = vunpack.c.l.b16 %v3950
  %v4027 = vunpack.c.l.b16 %v3951
  %v4028 = vunpack.c.l.b16 %v3952
  %v4029 = vunpack.c.l.b16 %v3953
  %v4030 = vunpack.c.l.b16 %v3954
  %v4031 = vunpack.c.l.b16 %v3955
  %v4032 = vunpack.c.l.b16 %v3956
  %v4033 = vpack.c.b16 %v4018, %v4017
  %v4034 = vpack.c.b16 %v4020, %v4019
  %v4035 = vpack.c.b16 %v4022, %v4021
  %v4036 = vpack.c.b16 %v4024, %v4023
  %v4037 = vpack.c.b16 %v4026, %v4025
  %v4038 = vpack.c.b16 %v4028, %v4027
  %v4039 = vpack.c.b16 %v4030, %v4029
  %v4040 = vpack.c.b16 %v4032, %v4031
  %4049 = vmatpush.bf16.msra.mxu0 %v4040
  %4050 = vmatpush.bf16.msra.mxu0 %v4039
  %4051 = vmatpush.bf16.msra.mxu0 %v4038
  %4052 = vmatpush.bf16.msra.mxu0 %v4037
  %4053 = vmatpush.bf16.msra.mxu0 %v4036
  %4054 = vmatpush.bf16.msra.mxu0 %v4035
  %4055 = vmatpush.bf16.msra.mxu0 %v4034
  %4056 = vmatpush.bf16.msra.mxu0 %v4033
  %4057 = vmatmul.bf16.gmra.mxu0 %v3987
  %v4058 = vpop.f32.mrf.mxu0
  %v4059 = vadd.f32 0.0, %v4058
  %v4060 = vpop.f32.mrf.mxu0
  %v4061 = vadd.f32 0.0, %v4060
  %4062 = vmatmul.bf16.gmra.mxu0 %v3989
  %v4063 = vpop.f32.mrf.mxu0
  %v4064 = vadd.f32 0.0, %v4063
  %v4065 = vpop.f32.mrf.mxu0
  %v4066 = vadd.f32 0.0, %v4065
  %4067 = vmatmul.bf16.gmra.mxu0 %v3991
  %v4068 = vpop.f32.mrf.mxu0
  %v4069 = vadd.f32 0.0, %v4068
  %v4070 = vpop.f32.mrf.mxu0
  %v4071 = vadd.f32 0.0, %v4070
  %4072 = vmatmul.bf16.gmra.mxu0 %v3993
  %v4073 = vpop.f32.mrf.mxu0
  %v4074 = vadd.f32 0.0, %v4073
  %v4075 = vpop.f32.mrf.mxu0
  %v4076 = vadd.f32 0.0, %v4075
  %4077 = vmatmul.bf16.gmra.mxu0 %v3995
  %v4078 = vpop.f32.mrf.mxu0
  %v4079 = vadd.f32 0.0, %v4078
  %v4080 = vpop.f32.mrf.mxu0
  %v4081 = vadd.f32 0.0, %v4080
  %4082 = vdwg.mxu0
  %v4083 = vadd.f32 %v3919, %v4059
  %v4084 = vadd.f32 %v3920, %v4061
  %v4085 = vadd.f32 %v3921, %v4064
  %v4086 = vadd.f32 %v3922, %v4066
  %v4087 = vadd.f32 %v3923, %v4069
  %v4088 = vadd.f32 %v3924, %v4071
  %v4089 = vadd.f32 %v3925, %v4074
  %v4090 = vadd.f32 %v3926, %v4076
  %v4091 = vadd.f32 %v3927, %v4079
  %v4092 = vadd.f32 %v3928, %v4081
  %v4093 = vld [vmem:[#allocation4 + $0x2c] sm:$0x7]
  %s4094 = scalar_lea.vmem %s4, 448
  %v4095 = vld [vmem:[%s4094] sm:$0xf]
  %v4096 = vld [vmem:[%s4094 + $0x4] sm:$0xf]
  %v4097 = vld [vmem:[%s4094 + $0x8] sm:$0xf]
  %v4098 = vld [vmem:[%s4094 + $0xc] sm:$0xf]
  %v4099 = vld [vmem:[%s4094 + $0x10] sm:$0xf]
  %v4100 = vld [vmem:[%s4094 + $0x14] sm:$0xf]
  %v4101 = vld [vmem:[%s4094 + $0x18] sm:$0xf]
  %v4102 = vld [vmem:[%s4094 + $0x1c] sm:$0xf]
  %v4103 = vld [vmem:[%s4094 + $0x20] sm:$0xf]
  %v4104 = vld [vmem:[%s4094 + $0x24] sm:$0xf]
  %v4105 = vld [vmem:[%s4094 + $0x28] sm:$0xf]
  %v4106 = vld [vmem:[%s4094 + $0x2c] sm:$0xf]
  %v4107 = vld [vmem:[%s4094 + $0x30] sm:$0xf]
  %v4108 = vld [vmem:[%s4094 + $0x34] sm:$0xf]
  %v4109 = vld [vmem:[%s4094 + $0x38] sm:$0xf]
  %v4110 = vld [vmem:[%s4094 + $0x3c] sm:$0xf]
  %v4112 = vunpack.c.l.b16 %v4093
  %v4113 = vpack.c.b16 %v4112, %v4112
  %v4115 = vshrl.u32 %v3979, 16
  %v4117 = vrot.slane %v4115, 2
  %v4118 = vshll.u32 %v3979, 16
  %v4120 = vrot.slane %v4118, 3
  %v4121 = vor.u32 %v4117, %v4120
  %v4123 = vshrl.u32 %v3980, 16
  %v4125 = vrot.slane %v4123, 2
  %v4126 = vshll.u32 %v3980, 16
  %v4128 = vrot.slane %v4126, 3
  %v4129 = vor.u32 %v4125, %v4128
  %v4130 = vsel %vm2786, %v4121, %v4129
  %v4132 = vshrl.u32 %v3981, 16
  %v4134 = vrot.slane %v4132, 2
  %v4135 = vshll.u32 %v3981, 16
  %v4137 = vrot.slane %v4135, 3
  %v4138 = vor.u32 %v4134, %v4137
  %v4139 = vsel %vm2786, %v4129, %v4138
  %v4141 = vshrl.u32 %v3982, 16
  %v4143 = vrot.slane %v4141, 2
  %v4144 = vshll.u32 %v3982, 16
  %v4146 = vrot.slane %v4144, 3
  %v4147 = vor.u32 %v4143, %v4146
  %v4148 = vsel %vm2786, %v4138, %v4147
  %v4150 = vshrl.u32 %v3983, 16
  %v4152 = vrot.slane %v4150, 2
  %v4153 = vshll.u32 %v3983, 16
  %v4155 = vrot.slane %v4153, 3
  %v4156 = vor.u32 %v4152, %v4155
  %v4157 = vsel %vm2786, %v4147, %v4156
  %v4159 = vshrl.u32 %v4113, 16
  %v4161 = vrot.slane %v4159, 2
  %v4162 = vshll.u32 %v4113, 16
  %v4164 = vrot.slane %v4162, 3
  %v4165 = vor.u32 %v4161, %v4164
  %v4166 = vsel %vm2786, %v4156, %v4165
  %v4188 = vunpack.c.l.b16 %v4095
  %v4189 = vunpack.c.l.b16 %v4096
  %v4190 = vunpack.c.l.b16 %v4097
  %v4191 = vunpack.c.l.b16 %v4098
  %v4192 = vunpack.c.l.b16 %v4099
  %v4193 = vunpack.c.l.b16 %v4100
  %v4194 = vunpack.c.l.b16 %v4101
  %v4195 = vunpack.c.l.b16 %v4102
  %v4196 = vunpack.c.l.b16 %v4103
  %v4197 = vunpack.c.l.b16 %v4104
  %v4198 = vunpack.c.l.b16 %v4105
  %v4199 = vunpack.c.l.b16 %v4106
  %v4200 = vunpack.c.l.b16 %v4107
  %v4201 = vunpack.c.l.b16 %v4108
  %v4202 = vunpack.c.l.b16 %v4109
  %v4203 = vunpack.c.l.b16 %v4110
  %v4204 = vpack.c.b16 %v4189, %v4188
  %v4205 = vpack.c.b16 %v4191, %v4190
  %v4206 = vpack.c.b16 %v4193, %v4192
  %v4207 = vpack.c.b16 %v4195, %v4194
  %v4208 = vpack.c.b16 %v4197, %v4196
  %v4209 = vpack.c.b16 %v4199, %v4198
  %v4210 = vpack.c.b16 %v4201, %v4200
  %v4211 = vpack.c.b16 %v4203, %v4202
  %4220 = vmatpush.bf16.msra.mxu0 %v4211
  %4221 = vmatpush.bf16.msra.mxu0 %v4210
  %4222 = vmatpush.bf16.msra.mxu0 %v4209
  %4223 = vmatpush.bf16.msra.mxu0 %v4208
  %4224 = vmatpush.bf16.msra.mxu0 %v4207
  %4225 = vmatpush.bf16.msra.mxu0 %v4206
  %4226 = vmatpush.bf16.msra.mxu0 %v4205
  %4227 = vmatpush.bf16.msra.mxu0 %v4204
  %4228 = vmatmul.bf16.gmra.mxu0 %v4130
  %v4229 = vpop.f32.mrf.mxu0
  %v4230 = vadd.f32 0.0, %v4229
  %v4231 = vpop.f32.mrf.mxu0
  %v4232 = vadd.f32 0.0, %v4231
  %4233 = vmatmul.bf16.gmra.mxu0 %v4139
  %v4234 = vpop.f32.mrf.mxu0
  %v4235 = vadd.f32 0.0, %v4234
  %v4236 = vpop.f32.mrf.mxu0
  %v4237 = vadd.f32 0.0, %v4236
  %4238 = vmatmul.bf16.gmra.mxu0 %v4148
  %v4239 = vpop.f32.mrf.mxu0
  %v4240 = vadd.f32 0.0, %v4239
  %v4241 = vpop.f32.mrf.mxu0
  %v4242 = vadd.f32 0.0, %v4241
  %4243 = vmatmul.bf16.gmra.mxu0 %v4157
  %v4244 = vpop.f32.mrf.mxu0
  %v4245 = vadd.f32 0.0, %v4244
  %v4246 = vpop.f32.mrf.mxu0
  %v4247 = vadd.f32 0.0, %v4246
  %4248 = vmatmul.bf16.gmra.mxu0 %v4166
  %v4249 = vpop.f32.mrf.mxu0
  %v4250 = vadd.f32 0.0, %v4249
  %v4251 = vpop.f32.mrf.mxu0
  %v4252 = vadd.f32 0.0, %v4251
  %4253 = vdwg.mxu0
  %v4254 = vadd.f32 %v4083, %v4230
  %v4255 = vadd.f32 %v4084, %v4232
  %v4256 = vadd.f32 %v4085, %v4235
  %v4257 = vadd.f32 %v4086, %v4237
  %v4258 = vadd.f32 %v4087, %v4240
  %v4259 = vadd.f32 %v4088, %v4242
  %v4260 = vadd.f32 %v4089, %v4245
  %v4261 = vadd.f32 %v4090, %v4247
  %v4262 = vadd.f32 %v4091, %v4250
  %v4263 = vadd.f32 %v4092, %v4252
  %v4264 = vld [vmem:[#allocation4 + $0x4] sm:$0x8]
  %s4265 = scalar_lea.vmem %s4, 512
  %v4266 = vld [vmem:[%s4265] sm:$0xf]
  %v4267 = vld [vmem:[%s4265 + $0x4] sm:$0xf]
  %v4268 = vld [vmem:[%s4265 + $0x8] sm:$0xf]
  %v4269 = vld [vmem:[%s4265 + $0xc] sm:$0xf]
  %v4270 = vld [vmem:[%s4265 + $0x10] sm:$0xf]
  %v4271 = vld [vmem:[%s4265 + $0x14] sm:$0xf]
  %v4272 = vld [vmem:[%s4265 + $0x18] sm:$0xf]
  %v4273 = vld [vmem:[%s4265 + $0x1c] sm:$0xf]
  %v4274 = vld [vmem:[%s4265 + $0x20] sm:$0xf]
  %v4275 = vld [vmem:[%s4265 + $0x24] sm:$0xf]
  %v4276 = vld [vmem:[%s4265 + $0x28] sm:$0xf]
  %v4277 = vld [vmem:[%s4265 + $0x2c] sm:$0xf]
  %v4278 = vld [vmem:[%s4265 + $0x30] sm:$0xf]
  %v4279 = vld [vmem:[%s4265 + $0x34] sm:$0xf]
  %v4280 = vld [vmem:[%s4265 + $0x38] sm:$0xf]
  %v4281 = vld [vmem:[%s4265 + $0x3c] sm:$0xf]
  %v4283 = vunpack.c.l.b16 %v4264
  %v4284 = vpack.c.b16 %v3969, %v4283
  %v4285 = vrot.slane %v4284, 3
  %v4286 = vrot.slane %v3980, 3
  %v4287 = vsel %vm1475, %v4285, %v4286
  %v4288 = vrot.slane %v3981, 3
  %v4289 = vsel %vm1475, %v4286, %v4288
  %v4290 = vrot.slane %v3982, 3
  %v4291 = vsel %vm1475, %v4288, %v4290
  %v4292 = vrot.slane %v3983, 3
  %v4293 = vsel %vm1475, %v4290, %v4292
  %v4294 = vrot.slane %v4113, 3
  %v4295 = vsel %vm1475, %v4292, %v4294
  %v4317 = vunpack.c.l.b16 %v4266
  %v4318 = vunpack.c.l.b16 %v4267
  %v4319 = vunpack.c.l.b16 %v4268
  %v4320 = vunpack.c.l.b16 %v4269
  %v4321 = vunpack.c.l.b16 %v4270
  %v4322 = vunpack.c.l.b16 %v4271
  %v4323 = vunpack.c.l.b16 %v4272
  %v4324 = vunpack.c.l.b16 %v4273
  %v4325 = vunpack.c.l.b16 %v4274
  %v4326 = vunpack.c.l.b16 %v4275
  %v4327 = vunpack.c.l.b16 %v4276
  %v4328 = vunpack.c.l.b16 %v4277
  %v4329 = vunpack.c.l.b16 %v4278
  %v4330 = vunpack.c.l.b16 %v4279
  %v4331 = vunpack.c.l.b16 %v4280
  %v4332 = vunpack.c.l.b16 %v4281
  %v4333 = vpack.c.b16 %v4318, %v4317
  %v4334 = vpack.c.b16 %v4320, %v4319
  %v4335 = vpack.c.b16 %v4322, %v4321
  %v4336 = vpack.c.b16 %v4324, %v4323
  %v4337 = vpack.c.b16 %v4326, %v4325
  %v4338 = vpack.c.b16 %v4328, %v4327
  %v4339 = vpack.c.b16 %v4330, %v4329
  %v4340 = vpack.c.b16 %v4332, %v4331
  %4349 = vmatpush.bf16.msra.mxu0 %v4340
  %4350 = vmatpush.bf16.msra.mxu0 %v4339
  %4351 = vmatpush.bf16.msra.mxu0 %v4338
  %4352 = vmatpush.bf16.msra.mxu0 %v4337
  %4353 = vmatpush.bf16.msra.mxu0 %v4336
  %4354 = vmatpush.bf16.msra.mxu0 %v4335
  %4355 = vmatpush.bf16.msra.mxu0 %v4334
  %4356 = vmatpush.bf16.msra.mxu0 %v4333
  %4357 = vmatmul.bf16.gmra.mxu0 %v4287
  %v4358 = vpop.f32.mrf.mxu0
  %v4359 = vadd.f32 0.0, %v4358
  %v4360 = vpop.f32.mrf.mxu0
  %v4361 = vadd.f32 0.0, %v4360
  %4362 = vmatmul.bf16.gmra.mxu0 %v4289
  %v4363 = vpop.f32.mrf.mxu0
  %v4364 = vadd.f32 0.0, %v4363
  %v4365 = vpop.f32.mrf.mxu0
  %v4366 = vadd.f32 0.0, %v4365
  %4367 = vmatmul.bf16.gmra.mxu0 %v4291
  %v4368 = vpop.f32.mrf.mxu0
  %v4369 = vadd.f32 0.0, %v4368
  %v4370 = vpop.f32.mrf.mxu0
  %v4371 = vadd.f32 0.0, %v4370
  %4372 = vmatmul.bf16.gmra.mxu0 %v4293
  %v4373 = vpop.f32.mrf.mxu0
  %v4374 = vadd.f32 0.0, %v4373
  %v4375 = vpop.f32.mrf.mxu0
  %v4376 = vadd.f32 0.0, %v4375
  %4377 = vmatmul.bf16.gmra.mxu0 %v4295
  %v4378 = vpop.f32.mrf.mxu0
  %v4379 = vadd.f32 0.0, %v4378
  %v4380 = vpop.f32.mrf.mxu0
  %v4381 = vadd.f32 0.0, %v4380
  %4382 = vdwg.mxu0
  %v4383 = vadd.f32 %v4254, %v4359
  %v4384 = vadd.f32 %v4255, %v4361
  %v4385 = vadd.f32 %v4256, %v4364
  %v4386 = vadd.f32 %v4257, %v4366
  %v4387 = vadd.f32 %v4258, %v4369
  %v4388 = vadd.f32 %v4259, %v4371
  %v4389 = vadd.f32 %v4260, %v4374
  %v4390 = vadd.f32 %v4261, %v4376
  %v4391 = vadd.f32 %v4262, %v4379
  %v4392 = vadd.f32 %v4263, %v4381
  %v4393 = vperm.slane %v32, 0
  %v4394 = vadd.f32 %v4383, %v4393
  %v4395 = vadd.f32 %v4384, %v4393
  %v4396 = vadd.f32 %v4385, %v4393
  %v4397 = vadd.f32 %v4386, %v4393
  %v4398 = vadd.f32 %v4387, %v4393
  %v4399 = vadd.f32 %v4388, %v4393
  %v4400 = vadd.f32 %v4389, %v4393
  %v4401 = vadd.f32 %v4390, %v4393
  %v4402 = vadd.f32 %v4391, %v4393
  %v4403 = vadd.f32 %v4392, %v4393
  %v4404 = vmax.f32 %v4394, 0.0
  %v4405 = vmax.f32 %v4395, 0.0
  %v4406 = vmax.f32 %v4396, 0.0
  %v4407 = vmax.f32 %v4397, 0.0
  %v4408 = vmax.f32 %v4398, 0.0
  %v4409 = vmax.f32 %v4399, 0.0
  %v4410 = vmax.f32 %v4400, 0.0
  %v4411 = vmax.f32 %v4401, 0.0
  %v4412 = vmax.f32 %v4402, 0.0
  %v4413 = vmax.f32 %v4403, 0.0
  %4414 = vst [vmem:[%s6] sm:$0xff] %v4404
  %4415 = vst [vmem:[%s6 + $0x8] sm:$0xff] %v4405
  %4416 = vst [vmem:[%s6 + $0x10] sm:$0xff] %v4406
  %4417 = vst [vmem:[%s6 + $0x18] sm:$0xff] %v4407
  %4418 = vst [vmem:[%s6 + $0x20] sm:$0xff] %v4408
  %4419 = vst [vmem:[%s6 + $0x28] sm:$0xff] %v4409
  %4420 = vst [vmem:[%s6 + $0x30] sm:$0xff] %v4410
  %4421 = vst [vmem:[%s6 + $0x38] sm:$0xff] %v4411
  %4422 = vst [vmem:[%s6 + $0x40] sm:$0xff] %v4412
  %4423 = vst [vmem:[%s6 + $0x48] sm:$0xff] %v4413
  // Predicated region
  $region26: #{encoder_forward.1} parent=0 // pred_check
    _
  $region27: #{encoder_forward.1} parent=0 // pred_check_branch
    %4425 = sbr.rel (0) target = $region29
  $region28: #{encoder_forward.1} parent=0 // pred_region
    _
  $region29: #{encoder_forward.1} parent=0 // pred_fallthru
    _
  // Predicated region
  $region30: #{encoder_forward.1} parent=0 // pred_check
    _
  $region31: #{encoder_forward.1} parent=0 // pred_check_branch
    %4427 = sbr.rel (0) target = $region33
  $region32: #{encoder_forward.1} parent=0 // pred_region
    _
  $region33: #{encoder_forward.1} parent=0 // pred_fallthru
    _

</llo_original>
